<compile_context>
chip_gen: v7x
topology: tpu7x:2x2x1
jax: 0.10.0
libtpu: 0.0.40
codegen_flags: <defaults>
</compile_context>

<pallas_src>
import numpy as np
import jax
import jax.numpy as jnp
from jax import lax
from jax.experimental import pallas as pl
from jax.experimental.pallas import tpu as pltpu

LANE = 128

VSPEC = pl.BlockSpec(memory_space=pltpu.MemorySpace.VMEM)
SSPEC = pl.BlockSpec(memory_space=pltpu.MemorySpace.SMEM)


def _round_up(n, m=LANE):
    return ((n + m - 1) // m) * m


def _pad_to(a, shape):
    return jnp.pad(a, [(0, s - d) for d, s in zip(a.shape, shape)])


def _pad_gates(w, h, hp):
    # (..., 4h) -> (..., 4hp): each gate block starts at g*hp so in-kernel gate slices are
    # 128-lane aligned; padded columns are zero (=> padded state lanes stay exactly zero).
    parts = [_pad_to(w[..., g * h:(g + 1) * h], w.shape[:-1] + (hp,)) for g in range(4)]
    return jnp.concatenate(parts, axis=-1)


def _vmem_limit_bytes():
    # Per-generation scoped-VMEM limit: ~3/4 of physical leaves double-buffer/compiler
    # headroom (v5e/v6e 128 MiB -> 96 MiB, v7x 64 MiB -> 48 MiB).  Falls back to a value
    # that is safe on every generation if the query is unavailable.
    cap = 64 * 1024 * 1024
    try:
        cap = int(getattr(pltpu.get_tpu_info(), "vmem_capacity_bytes", cap))
    except Exception:
        pass
    return int(min((cap * 3) // 4, 100 * 1024 * 1024))


# ---------------------------------------------------------------------------
# Encoder (Enc_lstm): fused bidirectional LSTM, whole recurrence in ONE kernel
# ---------------------------------------------------------------------------
def _enc_kernel(x_ref, m_ref, wih_ref, bih_ref, whh_ref, yf_ref, yb_ref,
                xg_s, hf, cf, hb, cb):
    T, B, DP = x_ref.shape
    HP = hf.shape[-1]
    G = 4 * HP

    # Prologue (hoisted out of the recurrence): input->hidden projection for BOTH directions
    # and ALL timesteps in one MXU matmul; the (T, B, 8*HP) result never leaves VMEM.
    xg = jnp.dot(x_ref[...].reshape(T * B, DP).astype(jnp.bfloat16), wih_ref[...],
                 preferred_element_type=jnp.float32) + bih_ref[...]
    xg_s[...] = xg.reshape(T, B, 2 * G)

    hf[...] = jnp.zeros_like(hf)
    cf[...] = jnp.zeros_like(cf)
    hb[...] = jnp.zeros_like(hb)
    cb[...] = jnp.zeros_like(cb)

    def cell(gates, m, h_ref, c_ref):
        i = jax.nn.sigmoid(gates[:, 0:HP])
        f = jax.nn.sigmoid(gates[:, HP:2 * HP])
        g = jnp.tanh(gates[:, 2 * HP:3 * HP])
        o = jax.nn.sigmoid(gates[:, 3 * HP:4 * HP])
        c_new = f * c_ref[...] + i * g
        h_new = o * jnp.tanh(c_new)
        # packed-sequence emulation: freeze state & zero output past each length
        h_ref[...] = m * h_new + (1.0 - m) * h_ref[...]
        c_ref[...] = m * c_new + (1.0 - m) * c_ref[...]
        return m * h_new

    def step(t, carry):
        tb = T - 1 - t
        # Both directions share one block-diagonal h@Whh matmul (K = 2*HP = 256).
        hcat = jnp.concatenate([hf[...], hb[...]], axis=-1)
        hg = jnp.dot(hcat.astype(jnp.bfloat16), whh_ref[...],
                     preferred_element_type=jnp.float32)             # (B, 8*HP)
        gates_f = xg_s[t][:, :G] + hg[:, :G]
        gates_b = xg_s[tb][:, G:] + hg[:, G:]
        yf_ref[t] = cell(gates_f, m_ref[t], hf, cf)
        yb_ref[tb] = cell(gates_b, m_ref[tb], hb, cb)
        return carry

    lax.fori_loop(0, T, step, 0)


def encoder_bilstm(x_tbd, lengths, pp):
    """Bidirectional LSTM with packed-sequence semantics (state frozen / output zeroed past
    each length) == torch pack_padded/pad_packed in the original batch order, so Seq2Seq's
    sort/unsort is unnecessary.  Returns padded per-direction outputs (T, B, HP) that the
    decoder consumes directly (no slice/transpose/pad glue between the two kernels)."""
    T, B, _ = x_tbd.shape
    HP = pp['whh_bd'].shape[0] // 2
    mask = (jnp.arange(T)[:, None] < lengths[None, :]).astype(jnp.float32)[:, :, None]

    return pl.pallas_call(
        _enc_kernel,
        out_shape=(jax.ShapeDtypeStruct((T, B, HP), jnp.float32),
                   jax.ShapeDtypeStruct((T, B, HP), jnp.float32)),
        in_specs=[VSPEC] * 5,
        out_specs=(VSPEC, VSPEC),
        scratch_shapes=[pltpu.VMEM((T, B, 8 * HP), jnp.float32),   # xg (hoisted projection)
                        pltpu.VMEM((B, HP), jnp.float32),          # h fwd
                        pltpu.VMEM((B, HP), jnp.float32),          # c fwd
                        pltpu.VMEM((B, HP), jnp.float32),          # h bwd
                        pltpu.VMEM((B, HP), jnp.float32)],         # c bwd
        compiler_params=pltpu.CompilerParams(vmem_limit_bytes=_vmem_limit_bytes()),
    )(x_tbd, mask, pp['wih_fb'], pp['b_fb'], pp['whh_bd'])


# ---------------------------------------------------------------------------
# Decoder (Dec): whole decode loop inside one kernel (attention + LSTMCell + fc + argmax)
# ---------------------------------------------------------------------------
def _dec_kernel(teach_ref, encf_ref, encb_ref, gt_ref,
                uhwf_ref, uhwb_ref, uhb_ref,
                wh_ref, wsb_ref, vw_ref, vb_ref,
                win_ref, bl_ref, fcw_ref, fcb_ref, embt_ref,
                logits_ref, pred_ref,
                hx, cx, pemb, uh):
    T, B, HP = encf_ref.shape
    HZ = hx.shape[-1]
    AP = uh.shape[-1]
    Tz, _, VP = logits_ref.shape

    hx[...] = jnp.zeros_like(hx)
    cx[...] = jnp.zeros_like(cx)
    pemb[...] = jnp.zeros_like(pemb)

    # Uh = atten_uh(encoder): one matmul per direction, kept in VMEM for the whole decode.
    uh[...] = (jnp.dot(encf_ref[...].reshape(T * B, HP).astype(jnp.bfloat16), uhwf_ref[...],
                       preferred_element_type=jnp.float32)
               + jnp.dot(encb_ref[...].reshape(T * B, HP).astype(jnp.bfloat16), uhwb_ref[...],
                         preferred_element_type=jnp.float32)
               + uhb_ref[...]).reshape(T, B, AP)

    vb = vb_ref[0]

    def step(t, carry):
        h = hx[...]
        # fused h-matmul: [atten_ws | Whh] share the h operand -> one MXU push
        hW = jnp.dot(h.astype(jnp.bfloat16), wh_ref[...],
                     preferred_element_type=jnp.float32)               # (B, AP + 4*HZ)
        ws = hW[:, :AP] + wsb_ref[...]
        # --- additive attention: score = v . tanh(Uh + Ws h) + v_b, softmax over T_en ---
        s = jnp.tanh(uh[...] + ws[None, :, :])                         # (T, B, AP)
        score = jnp.sum(s * vw_ref[...], axis=-1, keepdims=True) + vb  # (T, B, 1)
        score = score - jnp.max(score, axis=0, keepdims=True)
        e = jnp.exp(score)
        alpha = e / jnp.sum(e, axis=0, keepdims=True)                  # exact softmax
        # TODO(synk): at large T_en route the context through the MXU (einsum) instead of
        #             this VPU broadcast-multiply + reduce.
        att_f = jnp.sum(alpha * encf_ref[...], axis=0)                 # (B, HP) == bmm
        att_b = jnp.sum(alpha * encb_ref[...], axis=0)
        # --- teacher forcing vs greedy feedback (selected fully in-kernel) ---
        uf = (teach_ref[t] != 0).astype(jnp.float32)
        emb_t = uf * gt_ref[t] + (1.0 - uf) * pemb[...]                # (B, DZP)
        # --- LSTMCell on cat([att, emb]): one row-stacked matmul + the h term from hW ---
        xcat = jnp.concatenate([att_f, att_b, emb_t], axis=-1)
        gates = (jnp.dot(xcat.astype(jnp.bfloat16), win_ref[...],
                         preferred_element_type=jnp.float32)
                 + hW[:, AP:] + bl_ref[...])
        i = jax.nn.sigmoid(gates[:, 0:HZ])
        f = jax.nn.sigmoid(gates[:, HZ:2 * HZ])
        g = jnp.tanh(gates[:, 2 * HZ:3 * HZ])
        o = jax.nn.sigmoid(gates[:, 3 * HZ:4 * HZ])
        c_new = f * cx[...] + i * g
        h_new = o * jnp.tanh(c_new)
        hx[...] = h_new
        cx[...] = c_new
        # --- output projection (padded vocab lanes carry a -1e9 bias) ---
        logit = jnp.dot(h_new.astype(jnp.bfloat16), fcw_ref[...],
                        preferred_element_type=jnp.float32) + fcb_ref[...]   # (B, VP)
        logits_ref[t] = logit
        # --- greedy argmax (first max), emitted as int32 output, fed back via one-hot@emb ---
        col = lax.broadcasted_iota(jnp.int32, (B, VP), 1)
        mx = jnp.max(logit, axis=-1, keepdims=True)
        pred = jnp.min(jnp.where(logit >= mx, col, VP), axis=-1, keepdims=True)   # (B, 1)
        pred_ref[t] = pred
        onehot = (col == pred).astype(jnp.bfloat16)
        # TODO(synk): at realistic zh_voc replace this one-hot matmul with a row gather and
        #             stream fc_w / emb_p from HBM in vocab tiles.
        pemb[...] = jnp.dot(onehot, embt_ref[...], preferred_element_type=jnp.float32)
        return carry

    lax.fori_loop(0, Tz, step, 0)


def decoder_forward(enc_f, enc_b, gtruths, pp, zh_voc, ssprob, is_train, key):
    T_en, B, _ = enc_f.shape
    T_zh = gtruths.shape[1]
    AP = pp['uh_b'].shape[1]
    HZP = pp['w_h'].shape[0]
    DZP = pp['emb_p'].shape[1]
    VP = pp['fc_w'].shape[1]

    gt_emb = pp['zh_emb'][gtruths.T.astype(jnp.int32)]                 # (T_zh, B, zh_dims)
    gt_emb = _pad_to(gt_emb, (T_zh, B, DZP))

    steps = jnp.arange(T_zh)
    if is_train:
        # TODO(synk): PyTorch draws python random.random() per step (irreproducible); we use
        # a JAX PRNG for the scheduled-sampling coin flips.
        rnd = jax.random.uniform(key, (T_zh,))
        use_teacher = (steps == 0) | (rnd <= ssprob)
    else:
        use_teacher = (steps == 0)
    teach = use_teacher.astype(jnp.int32)

    in_specs = ([SSPEC]              # teach (SMEM scalars)
                + [VSPEC] * 9        # enc_f, enc_b, gt, uh_wf, uh_wb, uh_b, w_h, ws_b, v_w
                + [SSPEC]            # v_b (SMEM scalar)
                + [VSPEC] * 5)       # w_in, lstm_b, fc_w, fc_b, emb_p

    logits_p, pred = pl.pallas_call(
        _dec_kernel,
        out_shape=(jax.ShapeDtypeStruct((T_zh, B, VP), jnp.float32),
                   jax.ShapeDtypeStruct((T_zh, B, 1), jnp.int32)),
        in_specs=in_specs,
        out_specs=(VSPEC, VSPEC),
        scratch_shapes=[
            pltpu.VMEM((B, HZP), jnp.float32),        # hx
            pltpu.VMEM((B, HZP), jnp.float32),        # cx
            pltpu.VMEM((B, DZP), jnp.float32),        # embedding of previous prediction
            pltpu.VMEM((T_en, B, AP), jnp.float32),   # Uh
        ],
        compiler_params=pltpu.CompilerParams(vmem_limit_bytes=_vmem_limit_bytes()),
    )(teach, enc_f, enc_b, gt_emb,
      pp['uh_wf'], pp['uh_wb'], pp['uh_b'],
      pp['w_h'], pp['ws_b'], pp['v_w'], pp['v_b'],
      pp['w_in'], pp['lstm_b'], pp['fc_w'], pp['fc_b'], pp['emb_p'])

    logits = logits_p[:, :, :zh_voc]                                   # (T_zh, B, zh_voc)
    predic = pred[:, :, 0].T                                           # (B, T_zh) int32
    return logits, predic


# ---------------------------------------------------------------------------
# Seq2Seq forward
# ---------------------------------------------------------------------------
def seq2seq_forward(pp, inputs, gtruths, inputs_len, ssprob, key,
                    is_train, en_hidden, zh_voc):
    # NOTE: torch's order() sort/unsort is unnecessary here (the in-kernel mask handles
    # unsorted lengths and results stay in input order); torch's pad_packed_sequence trims
    # the time axis to max(inputs_len) — the demo uses max(inputs_len) == T_en for a match.
    DP = pp['wih_fb'].shape[0]
    x = pp['en_emb'][inputs.T.astype(jnp.int32)]                       # (T_en, B, en_dims)
    x = _pad_to(x, (x.shape[0], x.shape[1], DP))
    y_f, y_b = encoder_bilstm(x, inputs_len, pp)                       # (T_en, B, HP) padded
    H = en_hidden
    rnn_enc = jnp.transpose(
        jnp.concatenate([y_f[:, :, :H], y_b[:, :, :H]], axis=-1), (1, 0, 2))   # (B, T, 2H)
    logits, predic = decoder_forward(y_f, y_b, gtruths, pp, zh_voc, ssprob, is_train, key)
    return logits, predic, rnn_enc


# ---------------------------------------------------------------------------
# Parameter init (natural torch-like shapes) + packing into padded kernel layout
# ---------------------------------------------------------------------------
def init_params(key, en_voc, en_dims, en_hidden, zh_voc, zh_dims, zh_hidden, atten):
    ks = jax.random.split(key, 20)

    def u(k, shape, scale):
        return jax.random.uniform(k, shape, jnp.float32, -scale, scale)

    E = 2 * en_hidden
    p = {}
    p['en_emb'] = jax.random.normal(ks[0], (en_voc, en_dims), jnp.float32) * 0.1
    p['zh_emb'] = jax.random.normal(ks[1], (zh_voc, zh_dims), jnp.float32) * 0.1
    se = 1.0 / np.sqrt(en_hidden)
    p['wih_f'] = u(ks[2], (en_dims, 4 * en_hidden), se)      # stored pre-transposed
    p['whh_f'] = u(ks[3], (en_hidden, 4 * en_hidden), se)
    p['b_f'] = u(ks[4], (1, 4 * en_hidden), se)              # b_ih + b_hh combined
    p['wih_b'] = u(ks[5], (en_dims, 4 * en_hidden), se)
    p['whh_b'] = u(ks[6], (en_hidden, 4 * en_hidden), se)
    p['b_b'] = u(ks[7], (1, 4 * en_hidden), se)
    sd = 1.0 / np.sqrt(zh_hidden)
    p['lstm_wih'] = u(ks[8], (E + zh_dims, 4 * zh_hidden), sd)
    p['lstm_whh'] = u(ks[9], (zh_hidden, 4 * zh_hidden), sd)
    p['lstm_b'] = u(ks[10], (1, 4 * zh_hidden), sd)
    p['ws_w'] = u(ks[11], (zh_hidden, atten), sd)
    p['ws_b'] = u(ks[12], (1, atten), sd)
    su = 1.0 / np.sqrt(E)
    p['uh_w'] = u(ks[13], (E, atten), su)
    p['uh_b'] = u(ks[14], (1, atten), su)
    sa = 1.0 / np.sqrt(atten)
    p['v_w'] = u(ks[15], (atten, 1), sa)
    p['v_b'] = u(ks[16], (1, 1), sa)
    p['fc_w'] = u(ks[17], (zh_hidden, zh_voc), sd)
    p['fc_b'] = u(ks[18], (1, zh_voc), sd)
    return p


def pack_params(p, en_dims, en_hidden, zh_hidden, zh_dims, zh_voc, atten):
    HEP = _round_up(en_hidden)
    HZP = _round_up(zh_hidden)
    AP = _round_up(atten)
    DP = _round_up(en_dims)
    DZP = _round_up(zh_dims)
    VP = _round_up(zh_voc)
    E = 2 * en_hidden
    bf16 = jnp.bfloat16

    pp = {'en_emb': p['en_emb'], 'zh_emb': p['zh_emb']}

    # encoder: gate-padded weights; both directions' input projections fused column-wise,
    # hidden->hidden weights fused into one block-diagonal matrix (one K=2*HEP matmul/step)
    wih_f = _pad_to(_pad_gates(p['wih_f'], en_hidden, HEP), (DP, 4 * HEP))
    wih_b = _pad_to(_pad_gates(p['wih_b'], en_hidden, HEP), (DP, 4 * HEP))
    pp['wih_fb'] = jnp.concatenate([wih_f, wih_b], axis=-1).astype(bf16)       # (DP, 8*HEP)
    pp['b_fb'] = jnp.concatenate([_pad_gates(p['b_f'], en_hidden, HEP),
                                  _pad_gates(p['b_b'], en_hidden, HEP)], axis=-1)
    whh_f = _pad_to(_pad_gates(p['whh_f'], en_hidden, HEP), (HEP, 4 * HEP))
    whh_b = _pad_to(_pad_gates(p['whh_b'], en_hidden, HEP), (HEP, 4 * HEP))
    z = jnp.zeros((HEP, 4 * HEP), jnp.float32)
    pp['whh_bd'] = jnp.concatenate(
        [jnp.concatenate([whh_f, z], axis=-1),
         jnp.concatenate([z, whh_b], axis=-1)], axis=0).astype(bf16)           # (2HEP, 8HEP)

    # decoder attention: uh split per encoder direction (consumes padded y_f / y_b directly)
    pp['uh_wf'] = _pad_to(p['uh_w'][:en_hidden], (HEP, AP)).astype(bf16)
    pp['uh_wb'] = _pad_to(p['uh_w'][en_hidden:], (HEP, AP)).astype(bf16)
    pp['uh_b'] = _pad_to(p['uh_b'], (1, AP))
    pp['ws_b'] = _pad_to(p['ws_b'], (1, AP))
    pp['v_w'] = _pad_to(p['v_w'].T, (1, AP)).reshape(1, 1, AP)
    pp['v_b'] = p['v_b'].reshape(1)

    # decoder LSTMCell: [ws_w | Whh] fused column-wise (shares the h operand);
    # [Wia_f ; Wia_b ; Wie] fused row-wise (one matmul on cat([att_f, att_b, emb]))
    ws_w = _pad_to(p['ws_w'], (HZP, AP))
    whh_d = _pad_to(_pad_gates(p['lstm_whh'], zh_hidden, HZP), (HZP, 4 * HZP))
    pp['w_h'] = jnp.concatenate([ws_w, whh_d], axis=-1).astype(bf16)           # (HZP, AP+4HZP)
    wia_f = _pad_to(_pad_gates(p['lstm_wih'][:en_hidden], zh_hidden, HZP), (HEP, 4 * HZP))
    wia_b = _pad_to(_pad_gates(p['lstm_wih'][en_hidden:E], zh_hidden, HZP), (HEP, 4 * HZP))
    wie = _pad_to(_pad_gates(p['lstm_wih'][E:], zh_hidden, HZP), (DZP, 4 * HZP))
    pp['w_in'] = jnp.concatenate([wia_f, wia_b, wie], axis=0).astype(bf16)     # (2HEP+DZP, 4HZP)
    pp['lstm_b'] = _pad_gates(p['lstm_b'], zh_hidden, HZP)

    # output projection: padded vocab lanes get -1e9 bias so in-kernel argmax ignores them
    pp['fc_w'] = _pad_to(p['fc_w'], (HZP, VP)).astype(bf16)
    pp['fc_b'] = jnp.full((1, VP), -1e9, jnp.float32).at[:, :zh_voc].set(p['fc_b'])
    pp['emb_p'] = _pad_to(p['zh_emb'], (VP, DZP)).astype(bf16)
    return pp


if __name__ == "__main__":
    key = jax.random.PRNGKey(0)
    k_param, k_in, k_gt, k_ss = jax.random.split(key, 4)

    B, T_en, T_zh = 2, 8, 6
    en_voc, en_dims, en_hidden = 50, 16, 16
    zh_voc, zh_dims, zh_hidden = 64, 16, 32
    atten_vec_size = 32

    params = init_params(k_param, en_voc, en_dims, en_hidden,
                         zh_voc, zh_dims, zh_hidden, atten_vec_size)
    packed = pack_params(params, en_dims, en_hidden, zh_hidden, zh_dims,
                         zh_voc, atten_vec_size)

    inputs = jax.random.randint(k_in, (B, T_en), 0, en_voc, jnp.int32)
    gtruths = jax.random.randint(k_gt, (B, T_zh), 0, zh_voc, jnp.int32)
    inputs_len = jnp.array([T_en, 5], jnp.int32)   # max length == T_en (see NOTE above)

    fwd = jax.jit(seq2seq_forward,
                  static_argnames=("is_train", "en_hidden", "zh_voc"))
    logits, predic, rnn_enc = fwd(packed, inputs, gtruths, inputs_len,
                                  jnp.float32(1.0), k_ss,
                                  is_train=False, en_hidden=en_hidden, zh_voc=zh_voc)

    jax.block_until_ready((logits, predic, rnn_enc))
    predic_np = np.asarray(predic)   # torch returns predictions as a numpy array

    assert logits.shape == (T_zh, B, zh_voc)
    assert predic_np.shape == (B, T_zh)
    assert rnn_enc.shape == (B, T_en, 2 * en_hidden)
    assert np.all(np.isfinite(np.asarray(logits)))
    print("KERNEL_OK")
</pallas_src>

<mosaic_0001>
module attributes {stable_mosaic.version = 11 : i64} {
  func.func @_enc_kernel(%arg0: memref<8x2x128xf32, #tpu.memory_space<vmem>>, %arg1: memref<8x2x1xf32, #tpu.memory_space<vmem>>, %arg2: memref<128x1024xbf16, #tpu.memory_space<vmem>>, %arg3: memref<1x1024xf32, #tpu.memory_space<vmem>>, %arg4: memref<256x1024xbf16, #tpu.memory_space<vmem>>, %arg5: memref<8x2x128xf32, #tpu.memory_space<vmem>>, %arg6: memref<8x2x128xf32, #tpu.memory_space<vmem>>, %arg7: memref<8x2x1024xf32, #tpu.memory_space<vmem>>, %arg8: memref<2x128xf32, #tpu.memory_space<vmem>>, %arg9: memref<2x128xf32, #tpu.memory_space<vmem>>, %arg10: memref<2x128xf32, #tpu.memory_space<vmem>>, %arg11: memref<2x128xf32, #tpu.memory_space<vmem>>) attributes {dimension_semantics = [], scalar_prefetch = 0 : i64, scratch_operands = 5 : i64, tpu.core_type = #tpu.core_type<tc>} {
    %c0 = arith.constant 0 : index
    %c0_0 = arith.constant 0 : index
    %c0_1 = arith.constant 0 : index
    %0 = vector.load %arg0[%c0, %c0_0, %c0_1] : memref<8x2x128xf32, #tpu.memory_space<vmem>>, vector<8x2x128xf32>
    %1 = vector.shape_cast %0 : vector<8x2x128xf32> to vector<16x128xf32>
    %2 = arith.truncf %1 : vector<16x128xf32> to vector<16x128xbf16>
    %c0_2 = arith.constant 0 : index
    %c0_3 = arith.constant 0 : index
    %3 = vector.load %arg2[%c0_2, %c0_3] : memref<128x1024xbf16, #tpu.memory_space<vmem>>, vector<128x1024xbf16>
    %cst = arith.constant dense<0.000000e+00> : vector<16x1024xf32>
    %4 = tpu.matmul %2, %3, %cst {dimension_numbers = #tpu.dot_dimension_numbers<[1], [0], [0], [1], [0, 0, 1, 1], [], []>} : vector<16x128xbf16>, vector<128x1024xbf16>, vector<16x1024xf32> -> vector<16x1024xf32>
    %c0_4 = arith.constant 0 : index
    %c0_5 = arith.constant 0 : index
    %5 = vector.load %arg3[%c0_4, %c0_5] : memref<1x1024xf32, #tpu.memory_space<vmem>>, vector<1x1024xf32>
    %6 = vector.broadcast %5 : vector<1x1024xf32> to vector<16x1024xf32>
    %7 = arith.addf %4, %6 : vector<16x1024xf32>
    %8 = vector.shape_cast %7 : vector<16x1024xf32> to vector<8x2x1024xf32>
    %c0_6 = arith.constant 0 : index
    %c0_7 = arith.constant 0 : index
    %c0_8 = arith.constant 0 : index
    %9 = vector.load %arg7[%c0_6, %c0_7, %c0_8] : memref<8x2x1024xf32, #tpu.memory_space<vmem>>, vector<8x2x1024xf32>
    tpu.vector_store %arg7[%c0_6, %c0_7, %c0_8], %8 {strides = array<i32>} : memref<8x2x1024xf32, #tpu.memory_space<vmem>>, vector<8x2x1024xf32>,
    %cst_9 = arith.constant 0.000000e+00 : f32
    %10 = vector.broadcast %cst_9 : f32 to vector<2x128xf32>
    %c0_10 = arith.constant 0 : index
    %c0_11 = arith.constant 0 : index
    %11 = vector.load %arg8[%c0_10, %c0_11] : memref<2x128xf32, #tpu.memory_space<vmem>>, vector<2x128xf32>
    tpu.vector_store %arg8[%c0_10, %c0_11], %10 {strides = array<i32>} : memref<2x128xf32, #tpu.memory_space<vmem>>, vector<2x128xf32>,
    %cst_12 = arith.constant 0.000000e+00 : f32
    %12 = vector.broadcast %cst_12 : f32 to vector<2x128xf32>
    %c0_13 = arith.constant 0 : index
    %c0_14 = arith.constant 0 : index
    %13 = vector.load %arg9[%c0_13, %c0_14] : memref<2x128xf32, #tpu.memory_space<vmem>>, vector<2x128xf32>
    tpu.vector_store %arg9[%c0_13, %c0_14], %12 {strides = array<i32>} : memref<2x128xf32, #tpu.memory_space<vmem>>, vector<2x128xf32>,
    %cst_15 = arith.constant 0.000000e+00 : f32
    %14 = vector.broadcast %cst_15 : f32 to vector<2x128xf32>
    %c0_16 = arith.constant 0 : index
    %c0_17 = arith.constant 0 : index
    %15 = vector.load %arg10[%c0_16, %c0_17] : memref<2x128xf32, #tpu.memory_space<vmem>>, vector<2x128xf32>
    tpu.vector_store %arg10[%c0_16, %c0_17], %14 {strides = array<i32>} : memref<2x128xf32, #tpu.memory_space<vmem>>, vector<2x128xf32>,
    %cst_18 = arith.constant 0.000000e+00 : f32
    %16 = vector.broadcast %cst_18 : f32 to vector<2x128xf32>
    %c0_19 = arith.constant 0 : index
    %c0_20 = arith.constant 0 : index
    %17 = vector.load %arg11[%c0_19, %c0_20] : memref<2x128xf32, #tpu.memory_space<vmem>>, vector<2x128xf32>
    tpu.vector_store %arg11[%c0_19, %c0_20], %16 {strides = array<i32>} : memref<2x128xf32, #tpu.memory_space<vmem>>, vector<2x128xf32>,
    %c0_i32 = arith.constant 0 : i32
    %c8_i32 = arith.constant 8 : i32
    %18 = arith.addi %c0_i32, %c8_i32 : i32
    %c1_i32 = arith.constant 1 : i32
    scf.for %arg12 = %c0_i32 to %18 step %c1_i32  : i32 {
      %c7_i32 = arith.constant 7 : i32
      %19 = arith.subi %c7_i32, %arg12 : i32
      %c0_22 = arith.constant 0 : index
      %c0_23 = arith.constant 0 : index
      %20 = vector.load %arg8[%c0_22, %c0_23] : memref<2x128xf32, #tpu.memory_space<vmem>>, vector<2x128xf32>
      %c0_24 = arith.constant 0 : index
      %c0_25 = arith.constant 0 : index
      %21 = vector.load %arg10[%c0_24, %c0_25] : memref<2x128xf32, #tpu.memory_space<vmem>>, vector<2x128xf32>
      %22 = tpu.concatenate %20, %21 in 1 : vector<2x128xf32>, vector<2x128xf32> -> vector<2x256xf32>
      %23 = arith.truncf %22 : vector<2x256xf32> to vector<2x256xbf16>
      %c0_26 = arith.constant 0 : index
      %c0_27 = arith.constant 0 : index
      %24 = vector.load %arg4[%c0_26, %c0_27] : memref<256x1024xbf16, #tpu.memory_space<vmem>>, vector<256x1024xbf16>
      %cst_28 = arith.constant dense<0.000000e+00> : vector<2x1024xf32>
      %25 = tpu.matmul %23, %24, %cst_28 {dimension_numbers = #tpu.dot_dimension_numbers<[1], [0], [0], [1], [0, 0, 1, 1], [], []>} : vector<2x256xbf16>, vector<256x1024xbf16>, vector<2x1024xf32> -> vector<2x1024xf32>
      %26 = arith.index_cast %arg12 : i32 to index
      %c0_29 = arith.constant 0 : index
      %c0_30 = arith.constant 0 : index
      %27 = vector.load %arg7[%26, %c0_29, %c0_30] : memref<8x2x1024xf32, #tpu.memory_space<vmem>>, vector<1x2x1024xf32>
      %28 = vector.shape_cast %27 : vector<1x2x1024xf32> to vector<2x1024xf32>
      %29 = vector.extract_strided_slice %28 {offsets = [0, 0], sizes = [2, 512], strides = [1, 1]} : vector<2x1024xf32> to vector<2x512xf32>
      %30 = vector.extract_strided_slice %25 {offsets = [0, 0], sizes = [2, 512], strides = [1, 1]} : vector<2x1024xf32> to vector<2x512xf32>
      %31 = arith.addf %29, %30 : vector<2x512xf32>
      %32 = arith.index_cast %19 : i32 to index
      %c0_31 = arith.constant 0 : index
      %c0_32 = arith.constant 0 : index
      %33 = vector.load %arg7[%32, %c0_31, %c0_32] : memref<8x2x1024xf32, #tpu.memory_space<vmem>>, vector<1x2x1024xf32>
      %34 = vector.shape_cast %33 : vector<1x2x1024xf32> to vector<2x1024xf32>
      %35 = vector.extract_strided_slice %34 {offsets = [0, 512], sizes = [2, 512], strides = [1, 1]} : vector<2x1024xf32> to vector<2x512xf32>
      %36 = vector.extract_strided_slice %25 {offsets = [0, 512], sizes = [2, 512], strides = [1, 1]} : vector<2x1024xf32> to vector<2x512xf32>
      %37 = arith.addf %35, %36 : vector<2x512xf32>
      %38 = arith.index_cast %arg12 : i32 to index
      %c0_33 = arith.constant 0 : index
      %c0_34 = arith.constant 0 : index
      %39 = vector.load %arg1[%38, %c0_33, %c0_34] : memref<8x2x1xf32, #tpu.memory_space<vmem>>, vector<1x2x1xf32>
      %40 = vector.shape_cast %39 : vector<1x2x1xf32> to vector<2x1xf32>
      %41 = vector.extract_strided_slice %31 {offsets = [0, 0], sizes = [2, 128], strides = [1, 1]} : vector<2x512xf32> to vector<2x128xf32>
      %42 = arith.negf %41 : vector<2x128xf32>
      %43 = math.exp %42 : vector<2x128xf32>
      %cst_35 = arith.constant 1.000000e+00 : f32
      %44 = vector.broadcast %cst_35 : f32 to vector<2x128xf32>
      %45 = arith.addf %44, %43 : vector<2x128xf32>
      %46 = arith.divf %44, %45 : vector<2x128xf32>
      %47 = vector.extract_strided_slice %31 {offsets = [0, 128], sizes = [2, 128], strides = [1, 1]} : vector<2x512xf32> to vector<2x128xf32>
      %48 = arith.negf %47 : vector<2x128xf32>
      %49 = math.exp %48 : vector<2x128xf32>
      %cst_36 = arith.constant 1.000000e+00 : f32
      %50 = vector.broadcast %cst_36 : f32 to vector<2x128xf32>
      %51 = arith.addf %50, %49 : vector<2x128xf32>
      %52 = arith.divf %50, %51 : vector<2x128xf32>
      %53 = vector.extract_strided_slice %31 {offsets = [0, 256], sizes = [2, 128], strides = [1, 1]} : vector<2x512xf32> to vector<2x128xf32>
      %54 = math.tanh %53 : vector<2x128xf32>
      %55 = vector.extract_strided_slice %31 {offsets = [0, 384], sizes = [2, 128], strides = [1, 1]} : vector<2x512xf32> to vector<2x128xf32>
      %56 = arith.negf %55 : vector<2x128xf32>
      %57 = math.exp %56 : vector<2x128xf32>
      %cst_37 = arith.constant 1.000000e+00 : f32
      %58 = vector.broadcast %cst_37 : f32 to vector<2x128xf32>
      %59 = arith.addf %58, %57 : vector<2x128xf32>
      %60 = arith.divf %58, %59 : vector<2x128xf32>
      %c0_38 = arith.constant 0 : index
      %c0_39 = arith.constant 0 : index
      %61 = vector.load %arg9[%c0_38, %c0_39] : memref<2x128xf32, #tpu.memory_space<vmem>>, vector<2x128xf32>
      %62 = arith.mulf %52, %61 : vector<2x128xf32>
      %63 = arith.mulf %46, %54 : vector<2x128xf32>
      %64 = arith.addf %62, %63 : vector<2x128xf32>
      %65 = math.tanh %64 : vector<2x128xf32>
      %66 = arith.mulf %60, %65 : vector<2x128xf32>
      %67 = vector.broadcast %40 : vector<2x1xf32> to vector<2x128xf32>
      %68 = arith.mulf %67, %66 : vector<2x128xf32>
      %cst_40 = arith.constant 1.000000e+00 : f32
      %69 = vector.broadcast %cst_40 : f32 to vector<2x1xf32>
      %70 = arith.subf %69, %40 : vector<2x1xf32>
      %c0_41 = arith.constant 0 : index
      %c0_42 = arith.constant 0 : index
      %71 = vector.load %arg8[%c0_41, %c0_42] : memref<2x128xf32, #tpu.memory_space<vmem>>, vector<2x128xf32>
      %72 = vector.broadcast %70 : vector<2x1xf32> to vector<2x128xf32>
      %73 = arith.mulf %72, %71 : vector<2x128xf32>
      %74 = arith.addf %68, %73 : vector<2x128xf32>
      %c0_43 = arith.constant 0 : index
      %c0_44 = arith.constant 0 : index
      %75 = vector.load %arg8[%c0_43, %c0_44] : memref<2x128xf32, #tpu.memory_space<vmem>>, vector<2x128xf32>
      tpu.vector_store %arg8[%c0_43, %c0_44], %74 {strides = array<i32>} : memref<2x128xf32, #tpu.memory_space<vmem>>, vector<2x128xf32>,
      %76 = vector.broadcast %40 : vector<2x1xf32> to vector<2x128xf32>
      %77 = arith.mulf %76, %64 : vector<2x128xf32>
      %cst_45 = arith.constant 1.000000e+00 : f32
      %78 = vector.broadcast %cst_45 : f32 to vector<2x1xf32>
      %79 = arith.subf %78, %40 : vector<2x1xf32>
      %c0_46 = arith.constant 0 : index
      %c0_47 = arith.constant 0 : index
      %80 = vector.load %arg9[%c0_46, %c0_47] : memref<2x128xf32, #tpu.memory_space<vmem>>, vector<2x128xf32>
      %81 = vector.broadcast %79 : vector<2x1xf32> to vector<2x128xf32>
      %82 = arith.mulf %81, %80 : vector<2x128xf32>
      %83 = arith.addf %77, %82 : vector<2x128xf32>
      %c0_48 = arith.constant 0 : index
      %c0_49 = arith.constant 0 : index
      %84 = vector.load %arg9[%c0_48, %c0_49] : memref<2x128xf32, #tpu.memory_space<vmem>>, vector<2x128xf32>
      tpu.vector_store %arg9[%c0_48, %c0_49], %83 {strides = array<i32>} : memref<2x128xf32, #tpu.memory_space<vmem>>, vector<2x128xf32>,
      %85 = vector.broadcast %40 : vector<2x1xf32> to vector<2x128xf32>
      %86 = arith.mulf %85, %66 : vector<2x128xf32>
      %87 = arith.index_cast %arg12 : i32 to index
      %c0_50 = arith.constant 0 : index
      %c0_51 = arith.constant 0 : index
      %88 = vector.load %arg5[%87, %c0_50, %c0_51] : memref<8x2x128xf32, #tpu.memory_space<vmem>>, vector<1x2x128xf32>
      %89 = vector.shape_cast %88 : vector<1x2x128xf32> to vector<2x128xf32>
      %90 = vector.shape_cast %86 : vector<2x128xf32> to vector<1x2x128xf32>
      tpu.vector_store %arg5[%87, %c0_50, %c0_51], %90 {strides = array<i32>} : memref<8x2x128xf32, #tpu.memory_space<vmem>>, vector<1x2x128xf32>,
      %91 = arith.index_cast %19 : i32 to index
      %c0_52 = arith.constant 0 : index
      %c0_53 = arith.constant 0 : index
      %92 = vector.load %arg1[%91, %c0_52, %c0_53] : memref<8x2x1xf32, #tpu.memory_space<vmem>>, vector<1x2x1xf32>
      %93 = vector.shape_cast %92 : vector<1x2x1xf32> to vector<2x1xf32>
      %94 = vector.extract_strided_slice %37 {offsets = [0, 0], sizes = [2, 128], strides = [1, 1]} : vector<2x512xf32> to vector<2x128xf32>
      %95 = arith.negf %94 : vector<2x128xf32>
      %96 = math.exp %95 : vector<2x128xf32>
      %cst_54 = arith.constant 1.000000e+00 : f32
      %97 = vector.broadcast %cst_54 : f32 to vector<2x128xf32>
      %98 = arith.addf %97, %96 : vector<2x128xf32>
      %99 = arith.divf %97, %98 : vector<2x128xf32>
      %100 = vector.extract_strided_slice %37 {offsets = [0, 128], sizes = [2, 128], strides = [1, 1]} : vector<2x512xf32> to vector<2x128xf32>
      %101 = arith.negf %100 : vector<2x128xf32>
      %102 = math.exp %101 : vector<2x128xf32>
      %cst_55 = arith.constant 1.000000e+00 : f32
      %103 = vector.broadcast %cst_55 : f32 to vector<2x128xf32>
      %104 = arith.addf %103, %102 : vector<2x128xf32>
      %105 = arith.divf %103, %104 : vector<2x128xf32>
      %106 = vector.extract_strided_slice %37 {offsets = [0, 256], sizes = [2, 128], strides = [1, 1]} : vector<2x512xf32> to vector<2x128xf32>
      %107 = math.tanh %106 : vector<2x128xf32>
      %108 = vector.extract_strided_slice %37 {offsets = [0, 384], sizes = [2, 128], strides = [1, 1]} : vector<2x512xf32> to vector<2x128xf32>
      %109 = arith.negf %108 : vector<2x128xf32>
      %110 = math.exp %109 : vector<2x128xf32>
      %cst_56 = arith.constant 1.000000e+00 : f32
      %111 = vector.broadcast %cst_56 : f32 to vector<2x128xf32>
      %112 = arith.addf %111, %110 : vector<2x128xf32>
      %113 = arith.divf %111, %112 : vector<2x128xf32>
      %c0_57 = arith.constant 0 : index
      %c0_58 = arith.constant 0 : index
      %114 = vector.load %arg11[%c0_57, %c0_58] : memref<2x128xf32, #tpu.memory_space<vmem>>, vector<2x128xf32>
      %115 = arith.mulf %105, %114 : vector<2x128xf32>
      %116 = arith.mulf %99, %107 : vector<2x128xf32>
      %117 = arith.addf %115, %116 : vector<2x128xf32>
      %118 = math.tanh %117 : vector<2x128xf32>
      %119 = arith.mulf %113, %118 : vector<2x128xf32>
      %120 = vector.broadcast %93 : vector<2x1xf32> to vector<2x128xf32>
      %121 = arith.mulf %120, %119 : vector<2x128xf32>
      %cst_59 = arith.constant 1.000000e+00 : f32
      %122 = vector.broadcast %cst_59 : f32 to vector<2x1xf32>
      %123 = arith.subf %122, %93 : vector<2x1xf32>
      %c0_60 = arith.constant 0 : index
      %c0_61 = arith.constant 0 : index
      %124 = vector.load %arg10[%c0_60, %c0_61] : memref<2x128xf32, #tpu.memory_space<vmem>>, vector<2x128xf32>
      %125 = vector.broadcast %123 : vector<2x1xf32> to vector<2x128xf32>
      %126 = arith.mulf %125, %124 : vector<2x128xf32>
      %127 = arith.addf %121, %126 : vector<2x128xf32>
      %c0_62 = arith.constant 0 : index
      %c0_63 = arith.constant 0 : index
      %128 = vector.load %arg10[%c0_62, %c0_63] : memref<2x128xf32, #tpu.memory_space<vmem>>, vector<2x128xf32>
      tpu.vector_store %arg10[%c0_62, %c0_63], %127 {strides = array<i32>} : memref<2x128xf32, #tpu.memory_space<vmem>>, vector<2x128xf32>,
      %129 = vector.broadcast %93 : vector<2x1xf32> to vector<2x128xf32>
      %130 = arith.mulf %129, %117 : vector<2x128xf32>
      %cst_64 = arith.constant 1.000000e+00 : f32
      %131 = vector.broadcast %cst_64 : f32 to vector<2x1xf32>
      %132 = arith.subf %131, %93 : vector<2x1xf32>
      %c0_65 = arith.constant 0 : index
      %c0_66 = arith.constant 0 : index
      %133 = vector.load %arg11[%c0_65, %c0_66] : memref<2x128xf32, #tpu.memory_space<vmem>>, vector<2x128xf32>
      %134 = vector.broadcast %132 : vector<2x1xf32> to vector<2x128xf32>
      %135 = arith.mulf %134, %133 : vector<2x128xf32>
      %136 = arith.addf %130, %135 : vector<2x128xf32>
      %c0_67 = arith.constant 0 : index
      %c0_68 = arith.constant 0 : index
      %137 = vector.load %arg11[%c0_67, %c0_68] : memref<2x128xf32, #tpu.memory_space<vmem>>, vector<2x128xf32>
      tpu.vector_store %arg11[%c0_67, %c0_68], %136 {strides = array<i32>} : memref<2x128xf32, #tpu.memory_space<vmem>>, vector<2x128xf32>,
      %138 = vector.broadcast %93 : vector<2x1xf32> to vector<2x128xf32>
      %139 = arith.mulf %138, %119 : vector<2x128xf32>
      %140 = arith.index_cast %19 : i32 to index
      %c0_69 = arith.constant 0 : index
      %c0_70 = arith.constant 0 : index
      %141 = vector.load %arg6[%140, %c0_69, %c0_70] : memref<8x2x128xf32, #tpu.memory_space<vmem>>, vector<1x2x128xf32>
      %142 = vector.shape_cast %141 : vector<1x2x128xf32> to vector<2x128xf32>
      %143 = vector.shape_cast %139 : vector<2x128xf32> to vector<1x2x128xf32>
      tpu.vector_store %arg6[%140, %c0_69, %c0_70], %143 {strides = array<i32>} : memref<8x2x128xf32, #tpu.memory_space<vmem>>, vector<1x2x128xf32>,
    }
    %c8_i32_21 = arith.constant 8 : i32
    return
  }
}

module attributes {stable_mosaic.version = 11 : i64} {
  func.func @_dec_kernel(%arg0: memref<6xi32, #tpu.memory_space<smem>>, %arg1: memref<8x2x128xf32, #tpu.memory_space<vmem>>, %arg2: memref<8x2x128xf32, #tpu.memory_space<vmem>>, %arg3: memref<6x2x128xf32, #tpu.memory_space<vmem>>, %arg4: memref<128x128xbf16, #tpu.memory_space<vmem>>, %arg5: memref<128x128xbf16, #tpu.memory_space<vmem>>, %arg6: memref<1x128xf32, #tpu.memory_space<vmem>>, %arg7: memref<128x640xbf16, #tpu.memory_space<vmem>>, %arg8: memref<1x128xf32, #tpu.memory_space<vmem>>, %arg9: memref<1x1x128xf32, #tpu.memory_space<vmem>>, %arg10: memref<1xf32, #tpu.memory_space<smem>>, %arg11: memref<384x512xbf16, #tpu.memory_space<vmem>>, %arg12: memref<1x512xf32, #tpu.memory_space<vmem>>, %arg13: memref<128x128xbf16, #tpu.memory_space<vmem>>, %arg14: memref<1x128xf32, #tpu.memory_space<vmem>>, %arg15: memref<128x128xbf16, #tpu.memory_space<vmem>>, %arg16: memref<6x2x128xf32, #tpu.memory_space<vmem>>, %arg17: memref<6x2x1xi32, #tpu.memory_space<vmem>>, %arg18: memref<2x128xf32, #tpu.memory_space<vmem>>, %arg19: memref<2x128xf32, #tpu.memory_space<vmem>>, %arg20: memref<2x128xf32, #tpu.memory_space<vmem>>, %arg21: memref<8x2x128xf32, #tpu.memory_space<vmem>>) attributes {dimension_semantics = [], scalar_prefetch = 0 : i64, scratch_operands = 4 : i64, tpu.core_type = #tpu.core_type<tc>} {
    %cst = arith.constant 0.000000e+00 : f32
    %0 = vector.broadcast %cst : f32 to vector<2x128xf32>
    %c0 = arith.constant 0 : index
    %c0_0 = arith.constant 0 : index
    %1 = vector.load %arg18[%c0, %c0_0] : memref<2x128xf32, #tpu.memory_space<vmem>>, vector<2x128xf32>
    tpu.vector_store %arg18[%c0, %c0_0], %0 {strides = array<i32>} : memref<2x128xf32, #tpu.memory_space<vmem>>, vector<2x128xf32>,
    %cst_1 = arith.constant 0.000000e+00 : f32
    %2 = vector.broadcast %cst_1 : f32 to vector<2x128xf32>
    %c0_2 = arith.constant 0 : index
    %c0_3 = arith.constant 0 : index
    %3 = vector.load %arg19[%c0_2, %c0_3] : memref<2x128xf32, #tpu.memory_space<vmem>>, vector<2x128xf32>
    tpu.vector_store %arg19[%c0_2, %c0_3], %2 {strides = array<i32>} : memref<2x128xf32, #tpu.memory_space<vmem>>, vector<2x128xf32>,
    %cst_4 = arith.constant 0.000000e+00 : f32
    %4 = vector.broadcast %cst_4 : f32 to vector<2x128xf32>
    %c0_5 = arith.constant 0 : index
    %c0_6 = arith.constant 0 : index
    %5 = vector.load %arg20[%c0_5, %c0_6] : memref<2x128xf32, #tpu.memory_space<vmem>>, vector<2x128xf32>
    tpu.vector_store %arg20[%c0_5, %c0_6], %4 {strides = array<i32>} : memref<2x128xf32, #tpu.memory_space<vmem>>, vector<2x128xf32>,
    %c0_7 = arith.constant 0 : index
    %c0_8 = arith.constant 0 : index
    %c0_9 = arith.constant 0 : index
    %6 = vector.load %arg1[%c0_7, %c0_8, %c0_9] : memref<8x2x128xf32, #tpu.memory_space<vmem>>, vector<8x2x128xf32>
    %7 = vector.shape_cast %6 : vector<8x2x128xf32> to vector<16x128xf32>
    %8 = arith.truncf %7 : vector<16x128xf32> to vector<16x128xbf16>
    %c0_10 = arith.constant 0 : index
    %c0_11 = arith.constant 0 : index
    %9 = vector.load %arg4[%c0_10, %c0_11] : memref<128x128xbf16, #tpu.memory_space<vmem>>, vector<128x128xbf16>
    %cst_12 = arith.constant dense<0.000000e+00> : vector<16x128xf32>
    %10 = tpu.matmul %8, %9, %cst_12 {dimension_numbers = #tpu.dot_dimension_numbers<[1], [0], [0], [1], [0, 0, 1, 1], [], []>} : vector<16x128xbf16>, vector<128x128xbf16>, vector<16x128xf32> -> vector<16x128xf32>
    %c0_13 = arith.constant 0 : index
    %c0_14 = arith.constant 0 : index
    %c0_15 = arith.constant 0 : index
    %11 = vector.load %arg2[%c0_13, %c0_14, %c0_15] : memref<8x2x128xf32, #tpu.memory_space<vmem>>, vector<8x2x128xf32>
    %12 = vector.shape_cast %11 : vector<8x2x128xf32> to vector<16x128xf32>
    %13 = arith.truncf %12 : vector<16x128xf32> to vector<16x128xbf16>
    %c0_16 = arith.constant 0 : index
    %c0_17 = arith.constant 0 : index
    %14 = vector.load %arg5[%c0_16, %c0_17] : memref<128x128xbf16, #tpu.memory_space<vmem>>, vector<128x128xbf16>
    %cst_18 = arith.constant dense<0.000000e+00> : vector<16x128xf32>
    %15 = tpu.matmul %13, %14, %cst_18 {dimension_numbers = #tpu.dot_dimension_numbers<[1], [0], [0], [1], [0, 0, 1, 1], [], []>} : vector<16x128xbf16>, vector<128x128xbf16>, vector<16x128xf32> -> vector<16x128xf32>
    %16 = arith.addf %10, %15 : vector<16x128xf32>
    %c0_19 = arith.constant 0 : index
    %c0_20 = arith.constant 0 : index
    %17 = vector.load %arg6[%c0_19, %c0_20] : memref<1x128xf32, #tpu.memory_space<vmem>>, vector<1x128xf32>
    %18 = vector.broadcast %17 : vector<1x128xf32> to vector<16x128xf32>
    %19 = arith.addf %16, %18 : vector<16x128xf32>
    %20 = vector.shape_cast %19 : vector<16x128xf32> to vector<8x2x128xf32>
    %c0_21 = arith.constant 0 : index
    %c0_22 = arith.constant 0 : index
    %c0_23 = arith.constant 0 : index
    %21 = vector.load %arg21[%c0_21, %c0_22, %c0_23] : memref<8x2x128xf32, #tpu.memory_space<vmem>>, vector<8x2x128xf32>
    tpu.vector_store %arg21[%c0_21, %c0_22, %c0_23], %20 {strides = array<i32>} : memref<8x2x128xf32, #tpu.memory_space<vmem>>, vector<8x2x128xf32>,
    %c0_24 = arith.constant 0 : index
    %22 = memref.load %arg10[%c0_24] : memref<1xf32, #tpu.memory_space<smem>>
    %c0_i32 = arith.constant 0 : i32
    %c6_i32 = arith.constant 6 : i32
    %23 = arith.addi %c0_i32, %c6_i32 : i32
    %c1_i32 = arith.constant 1 : i32
    scf.for %arg22 = %c0_i32 to %23 step %c1_i32  : i32 {
      %c0_26 = arith.constant 0 : index
      %c0_27 = arith.constant 0 : index
      %24 = vector.load %arg18[%c0_26, %c0_27] : memref<2x128xf32, #tpu.memory_space<vmem>>, vector<2x128xf32>
      %25 = arith.truncf %24 : vector<2x128xf32> to vector<2x128xbf16>
      %c0_28 = arith.constant 0 : index
      %c0_29 = arith.constant 0 : index
      %26 = vector.load %arg7[%c0_28, %c0_29] : memref<128x640xbf16, #tpu.memory_space<vmem>>, vector<128x640xbf16>
      %cst_30 = arith.constant dense<0.000000e+00> : vector<2x640xf32>
      %27 = tpu.matmul %25, %26, %cst_30 {dimension_numbers = #tpu.dot_dimension_numbers<[1], [0], [0], [1], [0, 0, 1, 1], [], []>} : vector<2x128xbf16>, vector<128x640xbf16>, vector<2x640xf32> -> vector<2x640xf32>
      %28 = vector.extract_strided_slice %27 {offsets = [0, 0], sizes = [2, 128], strides = [1, 1]} : vector<2x640xf32> to vector<2x128xf32>
      %c0_31 = arith.constant 0 : index
      %c0_32 = arith.constant 0 : index
      %29 = vector.load %arg8[%c0_31, %c0_32] : memref<1x128xf32, #tpu.memory_space<vmem>>, vector<1x128xf32>
      %30 = vector.broadcast %29 : vector<1x128xf32> to vector<2x128xf32>
      %31 = arith.addf %28, %30 : vector<2x128xf32>
      %c0_33 = arith.constant 0 : index
      %c0_34 = arith.constant 0 : index
      %c0_35 = arith.constant 0 : index
      %32 = vector.load %arg21[%c0_33, %c0_34, %c0_35] : memref<8x2x128xf32, #tpu.memory_space<vmem>>, vector<8x2x128xf32>
      %33 = vector.shape_cast %31 : vector<2x128xf32> to vector<1x2x128xf32>
      %34 = vector.broadcast %33 : vector<1x2x128xf32> to vector<8x2x128xf32>
      %35 = arith.addf %32, %34 : vector<8x2x128xf32>
      %36 = math.tanh %35 : vector<8x2x128xf32>
      %c0_36 = arith.constant 0 : index
      %c0_37 = arith.constant 0 : index
      %c0_38 = arith.constant 0 : index
      %37 = vector.load %arg9[%c0_36, %c0_37, %c0_38] : memref<1x1x128xf32, #tpu.memory_space<vmem>>, vector<1x1x128xf32>
      %38 = vector.broadcast %37 : vector<1x1x128xf32> to vector<8x2x128xf32>
      %39 = arith.mulf %36, %38 : vector<8x2x128xf32>
      %cst_39 = arith.constant dense<0.000000e+00> : vector<8x2xf32>
      %40 = vector.multi_reduction <add>, %39, %cst_39 [2] : vector<8x2x128xf32> to vector<8x2xf32>
      %41 = vector.shape_cast %40 : vector<8x2xf32> to vector<8x2x1xf32>
      %42 = vector.broadcast %22 : f32 to vector<8x2x1xf32>
      %43 = arith.addf %41, %42 : vector<8x2x1xf32>
      %cst_40 = arith.constant dense<0xFF800000> : vector<2x1xf32>
      %44 = vector.multi_reduction <maximumf>, %43, %cst_40 [0] : vector<8x2x1xf32> to vector<2x1xf32>
      %45 = vector.shape_cast %44 : vector<2x1xf32> to vector<1x2x1xf32>
      %46 = vector.broadcast %45 : vector<1x2x1xf32> to vector<8x2x1xf32>
      %47 = arith.subf %43, %46 : vector<8x2x1xf32>
      %48 = math.exp %47 : vector<8x2x1xf32>
      %cst_41 = arith.constant dense<0.000000e+00> : vector<2x1xf32>
      %49 = vector.multi_reduction <add>, %48, %cst_41 [0] : vector<8x2x1xf32> to vector<2x1xf32>
      %50 = vector.shape_cast %49 : vector<2x1xf32> to vector<1x2x1xf32>
      %51 = vector.broadcast %50 : vector<1x2x1xf32> to vector<8x2x1xf32>
      %52 = arith.divf %48, %51 : vector<8x2x1xf32>
      %c0_42 = arith.constant 0 : index
      %c0_43 = arith.constant 0 : index
      %c0_44 = arith.constant 0 : index
      %53 = vector.load %arg1[%c0_42, %c0_43, %c0_44] : memref<8x2x128xf32, #tpu.memory_space<vmem>>, vector<8x2x128xf32>
      %54 = vector.broadcast %52 : vector<8x2x1xf32> to vector<8x2x128xf32>
      %55 = arith.mulf %54, %53 : vector<8x2x128xf32>
      %cst_45 = arith.constant dense<0.000000e+00> : vector<2x128xf32>
      %56 = vector.multi_reduction <add>, %55, %cst_45 [0] : vector<8x2x128xf32> to vector<2x128xf32>
      %c0_46 = arith.constant 0 : index
      %c0_47 = arith.constant 0 : index
      %c0_48 = arith.constant 0 : index
      %57 = vector.load %arg2[%c0_46, %c0_47, %c0_48] : memref<8x2x128xf32, #tpu.memory_space<vmem>>, vector<8x2x128xf32>
      %58 = vector.broadcast %52 : vector<8x2x1xf32> to vector<8x2x128xf32>
      %59 = arith.mulf %58, %57 : vector<8x2x128xf32>
      %cst_49 = arith.constant dense<0.000000e+00> : vector<2x128xf32>
      %60 = vector.multi_reduction <add>, %59, %cst_49 [0] : vector<8x2x128xf32> to vector<2x128xf32>
      %61 = arith.index_cast %arg22 : i32 to index
      %62 = memref.load %arg0[%61] : memref<6xi32, #tpu.memory_space<smem>>
      %c0_i32_50 = arith.constant 0 : i32
      %63 = arith.cmpi ne, %62, %c0_i32_50 : i32
      %64 = arith.extui %63 : i1 to i32
      %65 = arith.sitofp %64 : i32 to f32
      %66 = arith.index_cast %arg22 : i32 to index
      %c0_51 = arith.constant 0 : index
      %c0_52 = arith.constant 0 : index
      %67 = vector.load %arg3[%66, %c0_51, %c0_52] : memref<6x2x128xf32, #tpu.memory_space<vmem>>, vector<1x2x128xf32>
      %68 = vector.shape_cast %67 : vector<1x2x128xf32> to vector<2x128xf32>
      %69 = vector.broadcast %65 : f32 to vector<2x128xf32>
      %70 = arith.mulf %69, %68 : vector<2x128xf32>
      %cst_53 = arith.constant 1.000000e+00 : f32
      %71 = arith.subf %cst_53, %65 : f32
      %c0_54 = arith.constant 0 : index
      %c0_55 = arith.constant 0 : index
      %72 = vector.load %arg20[%c0_54, %c0_55] : memref<2x128xf32, #tpu.memory_space<vmem>>, vector<2x128xf32>
      %73 = vector.broadcast %71 : f32 to vector<2x128xf32>
      %74 = arith.mulf %73, %72 : vector<2x128xf32>
      %75 = arith.addf %70, %74 : vector<2x128xf32>
      %76 = tpu.concatenate %56, %60, %75 in 1 : vector<2x128xf32>, vector<2x128xf32>, vector<2x128xf32> -> vector<2x384xf32>
      %77 = arith.truncf %76 : vector<2x384xf32> to vector<2x384xbf16>
      %c0_56 = arith.constant 0 : index
      %c0_57 = arith.constant 0 : index
      %78 = vector.load %arg11[%c0_56, %c0_57] : memref<384x512xbf16, #tpu.memory_space<vmem>>, vector<384x512xbf16>
      %cst_58 = arith.constant dense<0.000000e+00> : vector<2x512xf32>
      %79 = tpu.matmul %77, %78, %cst_58 {dimension_numbers = #tpu.dot_dimension_numbers<[1], [0], [0], [1], [0, 0, 1, 1], [], []>} : vector<2x384xbf16>, vector<384x512xbf16>, vector<2x512xf32> -> vector<2x512xf32>
      %80 = vector.extract_strided_slice %27 {offsets = [0, 128], sizes = [2, 512], strides = [1, 1]} : vector<2x640xf32> to vector<2x512xf32>
      %81 = arith.addf %79, %80 : vector<2x512xf32>
      %c0_59 = arith.constant 0 : index
      %c0_60 = arith.constant 0 : index
      %82 = vector.load %arg12[%c0_59, %c0_60] : memref<1x512xf32, #tpu.memory_space<vmem>>, vector<1x512xf32>
      %83 = vector.broadcast %82 : vector<1x512xf32> to vector<2x512xf32>
      %84 = arith.addf %81, %83 : vector<2x512xf32>
      %85 = vector.extract_strided_slice %84 {offsets = [0, 0], sizes = [2, 128], strides = [1, 1]} : vector<2x512xf32> to vector<2x128xf32>
      %86 = arith.negf %85 : vector<2x128xf32>
      %87 = math.exp %86 : vector<2x128xf32>
      %cst_61 = arith.constant 1.000000e+00 : f32
      %88 = vector.broadcast %cst_61 : f32 to vector<2x128xf32>
      %89 = arith.addf %88, %87 : vector<2x128xf32>
      %90 = arith.divf %88, %89 : vector<2x128xf32>
      %91 = vector.extract_strided_slice %84 {offsets = [0, 128], sizes = [2, 128], strides = [1, 1]} : vector<2x512xf32> to vector<2x128xf32>
      %92 = arith.negf %91 : vector<2x128xf32>
      %93 = math.exp %92 : vector<2x128xf32>
      %cst_62 = arith.constant 1.000000e+00 : f32
      %94 = vector.broadcast %cst_62 : f32 to vector<2x128xf32>
      %95 = arith.addf %94, %93 : vector<2x128xf32>
      %96 = arith.divf %94, %95 : vector<2x128xf32>
      %97 = vector.extract_strided_slice %84 {offsets = [0, 256], sizes = [2, 128], strides = [1, 1]} : vector<2x512xf32> to vector<2x128xf32>
      %98 = math.tanh %97 : vector<2x128xf32>
      %99 = vector.extract_strided_slice %84 {offsets = [0, 384], sizes = [2, 128], strides = [1, 1]} : vector<2x512xf32> to vector<2x128xf32>
      %100 = arith.negf %99 : vector<2x128xf32>
      %101 = math.exp %100 : vector<2x128xf32>
      %cst_63 = arith.constant 1.000000e+00 : f32
      %102 = vector.broadcast %cst_63 : f32 to vector<2x128xf32>
      %103 = arith.addf %102, %101 : vector<2x128xf32>
      %104 = arith.divf %102, %103 : vector<2x128xf32>
      %c0_64 = arith.constant 0 : index
      %c0_65 = arith.constant 0 : index
      %105 = vector.load %arg19[%c0_64, %c0_65] : memref<2x128xf32, #tpu.memory_space<vmem>>, vector<2x128xf32>
      %106 = arith.mulf %96, %105 : vector<2x128xf32>
      %107 = arith.mulf %90, %98 : vector<2x128xf32>
      %108 = arith.addf %106, %107 : vector<2x128xf32>
      %109 = math.tanh %108 : vector<2x128xf32>
      %110 = arith.mulf %104, %109 : vector<2x128xf32>
      %c0_66 = arith.constant 0 : index
      %c0_67 = arith.constant 0 : index
      %111 = vector.load %arg18[%c0_66, %c0_67] : memref<2x128xf32, #tpu.memory_space<vmem>>, vector<2x128xf32>
      tpu.vector_store %arg18[%c0_66, %c0_67], %110 {strides = array<i32>} : memref<2x128xf32, #tpu.memory_space<vmem>>, vector<2x128xf32>,
      %c0_68 = arith.constant 0 : index
      %c0_69 = arith.constant 0 : index
      %112 = vector.load %arg19[%c0_68, %c0_69] : memref<2x128xf32, #tpu.memory_space<vmem>>, vector<2x128xf32>
      tpu.vector_store %arg19[%c0_68, %c0_69], %108 {strides = array<i32>} : memref<2x128xf32, #tpu.memory_space<vmem>>, vector<2x128xf32>,
      %113 = arith.truncf %110 : vector<2x128xf32> to vector<2x128xbf16>
      %c0_70 = arith.constant 0 : index
      %c0_71 = arith.constant 0 : index
      %114 = vector.load %arg13[%c0_70, %c0_71] : memref<128x128xbf16, #tpu.memory_space<vmem>>, vector<128x128xbf16>
      %cst_72 = arith.constant dense<0.000000e+00> : vector<2x128xf32>
      %115 = tpu.matmul %113, %114, %cst_72 {dimension_numbers = #tpu.dot_dimension_numbers<[1], [0], [0], [1], [0, 0, 1, 1], [], []>} : vector<2x128xbf16>, vector<128x128xbf16>, vector<2x128xf32> -> vector<2x128xf32>
      %c0_73 = arith.constant 0 : index
      %c0_74 = arith.constant 0 : index
      %116 = vector.load %arg14[%c0_73, %c0_74] : memref<1x128xf32, #tpu.memory_space<vmem>>, vector<1x128xf32>
      %117 = vector.broadcast %116 : vector<1x128xf32> to vector<2x128xf32>
      %118 = arith.addf %115, %117 : vector<2x128xf32>
      %119 = arith.index_cast %arg22 : i32 to index
      %c0_75 = arith.constant 0 : index
      %c0_76 = arith.constant 0 : index
      %120 = vector.load %arg16[%119, %c0_75, %c0_76] : memref<6x2x128xf32, #tpu.memory_space<vmem>>, vector<1x2x128xf32>
      %121 = vector.shape_cast %120 : vector<1x2x128xf32> to vector<2x128xf32>
      %122 = vector.shape_cast %118 : vector<2x128xf32> to vector<1x2x128xf32>
      tpu.vector_store %arg16[%119, %c0_75, %c0_76], %122 {strides = array<i32>} : memref<6x2x128xf32, #tpu.memory_space<vmem>>, vector<1x2x128xf32>,
      %123 = tpu.iota {dimensions = array<i32: 1>} : vector<2x128xi32>
      %cst_77 = arith.constant dense<0xFF800000> : vector<2xf32>
      %124 = vector.multi_reduction <maximumf>, %118, %cst_77 [1] : vector<2x128xf32> to vector<2xf32>
      %125 = vector.shape_cast %124 : vector<2xf32> to vector<2x1xf32>
      %126 = vector.broadcast %125 : vector<2x1xf32> to vector<2x128xf32>
      %127 = arith.cmpf oge, %118, %126 : vector<2x128xf32>
      %c128_i32 = arith.constant 128 : i32
      %128 = vector.broadcast %c128_i32 : i32 to vector<2x128xi32>
      %129 = arith.select %127, %123, %128 : vector<2x128xi1>, vector<2x128xi32>
      %cst_78 = arith.constant dense<2147483647> : vector<2xi32>
      %130 = vector.multi_reduction <minsi>, %129, %cst_78 [1] : vector<2x128xi32> to vector<2xi32>
      %131 = vector.shape_cast %130 : vector<2xi32> to vector<2x1xi32>
      %132 = arith.index_cast %arg22 : i32 to index
      %c0_79 = arith.constant 0 : index
      %c0_80 = arith.constant 0 : index
      %133 = vector.load %arg17[%132, %c0_79, %c0_80] : memref<6x2x1xi32, #tpu.memory_space<vmem>>, vector<1x2x1xi32>
      %134 = vector.shape_cast %133 : vector<1x2x1xi32> to vector<2x1xi32>
      %135 = vector.shape_cast %131 : vector<2x1xi32> to vector<1x2x1xi32>
      tpu.vector_store %arg17[%132, %c0_79, %c0_80], %135 {strides = array<i32>} : memref<6x2x1xi32, #tpu.memory_space<vmem>>, vector<1x2x1xi32>,
      %136 = vector.broadcast %131 : vector<2x1xi32> to vector<2x128xi32>
      %137 = arith.cmpi eq, %123, %136 : vector<2x128xi32>
      %138 = arith.extui %137 : vector<2x128xi1> to vector<2x128xi32>
      %139 = arith.sitofp %138 : vector<2x128xi32> to vector<2x128xf32>
      %140 = arith.truncf %139 : vector<2x128xf32> to vector<2x128xbf16>
      %c0_81 = arith.constant 0 : index
      %c0_82 = arith.constant 0 : index
      %141 = vector.load %arg15[%c0_81, %c0_82] : memref<128x128xbf16, #tpu.memory_space<vmem>>, vector<128x128xbf16>
      %cst_83 = arith.constant dense<0.000000e+00> : vector<2x128xf32>
      %142 = tpu.matmul %140, %141, %cst_83 {dimension_numbers = #tpu.dot_dimension_numbers<[1], [0], [0], [1], [0, 0, 1, 1], [], []>} : vector<2x128xbf16>, vector<128x128xbf16>, vector<2x128xf32> -> vector<2x128xf32>
      %c0_84 = arith.constant 0 : index
      %c0_85 = arith.constant 0 : index
      %143 = vector.load %arg20[%c0_84, %c0_85] : memref<2x128xf32, #tpu.memory_space<vmem>>, vector<2x128xf32>
      tpu.vector_store %arg20[%c0_84, %c0_85], %142 {strides = array<i32>} : memref<2x128xf32, #tpu.memory_space<vmem>>, vector<2x128xf32>,
    }
    %c6_i32_25 = arith.constant 6 : i32
    return
  }
}

</mosaic_0001>

<llo_original>
// kernel: seq2seq_forward.3
$region0: #{seq2seq_forward.3}
  #allocation0 [shape = 'u32[]', space=smem, size = 0x4, offset = 0x4, fixed_abs, tag = 'smem constant byte address 0x4 - core index']
  #allocation1 [shape = 'u32[144,128]{1,0:T(1,128)}', space=vmem, size = 0x12000, scoped, tag = 'internal scratch']
  #allocation2 [shape = 'f32[2,128]{1,0:T(2,128)}', space=vmem, size = 0x400, scoped, tag = 'scratch operand']
  #allocation3 [shape = 'f32[2,128]{1,0:T(2,128)}', space=vmem, size = 0x400, scoped, tag = 'scratch operand']
  #allocation4 [shape = 'f32[2,128]{1,0:T(2,128)}', space=vmem, size = 0x400, scoped, tag = 'scratch operand']
  #allocation5 [shape = 'f32[8,2,128]{2,1,0:T(2,128)}', space=vmem, size = 0x2000, scoped, tag = 'scratch operand']
  #allocation6 [shape = 'f32[1]{0:T(128)S(6)}', space=smem, size = 0x200, scoped, tag = 'scoped memory for seq2seq_forward.3']
  %s0 = inlined_call_operand.vmem [shape: s32[6], index: 0, kind: input, shape index: {}]
  %s1 = inlined_call_operand.vmem [shape: f32[8,2,128], index: 1, kind: input, shape index: {}]
  %s2 = inlined_call_operand.vmem [shape: f32[8,2,128], index: 2, kind: input, shape index: {}]
  %s3 = inlined_call_operand.vmem [shape: f32[6,2,128], index: 3, kind: input, shape index: {}]
  %s4 = inlined_call_operand.vmem [shape: bf16[128,128], index: 4, kind: input, shape index: {}]
  %s5 = inlined_call_operand.vmem [shape: bf16[128,128], index: 5, kind: input, shape index: {}]
  %s6 = inlined_call_operand.vmem [shape: f32[1,128], index: 6, kind: input, shape index: {}]
  %s7 = inlined_call_operand.vmem [shape: bf16[128,640], index: 7, kind: input, shape index: {}]
  %s8 = inlined_call_operand.vmem [shape: f32[1,128], index: 8, kind: input, shape index: {}]
  %s9 = inlined_call_operand.vmem [shape: f32[1,1,128], index: 9, kind: input, shape index: {}]
  %s10 = inlined_call_operand.<no memory space> [shape: f32[1], index: 10, kind: input, shape index: {}]
  %s11 = inlined_call_operand.vmem [shape: bf16[384,512], index: 11, kind: input, shape index: {}]
  %s12 = inlined_call_operand.vmem [shape: f32[1,512], index: 12, kind: input, shape index: {}]
  %s13 = inlined_call_operand.vmem [shape: bf16[128,128], index: 13, kind: input, shape index: {}]
  %s14 = inlined_call_operand.vmem [shape: f32[1,128], index: 14, kind: input, shape index: {}]
  %s15 = inlined_call_operand.vmem [shape: bf16[128,128], index: 15, kind: input, shape index: {}]
  %s16 = inlined_call_operand.hbm [shape: f32[6,2,128], index: 16, kind: output, shape index: {0}]
  %s17 = inlined_call_operand.vmem [shape: s32[6,2,1], index: 17, kind: output, shape index: {1}]
  %18 = xla_tuple %s16, %s17
  %s19 = sld [smem:[#allocation0]]
  $region93: #{seq2seq_forward.3} parent=0
    _
  %s21 = ssub.s32 1, %s19
  %s22 = scalar_select 0, %s21, %s19
  %23 = sst [smem:[#allocation6]] %s10
  $region1: #{seq2seq_forward.3} parent=0
    #allocation7 [shape = 'u8[512]{0}', space=smem, size = 0x200, scoped, tag = 'input window, operand 0, single buffered']
    #allocation8 [shape = 's32[1]{0}', space=sflag, size = 0x4, scoped, tag = 'scoped memory for seq2seq_forward.3']
    #allocation9 [shape = 's32[1]{0}', space=sflag, size = 0x4, scoped, tag = 'scoped memory for seq2seq_forward.3']
    #allocation10 [shape = 'u8[6144]{0}', space=vmem, size = 0x1800, scoped, tag = 'output window, operand 0, single buffered']
    %24 = vsyncpa [#allocation9], 0
    %25 = vsyncpa [#allocation8], 0
    // Predicated region
    $region2: #{seq2seq_forward.3} parent=1 // pred_check
      _
    $region3: #{seq2seq_forward.3} parent=1 // pred_check_branch
      %27 = sbr.rel (0) target = $region5
    $region4: #{seq2seq_forward.3} parent=1 // pred_region
      %s29 = ssub.s32 16, 16
      %30 = vsyncadd [#allocation9], %s29
      %s32 = sshll.u32 %s0, 4
      %s33 = int_to_ptr.vmem [resolvable:$true] %s32
      %35 = dma.vmem_to_smem %s33, 16, [#allocation7], [#allocation9]
    $region5: #{seq2seq_forward.3} parent=1 // pred_fallthru
      _
    // Predicated region
    $region6: #{seq2seq_forward.3} parent=1 // pred_check
      _
    $region7: #{seq2seq_forward.3} parent=1 // pred_check_branch
      %37 = sbr.rel (0) target = $region9
    $region8: #{seq2seq_forward.3} parent=1 // pred_region
      _
    $region9: #{seq2seq_forward.3} parent=1 // pred_fallthru
      _
    // Predicated region
    $region10: #{seq2seq_forward.3} parent=1 // pred_check
      _
    $region11: #{seq2seq_forward.3} parent=1 // pred_check_branch
      %39 = sbr.rel (0) target = $region13
    $region12: #{seq2seq_forward.3} parent=1 // pred_region
      _
    $region13: #{seq2seq_forward.3} parent=1 // pred_fallthru
      _
    // Predicated region
    $region14: #{seq2seq_forward.3} parent=1 // pred_check
      _
    $region15: #{seq2seq_forward.3} parent=1 // pred_check_branch
      %41 = sbr.rel (0) target = $region17
    $region16: #{seq2seq_forward.3} parent=1 // pred_region
      _
    $region17: #{seq2seq_forward.3} parent=1 // pred_fallthru
      _
    // Predicated region
    $region18: #{seq2seq_forward.3} parent=1 // pred_check
      _
    $region19: #{seq2seq_forward.3} parent=1 // pred_check_branch
      %43 = sbr.rel (0) target = $region21
    $region20: #{seq2seq_forward.3} parent=1 // pred_region
      _
    $region21: #{seq2seq_forward.3} parent=1 // pred_fallthru
      _
    // Predicated region
    $region22: #{seq2seq_forward.3} parent=1 // pred_check
      _
    $region23: #{seq2seq_forward.3} parent=1 // pred_check_branch
      %45 = sbr.rel (0) target = $region25
    $region24: #{seq2seq_forward.3} parent=1 // pred_region
      _
    $region25: #{seq2seq_forward.3} parent=1 // pred_fallthru
      _
    // Predicated region
    $region26: #{seq2seq_forward.3} parent=1 // pred_check
      _
    $region27: #{seq2seq_forward.3} parent=1 // pred_check_branch
      %47 = sbr.rel (0) target = $region29
    $region28: #{seq2seq_forward.3} parent=1 // pred_region
      _
    $region29: #{seq2seq_forward.3} parent=1 // pred_fallthru
      _
    // Predicated region
    $region30: #{seq2seq_forward.3} parent=1 // pred_check
      _
    $region31: #{seq2seq_forward.3} parent=1 // pred_check_branch
      %49 = sbr.rel (0) target = $region33
    $region32: #{seq2seq_forward.3} parent=1 // pred_region
      _
    $region33: #{seq2seq_forward.3} parent=1 // pred_fallthru
      _
    // Predicated region
    $region34: #{seq2seq_forward.3} parent=1 // pred_check
      _
    $region35: #{seq2seq_forward.3} parent=1 // pred_check_branch
      %51 = sbr.rel (0) target = $region37
    $region36: #{seq2seq_forward.3} parent=1 // pred_region
      _
    $region37: #{seq2seq_forward.3} parent=1 // pred_fallthru
      _
    // Predicated region
    $region38: #{seq2seq_forward.3} parent=1 // pred_check
      _
    $region39: #{seq2seq_forward.3} parent=1 // pred_check_branch
      %53 = sbr.rel (0) target = $region41
    $region40: #{seq2seq_forward.3} parent=1 // pred_region
      _
    $region41: #{seq2seq_forward.3} parent=1 // pred_fallthru
      _
    // Predicated region
    $region42: #{seq2seq_forward.3} parent=1 // pred_check
      _
    $region43: #{seq2seq_forward.3} parent=1 // pred_check_branch
      %55 = sbr.rel (0) target = $region45
    $region44: #{seq2seq_forward.3} parent=1 // pred_region
      _
    $region45: #{seq2seq_forward.3} parent=1 // pred_fallthru
      _
    // Predicated region
    $region46: #{seq2seq_forward.3} parent=1 // pred_check
      _
    $region47: #{seq2seq_forward.3} parent=1 // pred_check_branch
      %57 = sbr.rel (0) target = $region49
    $region48: #{seq2seq_forward.3} parent=1 // pred_region
      _
    $region49: #{seq2seq_forward.3} parent=1 // pred_fallthru
      _
    // Predicated region
    $region50: #{seq2seq_forward.3} parent=1 // pred_check
      _
    $region51: #{seq2seq_forward.3} parent=1 // pred_check_branch
      %59 = sbr.rel (0) target = $region53
    $region52: #{seq2seq_forward.3} parent=1 // pred_region
      _
    $region53: #{seq2seq_forward.3} parent=1 // pred_fallthru
      _
    // Predicated region
    $region54: #{seq2seq_forward.3} parent=1 // pred_check
      _
    $region55: #{seq2seq_forward.3} parent=1 // pred_check_branch
      %61 = sbr.rel (0) target = $region57
    $region56: #{seq2seq_forward.3} parent=1 // pred_region
      _
    $region57: #{seq2seq_forward.3} parent=1 // pred_fallthru
      _
    // Predicated region
    $region58: #{seq2seq_forward.3} parent=1 // pred_check
      _
    $region59: #{seq2seq_forward.3} parent=1 // pred_check_branch
      %63 = sbr.rel (0) target = $region61
    $region60: #{seq2seq_forward.3} parent=1 // pred_region
      _
    $region61: #{seq2seq_forward.3} parent=1 // pred_fallthru
      _
    // Predicated region
    $region62: #{seq2seq_forward.3} parent=1 // pred_check
      _
    $region63: #{seq2seq_forward.3} parent=1 // pred_check_branch
      %65 = sbr.rel (0) target = $region65
    $region64: #{seq2seq_forward.3} parent=1 // pred_region
      _
    $region65: #{seq2seq_forward.3} parent=1 // pred_fallthru
      _
    // Predicated region
    $region66: #{seq2seq_forward.3} parent=1 // pred_check
      _
    $region67: #{seq2seq_forward.3} parent=1 // pred_check_branch
      %67 = sbr.rel (0) target = $region69
    $region68: #{seq2seq_forward.3} parent=1 // pred_region
      %68 = dma.done [#allocation9], 16
    $region69: #{seq2seq_forward.3} parent=1 // pred_fallthru
      _
    %69 = sfence
    %71 = vst [vmem:[#allocation2] sm:$0x3] 0.0
    %72 = vst [vmem:[#allocation3] sm:$0x3] 0.0
    %73 = vst [vmem:[#allocation4] sm:$0x3] 0.0
    %v74 = vld [vmem:[%s1] sm:$0x3]
    %v75 = vld [vmem:[%s1 + $0x2] sm:$0x3]
    %v76 = vld [vmem:[%s1 + $0x4] sm:$0x3]
    %v77 = vld [vmem:[%s1 + $0x6] sm:$0x3]
    %v78 = vld [vmem:[%s1 + $0x8] sm:$0x3]
    %v79 = vld [vmem:[%s1 + $0xa] sm:$0x3]
    %v80 = vld [vmem:[%s1 + $0xc] sm:$0x3]
    %v81 = vld [vmem:[%s1 + $0xe] sm:$0x3]
    %v90 = vcombine.low %v74, %v75
    %v91 = vcombine.low %v76, %v77
    %v93 = vunpack.c.l.s4 1983009808
    %v94 = vunpack.c.0.s8 %v93
    %v95 = vlaneseq
    %v96 = vshrl.u32 %v95, 7
    %v97 = vsub.s32 %v94, %v96
    %v98 = vrot.slane %v90, %v97
    %v100 = vunpack.c.l.s4 1983009808
    %v101 = vunpack.c.0.s8 %v100
    %v102 = vlaneseq
    %v103 = vshrl.u32 %v102, 7
    %v104 = vsub.s32 %v101, %v103
    %v105 = vrot.slane %v91, %v104
    %v106 = vcombine.low %v98, %v105
    %v107 = vcombine.low %v78, %v79
    %v108 = vcombine.low %v80, %v81
    %v110 = vunpack.c.l.s4 1983009808
    %v111 = vunpack.c.0.s8 %v110
    %v112 = vlaneseq
    %v113 = vshrl.u32 %v112, 7
    %v114 = vsub.s32 %v111, %v113
    %v115 = vrot.slane %v107, %v114
    %v117 = vunpack.c.l.s4 1983009808
    %v118 = vunpack.c.0.s8 %v117
    %v119 = vlaneseq
    %v120 = vshrl.u32 %v119, 7
    %v121 = vsub.s32 %v118, %v120
    %v122 = vrot.slane %v108, %v121
    %v123 = vcombine.low %v115, %v122
    %v126 = vpack.c.bf16 %v123, %v106
    %v127 = vld [vmem:[%s4] sm:$0xf]
    %v128 = vld [vmem:[%s4 + $0x4] sm:$0xf]
    %v129 = vld [vmem:[%s4 + $0x8] sm:$0xf]
    %v130 = vld [vmem:[%s4 + $0xc] sm:$0xf]
    %v131 = vld [vmem:[%s4 + $0x10] sm:$0xf]
    %v132 = vld [vmem:[%s4 + $0x14] sm:$0xf]
    %v133 = vld [vmem:[%s4 + $0x18] sm:$0xf]
    %v134 = vld [vmem:[%s4 + $0x1c] sm:$0xf]
    %v135 = vld [vmem:[%s4 + $0x20] sm:$0xf]
    %v136 = vld [vmem:[%s4 + $0x24] sm:$0xf]
    %v137 = vld [vmem:[%s4 + $0x28] sm:$0xf]
    %v138 = vld [vmem:[%s4 + $0x2c] sm:$0xf]
    %v139 = vld [vmem:[%s4 + $0x30] sm:$0xf]
    %v140 = vld [vmem:[%s4 + $0x34] sm:$0xf]
    %v141 = vld [vmem:[%s4 + $0x38] sm:$0xf]
    %v142 = vld [vmem:[%s4 + $0x3c] sm:$0xf]
    %v143 = vld [vmem:[%s2] sm:$0x3]
    %v144 = vld [vmem:[%s2 + $0x2] sm:$0x3]
    %v145 = vld [vmem:[%s2 + $0x4] sm:$0x3]
    %v146 = vld [vmem:[%s2 + $0x6] sm:$0x3]
    %v147 = vld [vmem:[%s2 + $0x8] sm:$0x3]
    %v148 = vld [vmem:[%s2 + $0xa] sm:$0x3]
    %v149 = vld [vmem:[%s2 + $0xc] sm:$0x3]
    %v150 = vld [vmem:[%s2 + $0xe] sm:$0x3]
    %v159 = vcombine.low %v143, %v144
    %v160 = vcombine.low %v145, %v146
    %v162 = vunpack.c.l.s4 1983009808
    %v163 = vunpack.c.0.s8 %v162
    %v164 = vlaneseq
    %v165 = vshrl.u32 %v164, 7
    %v166 = vsub.s32 %v163, %v165
    %v167 = vrot.slane %v159, %v166
    %v169 = vunpack.c.l.s4 1983009808
    %v170 = vunpack.c.0.s8 %v169
    %v171 = vlaneseq
    %v172 = vshrl.u32 %v171, 7
    %v173 = vsub.s32 %v170, %v172
    %v174 = vrot.slane %v160, %v173
    %v175 = vcombine.low %v167, %v174
    %v176 = vcombine.low %v147, %v148
    %v177 = vcombine.low %v149, %v150
    %v179 = vunpack.c.l.s4 1983009808
    %v180 = vunpack.c.0.s8 %v179
    %v181 = vlaneseq
    %v182 = vshrl.u32 %v181, 7
    %v183 = vsub.s32 %v180, %v182
    %v184 = vrot.slane %v176, %v183
    %v186 = vunpack.c.l.s4 1983009808
    %v187 = vunpack.c.0.s8 %v186
    %v188 = vlaneseq
    %v189 = vshrl.u32 %v188, 7
    %v190 = vsub.s32 %v187, %v189
    %v191 = vrot.slane %v177, %v190
    %v192 = vcombine.low %v184, %v191
    %v195 = vpack.c.bf16 %v192, %v175
    %v196 = vld [vmem:[%s5] sm:$0xf]
    %v197 = vld [vmem:[%s5 + $0x4] sm:$0xf]
    %v198 = vld [vmem:[%s5 + $0x8] sm:$0xf]
    %v199 = vld [vmem:[%s5 + $0xc] sm:$0xf]
    %v200 = vld [vmem:[%s5 + $0x10] sm:$0xf]
    %v201 = vld [vmem:[%s5 + $0x14] sm:$0xf]
    %v202 = vld [vmem:[%s5 + $0x18] sm:$0xf]
    %v203 = vld [vmem:[%s5 + $0x1c] sm:$0xf]
    %v204 = vld [vmem:[%s5 + $0x20] sm:$0xf]
    %v205 = vld [vmem:[%s5 + $0x24] sm:$0xf]
    %v206 = vld [vmem:[%s5 + $0x28] sm:$0xf]
    %v207 = vld [vmem:[%s5 + $0x2c] sm:$0xf]
    %v208 = vld [vmem:[%s5 + $0x30] sm:$0xf]
    %v209 = vld [vmem:[%s5 + $0x34] sm:$0xf]
    %v210 = vld [vmem:[%s5 + $0x38] sm:$0xf]
    %v211 = vld [vmem:[%s5 + $0x3c] sm:$0xf]
    %v228 = vunpack.c.l.b16 %v196
    %v229 = vunpack.c.l.b16 %v197
    %v230 = vunpack.c.l.b16 %v198
    %v231 = vunpack.c.l.b16 %v199
    %v232 = vunpack.c.l.b16 %v200
    %v233 = vunpack.c.l.b16 %v201
    %v234 = vunpack.c.l.b16 %v202
    %v235 = vunpack.c.l.b16 %v203
    %v236 = vunpack.c.l.b16 %v204
    %v237 = vunpack.c.l.b16 %v205
    %v238 = vunpack.c.l.b16 %v206
    %v239 = vunpack.c.l.b16 %v207
    %v240 = vunpack.c.l.b16 %v208
    %v241 = vunpack.c.l.b16 %v209
    %v242 = vunpack.c.l.b16 %v210
    %v243 = vunpack.c.l.b16 %v211
    %v244 = vpack.c.b16 %v229, %v228
    %v245 = vpack.c.b16 %v231, %v230
    %v246 = vpack.c.b16 %v233, %v232
    %v247 = vpack.c.b16 %v235, %v234
    %v248 = vpack.c.b16 %v237, %v236
    %v249 = vpack.c.b16 %v239, %v238
    %v250 = vpack.c.b16 %v241, %v240
    %v251 = vpack.c.b16 %v243, %v242
    %260 = vmatprep.subr.bf16.mxu0 0
    %261 = vmatpush1.bf16.msra.mxu0 %v244
    %262 = vmatprep.subr.bf16.mxu0 0
    %263 = vmatpush1.bf16.msra.mxu0 %v245
    %264 = vmatprep.subr.bf16.mxu0 0
    %265 = vmatpush1.bf16.msra.mxu0 %v246
    %266 = vmatprep.subr.bf16.mxu0 0
    %267 = vmatpush1.bf16.msra.mxu0 %v247
    %268 = vmatprep.subr.bf16.mxu0 0
    %269 = vmatpush1.bf16.msra.mxu0 %v248
    %270 = vmatprep.subr.bf16.mxu0 0
    %271 = vmatpush1.bf16.msra.mxu0 %v249
    %272 = vmatprep.subr.bf16.mxu0 0
    %273 = vmatpush1.bf16.msra.mxu0 %v250
    %274 = vmatprep.subr.bf16.mxu0 0
    %275 = vmatpush1.bf16.msra.mxu0 %v251
    %276 = vmatprep.subr.bf16.mxu0 0
    %277 = vmatpush1.bf16.msra.mxu0 0
    %278 = vmatprep.subr.bf16.mxu0 0
    %279 = vmatpush1.bf16.msra.mxu0 0
    %280 = vmatprep.subr.bf16.mxu0 0
    %281 = vmatpush1.bf16.msra.mxu0 0
    %282 = vmatprep.subr.bf16.mxu0 0
    %283 = vmatpush1.bf16.msra.mxu0 0
    %284 = vmatprep.subr.bf16.mxu0 0
    %285 = vmatpush1.bf16.msra.mxu0 0
    %286 = vmatprep.subr.bf16.mxu0 0
    %287 = vmatpush1.bf16.msra.mxu0 0
    %288 = vmatprep.subr.bf16.mxu0 0
    %289 = vmatpush1.bf16.msra.mxu0 0
    %290 = vmatprep.subr.bf16.mxu0 0
    %291 = vmatpush1.bf16.msra.mxu0 0
    %292 = vmatprep.mubr.bf16.mxu0 0
    %293 = vmatmul.mubr.bf16.gmra.mrb[0].mxu0 %v195
    %v294 = vpop.f32.mrb[0].mxu0
    %v295 = vadd.f32 0.0, %v294
    %v296 = vpop.f32.mrb[0].mxu0
    %v297 = vpop.f32.mrb[0].mxu0
    %v298 = vadd.f32 0.0, %v297
    %v299 = vpop.f32.mrb[0].mxu0
    %300 = vdwg.mxu0
    %v317 = vunpack.c.l.b16 %v127
    %v318 = vunpack.c.l.b16 %v128
    %v319 = vunpack.c.l.b16 %v129
    %v320 = vunpack.c.l.b16 %v130
    %v321 = vunpack.c.l.b16 %v131
    %v322 = vunpack.c.l.b16 %v132
    %v323 = vunpack.c.l.b16 %v133
    %v324 = vunpack.c.l.b16 %v134
    %v325 = vunpack.c.l.b16 %v135
    %v326 = vunpack.c.l.b16 %v136
    %v327 = vunpack.c.l.b16 %v137
    %v328 = vunpack.c.l.b16 %v138
    %v329 = vunpack.c.l.b16 %v139
    %v330 = vunpack.c.l.b16 %v140
    %v331 = vunpack.c.l.b16 %v141
    %v332 = vunpack.c.l.b16 %v142
    %v333 = vpack.c.b16 %v318, %v317
    %v334 = vpack.c.b16 %v320, %v319
    %v335 = vpack.c.b16 %v322, %v321
    %v336 = vpack.c.b16 %v324, %v323
    %v337 = vpack.c.b16 %v326, %v325
    %v338 = vpack.c.b16 %v328, %v327
    %v339 = vpack.c.b16 %v330, %v329
    %v340 = vpack.c.b16 %v332, %v331
    %349 = vmatprep.subr.bf16.mxu0 0
    %350 = vmatpush1.bf16.msra.mxu0 %v333
    %351 = vmatprep.subr.bf16.mxu0 0
    %352 = vmatpush1.bf16.msra.mxu0 %v334
    %353 = vmatprep.subr.bf16.mxu0 0
    %354 = vmatpush1.bf16.msra.mxu0 %v335
    %355 = vmatprep.subr.bf16.mxu0 0
    %356 = vmatpush1.bf16.msra.mxu0 %v336
    %357 = vmatprep.subr.bf16.mxu0 0
    %358 = vmatpush1.bf16.msra.mxu0 %v337
    %359 = vmatprep.subr.bf16.mxu0 0
    %360 = vmatpush1.bf16.msra.mxu0 %v338
    %361 = vmatprep.subr.bf16.mxu0 0
    %362 = vmatpush1.bf16.msra.mxu0 %v339
    %363 = vmatprep.subr.bf16.mxu0 0
    %364 = vmatpush1.bf16.msra.mxu0 %v340
    %365 = vmatprep.subr.bf16.mxu0 0
    %366 = vmatpush1.bf16.msra.mxu0 0
    %367 = vmatprep.subr.bf16.mxu0 0
    %368 = vmatpush1.bf16.msra.mxu0 0
    %369 = vmatprep.subr.bf16.mxu0 0
    %370 = vmatpush1.bf16.msra.mxu0 0
    %371 = vmatprep.subr.bf16.mxu0 0
    %372 = vmatpush1.bf16.msra.mxu0 0
    %373 = vmatprep.subr.bf16.mxu0 0
    %374 = vmatpush1.bf16.msra.mxu0 0
    %375 = vmatprep.subr.bf16.mxu0 0
    %376 = vmatpush1.bf16.msra.mxu0 0
    %377 = vmatprep.subr.bf16.mxu0 0
    %378 = vmatpush1.bf16.msra.mxu0 0
    %379 = vmatprep.subr.bf16.mxu0 0
    %380 = vmatpush1.bf16.msra.mxu0 0
    %381 = vmatprep.mubr.bf16.mxu0 0
    %382 = vmatmul.mubr.bf16.gmra.mrb[0].mxu0 %v126
    %v383 = vpop.f32.mrb[0].mxu0
    %v384 = vadd.f32 %v295, %v383
    %v385 = vpop.f32.mrb[0].mxu0
    %v386 = vpop.f32.mrb[0].mxu0
    %v387 = vadd.f32 %v298, %v386
    %v388 = vpop.f32.mrb[0].mxu0
    %389 = vdwg.mxu0
    %v390 = vld [vmem:[%s6] sm:$0x1]
    %v392 = vlaneseq
    %v393 = vshrl.u32 %v392, 7
    %v394 = vsub.s32 0, %v393
    %v395 = vrot.slane %v390, %v394
    %v397 = vadd.f32 %v384, %v395
    %v398 = vadd.f32 %v387, %v395
    %v401 = vcombine.high %v397, %v397
    %v403 = vunpack.c.l.s4 1983009808
    %v404 = vunpack.c.0.s8 %v403
    %v405 = vlaneseq
    %v406 = vshrl.u32 %v405, 7
    %v407 = vsub.s32 %v404, %v406
    %v408 = vrot.slane %v397, %v407
    %v410 = vunpack.c.l.s4 1983009808
    %v411 = vunpack.c.0.s8 %v410
    %v412 = vlaneseq
    %v413 = vshrl.u32 %v412, 7
    %v414 = vsub.s32 %v411, %v413
    %v415 = vrot.slane %v401, %v414
    %v416 = vcombine.high %v408, %v408
    %v417 = vcombine.high %v415, %v415
    %v418 = vcombine.high %v398, %v398
    %v420 = vunpack.c.l.s4 1983009808
    %v421 = vunpack.c.0.s8 %v420
    %v422 = vlaneseq
    %v423 = vshrl.u32 %v422, 7
    %v424 = vsub.s32 %v421, %v423
    %v425 = vrot.slane %v398, %v424
    %v427 = vunpack.c.l.s4 1983009808
    %v428 = vunpack.c.0.s8 %v427
    %v429 = vlaneseq
    %v430 = vshrl.u32 %v429, 7
    %v431 = vsub.s32 %v428, %v430
    %v432 = vrot.slane %v418, %v431
    %v433 = vcombine.high %v425, %v425
    %v434 = vcombine.high %v432, %v432
    %443 = vst [vmem:[#allocation5] sm:$0x3] %v408
    %444 = vst [vmem:[#allocation5 + $0x2] sm:$0x3] %v416
    %445 = vst [vmem:[#allocation5 + $0x4] sm:$0x3] %v415
    %446 = vst [vmem:[#allocation5 + $0x6] sm:$0x3] %v417
    %447 = vst [vmem:[#allocation5 + $0x8] sm:$0x3] %v425
    %448 = vst [vmem:[#allocation5 + $0xa] sm:$0x3] %v433
    %449 = vst [vmem:[#allocation5 + $0xc] sm:$0x3] %v432
    %450 = vst [vmem:[#allocation5 + $0xe] sm:$0x3] %v434
    %s451 = sld [smem:[#allocation6]]
    loop: start=0, step=1, limit=6
    $region70: #{seq2seq_forward.3} parent=1 // loop_pre_header
      _
    $region71: #{seq2seq_forward.3} parent=1 // loop_header
      %s453 = sphi 0, %s457
      %p454 = scmp.ge.s32.totalorder %s453, 6
    $region72: #{seq2seq_forward.3} parent=1 // loop_header_branch
      %456 = sbr.rel (%p454) target = $region76
    $region73: #{seq2seq_forward.3} parent=1 // loop_body
      %v458 = vld [vmem:[#allocation2] sm:$0x3]
      %v459 = vpack.c.bf16 %v458, %v458
      %v460 = vld [vmem:[%s7] sm:$0xff]
      %v461 = vld [vmem:[%s7 + $0x8] sm:$0xff]
      %v462 = vld [vmem:[%s7 + $0x10] sm:$0xf]
      %v463 = vld [vmem:[%s7 + $0x14] sm:$0xff]
      %v464 = vld [vmem:[%s7 + $0x1c] sm:$0xff]
      %v465 = vld [vmem:[%s7 + $0x24] sm:$0xf]
      %v466 = vld [vmem:[%s7 + $0x28] sm:$0xff]
      %v467 = vld [vmem:[%s7 + $0x30] sm:$0xff]
      %v468 = vld [vmem:[%s7 + $0x38] sm:$0xf]
      %v469 = vld [vmem:[%s7 + $0x3c] sm:$0xff]
      %v470 = vld [vmem:[%s7 + $0x44] sm:$0xff]
      %v471 = vld [vmem:[%s7 + $0x4c] sm:$0xf]
      %v472 = vld [vmem:[%s7 + $0x50] sm:$0xff]
      %v473 = vld [vmem:[%s7 + $0x58] sm:$0xff]
      %v474 = vld [vmem:[%s7 + $0x60] sm:$0xf]
      %v475 = vld [vmem:[%s7 + $0x64] sm:$0xff]
      %v476 = vld [vmem:[%s7 + $0x6c] sm:$0xff]
      %v477 = vld [vmem:[%s7 + $0x74] sm:$0xf]
      %v478 = vld [vmem:[%s7 + $0x78] sm:$0xff]
      %v479 = vld [vmem:[%s7 + $0x80] sm:$0xff]
      %v480 = vld [vmem:[%s7 + $0x88] sm:$0xf]
      %v481 = vld [vmem:[%s7 + $0x8c] sm:$0xff]
      %v482 = vld [vmem:[%s7 + $0x94] sm:$0xff]
      %v483 = vld [vmem:[%s7 + $0x9c] sm:$0xf]
      %v484 = vld [vmem:[%s7 + $0xa0] sm:$0xff]
      %v485 = vld [vmem:[%s7 + $0xa8] sm:$0xff]
      %v486 = vld [vmem:[%s7 + $0xb0] sm:$0xf]
      %v487 = vld [vmem:[%s7 + $0xb4] sm:$0xff]
      %v488 = vld [vmem:[%s7 + $0xbc] sm:$0xff]
      %v489 = vld [vmem:[%s7 + $0xc4] sm:$0xf]
      %v490 = vld [vmem:[%s7 + $0xc8] sm:$0xff]
      %v491 = vld [vmem:[%s7 + $0xd0] sm:$0xff]
      %v492 = vld [vmem:[%s7 + $0xd8] sm:$0xf]
      %v493 = vld [vmem:[%s7 + $0xdc] sm:$0xff]
      %v494 = vld [vmem:[%s7 + $0xe4] sm:$0xff]
      %v495 = vld [vmem:[%s7 + $0xec] sm:$0xf]
      %v496 = vld [vmem:[%s7 + $0xf0] sm:$0xff]
      %v497 = vld [vmem:[%s7 + $0xf8] sm:$0xff]
      %v498 = vld [vmem:[%s7 + $0x100] sm:$0xf]
      %v499 = vld [vmem:[%s7 + $0x104] sm:$0xff]
      %v500 = vld [vmem:[%s7 + $0x10c] sm:$0xff]
      %v501 = vld [vmem:[%s7 + $0x114] sm:$0xf]
      %v502 = vld [vmem:[%s7 + $0x118] sm:$0xff]
      %v503 = vld [vmem:[%s7 + $0x120] sm:$0xff]
      %v504 = vld [vmem:[%s7 + $0x128] sm:$0xf]
      %v505 = vld [vmem:[%s7 + $0x12c] sm:$0xff]
      %v506 = vld [vmem:[%s7 + $0x134] sm:$0xff]
      %v507 = vld [vmem:[%s7 + $0x13c] sm:$0xf]
      %v556 = vunpack.c.l.b16 %v460
      %v557 = vunpack.c.h.b16 %v460
      %v558 = vunpack.c.l.b16 %v461
      %v559 = vunpack.c.h.b16 %v461
      %v560 = vunpack.c.l.b16 %v462
      %v561 = vunpack.c.l.b16 %v463
      %v562 = vunpack.c.h.b16 %v463
      %v563 = vunpack.c.l.b16 %v464
      %v564 = vunpack.c.h.b16 %v464
      %v565 = vunpack.c.l.b16 %v465
      %v566 = vunpack.c.l.b16 %v466
      %v567 = vunpack.c.h.b16 %v466
      %v568 = vunpack.c.l.b16 %v467
      %v569 = vunpack.c.h.b16 %v467
      %v570 = vunpack.c.l.b16 %v468
      %v571 = vunpack.c.l.b16 %v469
      %v572 = vunpack.c.h.b16 %v469
      %v573 = vunpack.c.l.b16 %v470
      %v574 = vunpack.c.h.b16 %v470
      %v575 = vunpack.c.l.b16 %v471
      %v576 = vunpack.c.l.b16 %v472
      %v577 = vunpack.c.h.b16 %v472
      %v578 = vunpack.c.l.b16 %v473
      %v579 = vunpack.c.h.b16 %v473
      %v580 = vunpack.c.l.b16 %v474
      %v581 = vunpack.c.l.b16 %v475
      %v582 = vunpack.c.h.b16 %v475
      %v583 = vunpack.c.l.b16 %v476
      %v584 = vunpack.c.h.b16 %v476
      %v585 = vunpack.c.l.b16 %v477
      %v586 = vunpack.c.l.b16 %v478
      %v587 = vunpack.c.h.b16 %v478
      %v588 = vunpack.c.l.b16 %v479
      %v589 = vunpack.c.h.b16 %v479
      %v590 = vunpack.c.l.b16 %v480
      %v591 = vunpack.c.l.b16 %v481
      %v592 = vunpack.c.h.b16 %v481
      %v593 = vunpack.c.l.b16 %v482
      %v594 = vunpack.c.h.b16 %v482
      %v595 = vunpack.c.l.b16 %v483
      %v596 = vunpack.c.l.b16 %v484
      %v597 = vunpack.c.h.b16 %v484
      %v598 = vunpack.c.l.b16 %v485
      %v599 = vunpack.c.h.b16 %v485
      %v600 = vunpack.c.l.b16 %v486
      %v601 = vunpack.c.l.b16 %v487
      %v602 = vunpack.c.h.b16 %v487
      %v603 = vunpack.c.l.b16 %v488
      %v604 = vunpack.c.h.b16 %v488
      %v605 = vunpack.c.l.b16 %v489
      %v606 = vunpack.c.l.b16 %v490
      %v607 = vunpack.c.h.b16 %v490
      %v608 = vunpack.c.l.b16 %v491
      %v609 = vunpack.c.h.b16 %v491
      %v610 = vunpack.c.l.b16 %v492
      %v611 = vunpack.c.l.b16 %v493
      %v612 = vunpack.c.h.b16 %v493
      %v613 = vunpack.c.l.b16 %v494
      %v614 = vunpack.c.h.b16 %v494
      %v615 = vunpack.c.l.b16 %v495
      %v616 = vunpack.c.l.b16 %v496
      %v617 = vunpack.c.h.b16 %v496
      %v618 = vunpack.c.l.b16 %v497
      %v619 = vunpack.c.h.b16 %v497
      %v620 = vunpack.c.l.b16 %v498
      %v621 = vunpack.c.l.b16 %v499
      %v622 = vunpack.c.h.b16 %v499
      %v623 = vunpack.c.l.b16 %v500
      %v624 = vunpack.c.h.b16 %v500
      %v625 = vunpack.c.l.b16 %v501
      %v626 = vunpack.c.l.b16 %v502
      %v627 = vunpack.c.h.b16 %v502
      %v628 = vunpack.c.l.b16 %v503
      %v629 = vunpack.c.h.b16 %v503
      %v630 = vunpack.c.l.b16 %v504
      %v631 = vunpack.c.l.b16 %v505
      %v632 = vunpack.c.h.b16 %v505
      %v633 = vunpack.c.l.b16 %v506
      %v634 = vunpack.c.h.b16 %v506
      %v635 = vunpack.c.l.b16 %v507
      %v636 = vpack.c.b16 %v561, %v556
      %v637 = vpack.c.b16 %v562, %v557
      %v638 = vpack.c.b16 %v563, %v558
      %v639 = vpack.c.b16 %v564, %v559
      %v640 = vpack.c.b16 %v565, %v560
      %v641 = vpack.c.b16 %v571, %v566
      %v642 = vpack.c.b16 %v572, %v567
      %v643 = vpack.c.b16 %v573, %v568
      %v644 = vpack.c.b16 %v574, %v569
      %v645 = vpack.c.b16 %v575, %v570
      %v646 = vpack.c.b16 %v581, %v576
      %v647 = vpack.c.b16 %v582, %v577
      %v648 = vpack.c.b16 %v583, %v578
      %v649 = vpack.c.b16 %v584, %v579
      %v650 = vpack.c.b16 %v585, %v580
      %v651 = vpack.c.b16 %v591, %v586
      %v652 = vpack.c.b16 %v592, %v587
      %v653 = vpack.c.b16 %v593, %v588
      %v654 = vpack.c.b16 %v594, %v589
      %v655 = vpack.c.b16 %v595, %v590
      %v656 = vpack.c.b16 %v601, %v596
      %v657 = vpack.c.b16 %v602, %v597
      %v658 = vpack.c.b16 %v603, %v598
      %v659 = vpack.c.b16 %v604, %v599
      %v660 = vpack.c.b16 %v605, %v600
      %v661 = vpack.c.b16 %v611, %v606
      %v662 = vpack.c.b16 %v612, %v607
      %v663 = vpack.c.b16 %v613, %v608
      %v664 = vpack.c.b16 %v614, %v609
      %v665 = vpack.c.b16 %v615, %v610
      %v666 = vpack.c.b16 %v621, %v616
      %v667 = vpack.c.b16 %v622, %v617
      %v668 = vpack.c.b16 %v623, %v618
      %v669 = vpack.c.b16 %v624, %v619
      %v670 = vpack.c.b16 %v625, %v620
      %v671 = vpack.c.b16 %v631, %v626
      %v672 = vpack.c.b16 %v632, %v627
      %v673 = vpack.c.b16 %v633, %v628
      %v674 = vpack.c.b16 %v634, %v629
      %v675 = vpack.c.b16 %v635, %v630
      %716 = vmatprep.subr.bf16.mxu0 %v637
      %717 = vmatpush1.bf16.msra.mxu0 %v636
      %718 = vmatprep.subr.bf16.mxu0 %v642
      %719 = vmatpush1.bf16.msra.mxu0 %v641
      %720 = vmatprep.subr.bf16.mxu0 %v647
      %721 = vmatpush1.bf16.msra.mxu0 %v646
      %722 = vmatprep.subr.bf16.mxu0 %v652
      %723 = vmatpush1.bf16.msra.mxu0 %v651
      %724 = vmatprep.subr.bf16.mxu0 %v657
      %725 = vmatpush1.bf16.msra.mxu0 %v656
      %726 = vmatprep.subr.bf16.mxu0 %v662
      %727 = vmatpush1.bf16.msra.mxu0 %v661
      %728 = vmatprep.subr.bf16.mxu0 %v667
      %729 = vmatpush1.bf16.msra.mxu0 %v666
      %730 = vmatprep.subr.bf16.mxu0 %v672
      %731 = vmatpush1.bf16.msra.mxu0 %v671
      %732 = vmatprep.subr.bf16.mxu0 0
      %733 = vmatpush1.bf16.msra.mxu0 0
      %734 = vmatprep.subr.bf16.mxu0 0
      %735 = vmatpush1.bf16.msra.mxu0 0
      %736 = vmatprep.subr.bf16.mxu0 0
      %737 = vmatpush1.bf16.msra.mxu0 0
      %738 = vmatprep.subr.bf16.mxu0 0
      %739 = vmatpush1.bf16.msra.mxu0 0
      %740 = vmatprep.subr.bf16.mxu0 0
      %741 = vmatpush1.bf16.msra.mxu0 0
      %742 = vmatprep.subr.bf16.mxu0 0
      %743 = vmatpush1.bf16.msra.mxu0 0
      %744 = vmatprep.subr.bf16.mxu0 0
      %745 = vmatpush1.bf16.msra.mxu0 0
      %746 = vmatprep.subr.bf16.mxu0 0
      %747 = vmatpush1.bf16.msra.mxu0 0
      %748 = vmatprep.mubr.bf16.mxu0 0
      %749 = vmatmul.mubr.bf16.gmra.mrb[0].mxu0 %v459
      %v750 = vpop.f32.mrb[0].mxu0
      %v751 = vadd.f32 0.0, %v750
      %v752 = vpop.f32.mrb[0].mxu0
      %v753 = vadd.f32 0.0, %v752
      %v754 = vpop.f32.mrb[0].mxu0
      %v755 = vpop.f32.mrb[0].mxu0
      %756 = vdwg.mxu0
      %757 = vmatprep.subr.bf16.mxu0 %v639
      %758 = vmatpush1.bf16.msra.mxu0 %v638
      %759 = vmatprep.subr.bf16.mxu0 %v644
      %760 = vmatpush1.bf16.msra.mxu0 %v643
      %761 = vmatprep.subr.bf16.mxu0 %v649
      %762 = vmatpush1.bf16.msra.mxu0 %v648
      %763 = vmatprep.subr.bf16.mxu0 %v654
      %764 = vmatpush1.bf16.msra.mxu0 %v653
      %765 = vmatprep.subr.bf16.mxu0 %v659
      %766 = vmatpush1.bf16.msra.mxu0 %v658
      %767 = vmatprep.subr.bf16.mxu0 %v664
      %768 = vmatpush1.bf16.msra.mxu0 %v663
      %769 = vmatprep.subr.bf16.mxu0 %v669
      %770 = vmatpush1.bf16.msra.mxu0 %v668
      %771 = vmatprep.subr.bf16.mxu0 %v674
      %772 = vmatpush1.bf16.msra.mxu0 %v673
      %773 = vmatprep.subr.bf16.mxu0 0
      %774 = vmatpush1.bf16.msra.mxu0 0
      %775 = vmatprep.subr.bf16.mxu0 0
      %776 = vmatpush1.bf16.msra.mxu0 0
      %777 = vmatprep.subr.bf16.mxu0 0
      %778 = vmatpush1.bf16.msra.mxu0 0
      %779 = vmatprep.subr.bf16.mxu0 0
      %780 = vmatpush1.bf16.msra.mxu0 0
      %781 = vmatprep.subr.bf16.mxu0 0
      %782 = vmatpush1.bf16.msra.mxu0 0
      %783 = vmatprep.subr.bf16.mxu0 0
      %784 = vmatpush1.bf16.msra.mxu0 0
      %785 = vmatprep.subr.bf16.mxu0 0
      %786 = vmatpush1.bf16.msra.mxu0 0
      %787 = vmatprep.subr.bf16.mxu0 0
      %788 = vmatpush1.bf16.msra.mxu0 0
      %789 = vmatprep.mubr.bf16.mxu0 0
      %790 = vmatmul.mubr.bf16.gmra.mrb[0].mxu0 %v459
      %v791 = vpop.f32.mrb[0].mxu0
      %v792 = vadd.f32 0.0, %v791
      %v793 = vpop.f32.mrb[0].mxu0
      %v794 = vadd.f32 0.0, %v793
      %v795 = vpop.f32.mrb[0].mxu0
      %v796 = vpop.f32.mrb[0].mxu0
      %797 = vdwg.mxu0
      %798 = vmatprep.subr.bf16.mxu0 0
      %799 = vmatpush1.bf16.msra.mxu0 %v640
      %800 = vmatprep.subr.bf16.mxu0 0
      %801 = vmatpush1.bf16.msra.mxu0 %v645
      %802 = vmatprep.subr.bf16.mxu0 0
      %803 = vmatpush1.bf16.msra.mxu0 %v650
      %804 = vmatprep.subr.bf16.mxu0 0
      %805 = vmatpush1.bf16.msra.mxu0 %v655
      %806 = vmatprep.subr.bf16.mxu0 0
      %807 = vmatpush1.bf16.msra.mxu0 %v660
      %808 = vmatprep.subr.bf16.mxu0 0
      %809 = vmatpush1.bf16.msra.mxu0 %v665
      %810 = vmatprep.subr.bf16.mxu0 0
      %811 = vmatpush1.bf16.msra.mxu0 %v670
      %812 = vmatprep.subr.bf16.mxu0 0
      %813 = vmatpush1.bf16.msra.mxu0 %v675
      %814 = vmatprep.subr.bf16.mxu0 0
      %815 = vmatpush1.bf16.msra.mxu0 0
      %816 = vmatprep.subr.bf16.mxu0 0
      %817 = vmatpush1.bf16.msra.mxu0 0
      %818 = vmatprep.subr.bf16.mxu0 0
      %819 = vmatpush1.bf16.msra.mxu0 0
      %820 = vmatprep.subr.bf16.mxu0 0
      %821 = vmatpush1.bf16.msra.mxu0 0
      %822 = vmatprep.subr.bf16.mxu0 0
      %823 = vmatpush1.bf16.msra.mxu0 0
      %824 = vmatprep.subr.bf16.mxu0 0
      %825 = vmatpush1.bf16.msra.mxu0 0
      %826 = vmatprep.subr.bf16.mxu0 0
      %827 = vmatpush1.bf16.msra.mxu0 0
      %828 = vmatprep.subr.bf16.mxu0 0
      %829 = vmatpush1.bf16.msra.mxu0 0
      %830 = vmatprep.mubr.bf16.mxu0 0
      %831 = vmatmul.mubr.bf16.gmra.mrb[0].mxu0 %v459
      %v832 = vpop.f32.mrb[0].mxu0
      %v833 = vadd.f32 0.0, %v832
      %v834 = vpop.f32.mrb[0].mxu0
      %v835 = vpop.f32.mrb[0].mxu0
      %v836 = vpop.f32.mrb[0].mxu0
      %837 = vdwg.mxu0
      %v838 = vld [vmem:[%s8] sm:$0x1]
      %v840 = vlaneseq
      %v841 = vshrl.u32 %v840, 7
      %v842 = vsub.s32 0, %v841
      %v843 = vrot.slane %v838, %v842
      %v845 = vadd.f32 %v751, %v843
      %v846 = vld [vmem:[#allocation5] sm:$0x3]
      %v847 = vld [vmem:[#allocation5 + $0x2] sm:$0x3]
      %v848 = vld [vmem:[#allocation5 + $0x4] sm:$0x3]
      %v849 = vld [vmem:[#allocation5 + $0x6] sm:$0x3]
      %v850 = vld [vmem:[#allocation5 + $0x8] sm:$0x3]
      %v851 = vld [vmem:[#allocation5 + $0xa] sm:$0x3]
      %v852 = vld [vmem:[#allocation5 + $0xc] sm:$0x3]
      %v853 = vld [vmem:[#allocation5 + $0xe] sm:$0x3]
      %v854 = vadd.f32 %v846, %v845
      %v855 = vadd.f32 %v847, %v845
      %v856 = vadd.f32 %v848, %v845
      %v857 = vadd.f32 %v849, %v845
      %v858 = vadd.f32 %v850, %v845
      %v859 = vadd.f32 %v851, %v845
      %v860 = vadd.f32 %v852, %v845
      %v861 = vadd.f32 %v853, %v845
      %v862 = vtanh.pop %v854
      %v863 = vtanh.pop %v855
      %v864 = vtanh.pop %v856
      %v865 = vtanh.pop %v857
      %v866 = vtanh.pop %v858
      %v867 = vtanh.pop %v859
      %v868 = vtanh.pop %v860
      %v869 = vtanh.pop %v861
      %v870 = vld [vmem:[%s9] sm:$0x1]
      %v872 = vlaneseq
      %v873 = vshrl.u32 %v872, 7
      %v874 = vsub.s32 0, %v873
      %v875 = vrot.slane %v870, %v874
      %v877 = vmul.f32 %v862, %v875
      %v878 = vmul.f32 %v863, %v875
      %v879 = vmul.f32 %v864, %v875
      %v880 = vmul.f32 %v865, %v875
      %v881 = vmul.f32 %v866, %v875
      %v882 = vmul.f32 %v867, %v875
      %v883 = vmul.f32 %v868, %v875
      %v884 = vmul.f32 %v869, %v875
      %vm885 = vcmask 1041408
      %v886 = vsel %vm885, %v877, 0.0
      %887 = vadd.xlane.f32.xlu0 %v886
      %v888 = vpop.xlane.xlu0 %887
      %v889 = vsel %vm885, %v878, 0.0
      %890 = vadd.xlane.f32.xlu0 %v889
      %v891 = vpop.xlane.xlu0 %890
      %v892 = vsel %vm885, %v879, 0.0
      %893 = vadd.xlane.f32.xlu0 %v892
      %v894 = vpop.xlane.xlu0 %893
      %v895 = vsel %vm885, %v880, 0.0
      %896 = vadd.xlane.f32.xlu0 %v895
      %v897 = vpop.xlane.xlu0 %896
      %v898 = vsel %vm885, %v881, 0.0
      %899 = vadd.xlane.f32.xlu0 %v898
      %v900 = vpop.xlane.xlu0 %899
      %v901 = vsel %vm885, %v882, 0.0
      %902 = vadd.xlane.f32.xlu0 %v901
      %v903 = vpop.xlane.xlu0 %902
      %v904 = vsel %vm885, %v883, 0.0
      %905 = vadd.xlane.f32.xlu0 %v904
      %v906 = vpop.xlane.xlu0 %905
      %v907 = vsel %vm885, %v884, 0.0
      %908 = vadd.xlane.f32.xlu0 %v907
      %v909 = vpop.xlane.xlu0 %908
      %v910 = vstv %s451
      %v911 = vadd.f32 %v888, %v910
      %v912 = vadd.f32 %v891, %v910
      %v913 = vadd.f32 %v894, %v910
      %v914 = vadd.f32 %v897, %v910
      %v915 = vadd.f32 %v900, %v910
      %v916 = vadd.f32 %v903, %v910
      %v917 = vadd.f32 %v906, %v910
      %v918 = vadd.f32 %v909, %v910
      %v919 = vsel %vm885, %v911, -inf
      %v920 = vsel %vm885, %v912, -inf
      %v921 = vsel %vm885, %v913, -inf
      %v922 = vsel %vm885, %v914, -inf
      %v923 = vsel %vm885, %v915, -inf
      %v924 = vmax.f32 %v919, %v923
      %v925 = vsel %vm885, %v916, -inf
      %v926 = vmax.f32 %v920, %v925
      %v927 = vsel %vm885, %v917, -inf
      %v928 = vmax.f32 %v921, %v927
      %v929 = vsel %vm885, %v918, -inf
      %v930 = vmax.f32 %v922, %v929
      %v931 = vmax.f32 %v924, %v926
      %v932 = vmax.f32 %v928, %v930
      %v933 = vmax.f32 %v931, %v932
      %v934 = vsub.f32 %v911, %v933
      %v935 = vsub.f32 %v912, %v933
      %v936 = vsub.f32 %v913, %v933
      %v937 = vsub.f32 %v914, %v933
      %v938 = vsub.f32 %v915, %v933
      %v939 = vsub.f32 %v916, %v933
      %v940 = vsub.f32 %v917, %v933
      %v941 = vsub.f32 %v918, %v933
      %v942 = vmul.f32 %v934, 1.442695
      %v943 = vpow.pop %v942
      %v944 = vmul.f32 %v935, 1.442695
      %v945 = vpow.pop %v944
      %v946 = vmul.f32 %v936, 1.442695
      %v947 = vpow.pop %v946
      %v948 = vmul.f32 %v937, 1.442695
      %v949 = vpow.pop %v948
      %v950 = vmul.f32 %v938, 1.442695
      %v951 = vpow.pop %v950
      %v952 = vmul.f32 %v939, 1.442695
      %v953 = vpow.pop %v952
      %v954 = vmul.f32 %v940, 1.442695
      %v955 = vpow.pop %v954
      %v956 = vmul.f32 %v941, 1.442695
      %v957 = vpow.pop %v956
      %v958 = vsel %vm885, %v943, 0.0
      %v959 = vsel %vm885, %v945, 0.0
      %v960 = vadd.f32 %v958, %v959
      %v961 = vsel %vm885, %v947, 0.0
      %v962 = vadd.f32 %v960, %v961
      %v963 = vsel %vm885, %v949, 0.0
      %v964 = vadd.f32 %v962, %v963
      %v965 = vsel %vm885, %v951, 0.0
      %v966 = vadd.f32 %v964, %v965
      %v967 = vsel %vm885, %v953, 0.0
      %v968 = vadd.f32 %v966, %v967
      %v969 = vsel %vm885, %v955, 0.0
      %v970 = vadd.f32 %v968, %v969
      %v971 = vsel %vm885, %v957, 0.0
      %v972 = vadd.f32 %v970, %v971
      %v973 = vrcp.pop %v972
      %v974 = vmul.f32 %v943, %v973
      %v975 = vmul.f32 %v945, %v973
      %v976 = vmul.f32 %v947, %v973
      %v977 = vmul.f32 %v949, %v973
      %v978 = vmul.f32 %v951, %v973
      %v979 = vmul.f32 %v953, %v973
      %v980 = vmul.f32 %v955, %v973
      %v981 = vmul.f32 %v957, %v973
      %v982 = vld [vmem:[%s1] sm:$0x3]
      %v983 = vld [vmem:[%s1 + $0x2] sm:$0x3]
      %v984 = vld [vmem:[%s1 + $0x4] sm:$0x3]
      %v985 = vld [vmem:[%s1 + $0x6] sm:$0x3]
      %v986 = vld [vmem:[%s1 + $0x8] sm:$0x3]
      %v987 = vld [vmem:[%s1 + $0xa] sm:$0x3]
      %v988 = vld [vmem:[%s1 + $0xc] sm:$0x3]
      %v989 = vld [vmem:[%s1 + $0xe] sm:$0x3]
      %v990 = vmul.f32 %v974, %v982
      %v991 = vmul.f32 %v975, %v983
      %v992 = vmul.f32 %v976, %v984
      %v993 = vmul.f32 %v977, %v985
      %v994 = vmul.f32 %v978, %v986
      %v995 = vmul.f32 %v979, %v987
      %v996 = vmul.f32 %v980, %v988
      %v997 = vmul.f32 %v981, %v989
      %v998 = vsel %vm885, %v990, 0.0
      %v999 = vsel %vm885, %v991, 0.0
      %v1000 = vadd.f32 %v998, %v999
      %v1001 = vsel %vm885, %v992, 0.0
      %v1002 = vadd.f32 %v1000, %v1001
      %v1003 = vsel %vm885, %v993, 0.0
      %v1004 = vadd.f32 %v1002, %v1003
      %v1005 = vsel %vm885, %v994, 0.0
      %v1006 = vadd.f32 %v1004, %v1005
      %v1007 = vsel %vm885, %v995, 0.0
      %v1008 = vadd.f32 %v1006, %v1007
      %v1009 = vsel %vm885, %v996, 0.0
      %v1010 = vadd.f32 %v1008, %v1009
      %v1011 = vsel %vm885, %v997, 0.0
      %v1012 = vadd.f32 %v1010, %v1011
      %v1013 = vld [vmem:[%s2] sm:$0x3]
      %v1014 = vld [vmem:[%s2 + $0x2] sm:$0x3]
      %v1015 = vld [vmem:[%s2 + $0x4] sm:$0x3]
      %v1016 = vld [vmem:[%s2 + $0x6] sm:$0x3]
      %v1017 = vld [vmem:[%s2 + $0x8] sm:$0x3]
      %v1018 = vld [vmem:[%s2 + $0xa] sm:$0x3]
      %v1019 = vld [vmem:[%s2 + $0xc] sm:$0x3]
      %v1020 = vld [vmem:[%s2 + $0xe] sm:$0x3]
      %v1021 = vmul.f32 %v974, %v1013
      %v1022 = vmul.f32 %v975, %v1014
      %v1023 = vmul.f32 %v976, %v1015
      %v1024 = vmul.f32 %v977, %v1016
      %v1025 = vmul.f32 %v978, %v1017
      %v1026 = vmul.f32 %v979, %v1018
      %v1027 = vmul.f32 %v980, %v1019
      %v1028 = vmul.f32 %v981, %v1020
      %v1029 = vsel %vm885, %v1021, 0.0
      %v1030 = vsel %vm885, %v1022, 0.0
      %v1031 = vadd.f32 %v1029, %v1030
      %v1032 = vsel %vm885, %v1023, 0.0
      %v1033 = vadd.f32 %v1031, %v1032
      %v1034 = vsel %vm885, %v1024, 0.0
      %v1035 = vadd.f32 %v1033, %v1034
      %v1036 = vsel %vm885, %v1025, 0.0
      %v1037 = vadd.f32 %v1035, %v1036
      %v1038 = vsel %vm885, %v1026, 0.0
      %v1039 = vadd.f32 %v1037, %v1038
      %v1040 = vsel %vm885, %v1027, 0.0
      %v1041 = vadd.f32 %v1039, %v1040
      %v1042 = vsel %vm885, %v1028, 0.0
      %v1043 = vadd.f32 %v1041, %v1042
      %s1044 = sld [smem:[#allocation7 + %s453]]
      %p1045 = scmp.ne.s32.totalorder %s1044, 0
      %s1046 = scalar_select %p1045, 1, 0
      %s1047 = scvt.s32.f32 %s1046
      %s1048 = smul.u32 %s453, 2
      %s1049 = scalar_lea.vmem %s3, %s1048
      %v1050 = vld [vmem:[%s1049] sm:$0x3]
      %v1051 = vstv %s1047
      %v1052 = vmul.f32 %v1051, %v1050
      %s1053 = ssub.f32 1.0, %s1047
      %v1054 = vld [vmem:[#allocation4] sm:$0x3]
      %v1055 = vstv %s1053
      %v1056 = vmul.f32 %v1055, %v1054
      %v1057 = vadd.f32 %v1052, %v1056
      %v1058 = vpack.c.bf16 %v1012, %v1012
      %v1059 = vpack.c.bf16 %v1043, %v1043
      %v1060 = vpack.c.bf16 %v1057, %v1057
      %v1061 = vld [vmem:[%s11] sm:$0xff]
      %v1062 = vld [vmem:[%s11 + $0x8] sm:$0xff]
      %v1063 = vld [vmem:[%s11 + $0x10] sm:$0xff]
      %v1064 = vld [vmem:[%s11 + $0x18] sm:$0xff]
      %v1065 = vld [vmem:[%s11 + $0x20] sm:$0xff]
      %v1066 = vld [vmem:[%s11 + $0x28] sm:$0xff]
      %v1067 = vld [vmem:[%s11 + $0x30] sm:$0xff]
      %v1068 = vld [vmem:[%s11 + $0x38] sm:$0xff]
      %v1069 = vld [vmem:[%s11 + $0x40] sm:$0xff]
      %v1070 = vld [vmem:[%s11 + $0x48] sm:$0xff]
      %v1071 = vld [vmem:[%s11 + $0x50] sm:$0xff]
      %v1072 = vld [vmem:[%s11 + $0x58] sm:$0xff]
      %v1073 = vld [vmem:[%s11 + $0x60] sm:$0xff]
      %v1074 = vld [vmem:[%s11 + $0x68] sm:$0xff]
      %v1075 = vld [vmem:[%s11 + $0x70] sm:$0xff]
      %v1076 = vld [vmem:[%s11 + $0x78] sm:$0xff]
      %v1077 = vld [vmem:[%s11 + $0x80] sm:$0xff]
      %v1078 = vld [vmem:[%s11 + $0x88] sm:$0xff]
      %v1079 = vld [vmem:[%s11 + $0x90] sm:$0xff]
      %v1080 = vld [vmem:[%s11 + $0x98] sm:$0xff]
      %v1081 = vld [vmem:[%s11 + $0xa0] sm:$0xff]
      %v1082 = vld [vmem:[%s11 + $0xa8] sm:$0xff]
      %v1083 = vld [vmem:[%s11 + $0xb0] sm:$0xff]
      %v1084 = vld [vmem:[%s11 + $0xb8] sm:$0xff]
      %v1085 = vld [vmem:[%s11 + $0xc0] sm:$0xff]
      %v1086 = vld [vmem:[%s11 + $0xc8] sm:$0xff]
      %v1087 = vld [vmem:[%s11 + $0xd0] sm:$0xff]
      %v1088 = vld [vmem:[%s11 + $0xd8] sm:$0xff]
      %v1089 = vld [vmem:[%s11 + $0xe0] sm:$0xff]
      %v1090 = vld [vmem:[%s11 + $0xe8] sm:$0xff]
      %v1091 = vld [vmem:[%s11 + $0xf0] sm:$0xff]
      %v1092 = vld [vmem:[%s11 + $0xf8] sm:$0xff]
      %v1093 = vld [vmem:[%s11 + $0x100] sm:$0xff]
      %v1094 = vld [vmem:[%s11 + $0x108] sm:$0xff]
      %v1095 = vld [vmem:[%s11 + $0x110] sm:$0xff]
      %v1096 = vld [vmem:[%s11 + $0x118] sm:$0xff]
      %v1097 = vld [vmem:[%s11 + $0x120] sm:$0xff]
      %v1098 = vld [vmem:[%s11 + $0x128] sm:$0xff]
      %v1099 = vld [vmem:[%s11 + $0x130] sm:$0xff]
      %v1100 = vld [vmem:[%s11 + $0x138] sm:$0xff]
      %v1101 = vld [vmem:[%s11 + $0x140] sm:$0xff]
      %v1102 = vld [vmem:[%s11 + $0x148] sm:$0xff]
      %v1103 = vld [vmem:[%s11 + $0x150] sm:$0xff]
      %v1104 = vld [vmem:[%s11 + $0x158] sm:$0xff]
      %v1105 = vld [vmem:[%s11 + $0x160] sm:$0xff]
      %v1106 = vld [vmem:[%s11 + $0x168] sm:$0xff]
      %v1107 = vld [vmem:[%s11 + $0x170] sm:$0xff]
      %v1108 = vld [vmem:[%s11 + $0x178] sm:$0xff]
      %v1109 = vld [vmem:[%s11 + $0x180] sm:$0xff]
      %v1110 = vld [vmem:[%s11 + $0x188] sm:$0xff]
      %v1111 = vld [vmem:[%s11 + $0x190] sm:$0xff]
      %v1112 = vld [vmem:[%s11 + $0x198] sm:$0xff]
      %v1113 = vld [vmem:[%s11 + $0x1a0] sm:$0xff]
      %v1114 = vld [vmem:[%s11 + $0x1a8] sm:$0xff]
      %v1115 = vld [vmem:[%s11 + $0x1b0] sm:$0xff]
      %v1116 = vld [vmem:[%s11 + $0x1b8] sm:$0xff]
      %v1117 = vld [vmem:[%s11 + $0x1c0] sm:$0xff]
      %v1118 = vld [vmem:[%s11 + $0x1c8] sm:$0xff]
      %v1119 = vld [vmem:[%s11 + $0x1d0] sm:$0xff]
      %v1120 = vld [vmem:[%s11 + $0x1d8] sm:$0xff]
      %v1121 = vld [vmem:[%s11 + $0x1e0] sm:$0xff]
      %v1122 = vld [vmem:[%s11 + $0x1e8] sm:$0xff]
      %v1123 = vld [vmem:[%s11 + $0x1f0] sm:$0xff]
      %v1124 = vld [vmem:[%s11 + $0x1f8] sm:$0xff]
      %v1125 = vld [vmem:[%s11 + $0x200] sm:$0xff]
      %v1126 = vld [vmem:[%s11 + $0x208] sm:$0xff]
      %v1127 = vld [vmem:[%s11 + $0x210] sm:$0xff]
      %v1128 = vld [vmem:[%s11 + $0x218] sm:$0xff]
      %v1129 = vld [vmem:[%s11 + $0x220] sm:$0xff]
      %v1130 = vld [vmem:[%s11 + $0x228] sm:$0xff]
      %v1131 = vld [vmem:[%s11 + $0x230] sm:$0xff]
      %v1132 = vld [vmem:[%s11 + $0x238] sm:$0xff]
      %v1133 = vld [vmem:[%s11 + $0x240] sm:$0xff]
      %v1134 = vld [vmem:[%s11 + $0x248] sm:$0xff]
      %v1135 = vld [vmem:[%s11 + $0x250] sm:$0xff]
      %v1136 = vld [vmem:[%s11 + $0x258] sm:$0xff]
      %v1137 = vld [vmem:[%s11 + $0x260] sm:$0xff]
      %v1138 = vld [vmem:[%s11 + $0x268] sm:$0xff]
      %v1139 = vld [vmem:[%s11 + $0x270] sm:$0xff]
      %v1140 = vld [vmem:[%s11 + $0x278] sm:$0xff]
      %v1141 = vld [vmem:[%s11 + $0x280] sm:$0xff]
      %v1142 = vld [vmem:[%s11 + $0x288] sm:$0xff]
      %v1143 = vld [vmem:[%s11 + $0x290] sm:$0xff]
      %v1144 = vld [vmem:[%s11 + $0x298] sm:$0xff]
      %v1145 = vld [vmem:[%s11 + $0x2a0] sm:$0xff]
      %v1146 = vld [vmem:[%s11 + $0x2a8] sm:$0xff]
      %v1147 = vld [vmem:[%s11 + $0x2b0] sm:$0xff]
      %v1148 = vld [vmem:[%s11 + $0x2b8] sm:$0xff]
      %v1149 = vld [vmem:[%s11 + $0x2c0] sm:$0xff]
      %v1150 = vld [vmem:[%s11 + $0x2c8] sm:$0xff]
      %v1151 = vld [vmem:[%s11 + $0x2d0] sm:$0xff]
      %v1152 = vld [vmem:[%s11 + $0x2d8] sm:$0xff]
      %v1153 = vld [vmem:[%s11 + $0x2e0] sm:$0xff]
      %v1154 = vld [vmem:[%s11 + $0x2e8] sm:$0xff]
      %v1155 = vld [vmem:[%s11 + $0x2f0] sm:$0xff]
      %v1156 = vld [vmem:[%s11 + $0x2f8] sm:$0xff]
      %v1253 = vunpack.c.l.b16 %v1061
      %v1254 = vunpack.c.h.b16 %v1061
      %v1255 = vunpack.c.l.b16 %v1062
      %v1256 = vunpack.c.h.b16 %v1062
      %v1257 = vunpack.c.l.b16 %v1063
      %v1258 = vunpack.c.h.b16 %v1063
      %v1259 = vunpack.c.l.b16 %v1064
      %v1260 = vunpack.c.h.b16 %v1064
      %v1261 = vunpack.c.l.b16 %v1065
      %v1262 = vunpack.c.h.b16 %v1065
      %v1263 = vunpack.c.l.b16 %v1066
      %v1264 = vunpack.c.h.b16 %v1066
      %v1265 = vunpack.c.l.b16 %v1067
      %v1266 = vunpack.c.h.b16 %v1067
      %v1267 = vunpack.c.l.b16 %v1068
      %v1268 = vunpack.c.h.b16 %v1068
      %v1269 = vunpack.c.l.b16 %v1069
      %v1270 = vunpack.c.h.b16 %v1069
      %v1271 = vunpack.c.l.b16 %v1070
      %v1272 = vunpack.c.h.b16 %v1070
      %v1273 = vunpack.c.l.b16 %v1071
      %v1274 = vunpack.c.h.b16 %v1071
      %v1275 = vunpack.c.l.b16 %v1072
      %v1276 = vunpack.c.h.b16 %v1072
      %v1277 = vunpack.c.l.b16 %v1073
      %v1278 = vunpack.c.h.b16 %v1073
      %v1279 = vunpack.c.l.b16 %v1074
      %v1280 = vunpack.c.h.b16 %v1074
      %v1281 = vunpack.c.l.b16 %v1075
      %v1282 = vunpack.c.h.b16 %v1075
      %v1283 = vunpack.c.l.b16 %v1076
      %v1284 = vunpack.c.h.b16 %v1076
      %v1285 = vunpack.c.l.b16 %v1077
      %v1286 = vunpack.c.h.b16 %v1077
      %v1287 = vunpack.c.l.b16 %v1078
      %v1288 = vunpack.c.h.b16 %v1078
      %v1289 = vunpack.c.l.b16 %v1079
      %v1290 = vunpack.c.h.b16 %v1079
      %v1291 = vunpack.c.l.b16 %v1080
      %v1292 = vunpack.c.h.b16 %v1080
      %v1293 = vunpack.c.l.b16 %v1081
      %v1294 = vunpack.c.h.b16 %v1081
      %v1295 = vunpack.c.l.b16 %v1082
      %v1296 = vunpack.c.h.b16 %v1082
      %v1297 = vunpack.c.l.b16 %v1083
      %v1298 = vunpack.c.h.b16 %v1083
      %v1299 = vunpack.c.l.b16 %v1084
      %v1300 = vunpack.c.h.b16 %v1084
      %v1301 = vunpack.c.l.b16 %v1085
      %v1302 = vunpack.c.h.b16 %v1085
      %v1303 = vunpack.c.l.b16 %v1086
      %v1304 = vunpack.c.h.b16 %v1086
      %v1305 = vunpack.c.l.b16 %v1087
      %v1306 = vunpack.c.h.b16 %v1087
      %v1307 = vunpack.c.l.b16 %v1088
      %v1308 = vunpack.c.h.b16 %v1088
      %v1309 = vunpack.c.l.b16 %v1089
      %v1310 = vunpack.c.h.b16 %v1089
      %v1311 = vunpack.c.l.b16 %v1090
      %v1312 = vunpack.c.h.b16 %v1090
      %v1313 = vunpack.c.l.b16 %v1091
      %v1314 = vunpack.c.h.b16 %v1091
      %v1315 = vunpack.c.l.b16 %v1092
      %v1316 = vunpack.c.h.b16 %v1092
      %v1317 = vunpack.c.l.b16 %v1093
      %v1318 = vunpack.c.h.b16 %v1093
      %v1319 = vunpack.c.l.b16 %v1094
      %v1320 = vunpack.c.h.b16 %v1094
      %v1321 = vunpack.c.l.b16 %v1095
      %v1322 = vunpack.c.h.b16 %v1095
      %v1323 = vunpack.c.l.b16 %v1096
      %v1324 = vunpack.c.h.b16 %v1096
      %v1325 = vunpack.c.l.b16 %v1097
      %v1326 = vunpack.c.h.b16 %v1097
      %v1327 = vunpack.c.l.b16 %v1098
      %v1328 = vunpack.c.h.b16 %v1098
      %v1329 = vunpack.c.l.b16 %v1099
      %v1330 = vunpack.c.h.b16 %v1099
      %v1331 = vunpack.c.l.b16 %v1100
      %v1332 = vunpack.c.h.b16 %v1100
      %v1333 = vunpack.c.l.b16 %v1101
      %v1334 = vunpack.c.h.b16 %v1101
      %v1335 = vunpack.c.l.b16 %v1102
      %v1336 = vunpack.c.h.b16 %v1102
      %v1337 = vunpack.c.l.b16 %v1103
      %v1338 = vunpack.c.h.b16 %v1103
      %v1339 = vunpack.c.l.b16 %v1104
      %v1340 = vunpack.c.h.b16 %v1104
      %v1341 = vunpack.c.l.b16 %v1105
      %v1342 = vunpack.c.h.b16 %v1105
      %v1343 = vunpack.c.l.b16 %v1106
      %v1344 = vunpack.c.h.b16 %v1106
      %v1345 = vunpack.c.l.b16 %v1107
      %v1346 = vunpack.c.h.b16 %v1107
      %v1347 = vunpack.c.l.b16 %v1108
      %v1348 = vunpack.c.h.b16 %v1108
      %v1349 = vunpack.c.l.b16 %v1109
      %v1350 = vunpack.c.h.b16 %v1109
      %v1351 = vunpack.c.l.b16 %v1110
      %v1352 = vunpack.c.h.b16 %v1110
      %v1353 = vunpack.c.l.b16 %v1111
      %v1354 = vunpack.c.h.b16 %v1111
      %v1355 = vunpack.c.l.b16 %v1112
      %v1356 = vunpack.c.h.b16 %v1112
      %v1357 = vunpack.c.l.b16 %v1113
      %v1358 = vunpack.c.h.b16 %v1113
      %v1359 = vunpack.c.l.b16 %v1114
      %v1360 = vunpack.c.h.b16 %v1114
      %v1361 = vunpack.c.l.b16 %v1115
      %v1362 = vunpack.c.h.b16 %v1115
      %v1363 = vunpack.c.l.b16 %v1116
      %v1364 = vunpack.c.h.b16 %v1116
      %v1365 = vunpack.c.l.b16 %v1117
      %v1366 = vunpack.c.h.b16 %v1117
      %v1367 = vunpack.c.l.b16 %v1118
      %v1368 = vunpack.c.h.b16 %v1118
      %v1369 = vunpack.c.l.b16 %v1119
      %v1370 = vunpack.c.h.b16 %v1119
      %v1371 = vunpack.c.l.b16 %v1120
      %v1372 = vunpack.c.h.b16 %v1120
      %v1373 = vunpack.c.l.b16 %v1121
      %v1374 = vunpack.c.h.b16 %v1121
      %v1375 = vunpack.c.l.b16 %v1122
      %v1376 = vunpack.c.h.b16 %v1122
      %v1377 = vunpack.c.l.b16 %v1123
      %v1378 = vunpack.c.h.b16 %v1123
      %v1379 = vunpack.c.l.b16 %v1124
      %v1380 = vunpack.c.h.b16 %v1124
      %v1381 = vunpack.c.l.b16 %v1125
      %v1382 = vunpack.c.h.b16 %v1125
      %v1383 = vunpack.c.l.b16 %v1126
      %v1384 = vunpack.c.h.b16 %v1126
      %v1385 = vunpack.c.l.b16 %v1127
      %v1386 = vunpack.c.h.b16 %v1127
      %v1387 = vunpack.c.l.b16 %v1128
      %v1388 = vunpack.c.h.b16 %v1128
      %v1389 = vunpack.c.l.b16 %v1129
      %v1390 = vunpack.c.h.b16 %v1129
      %v1391 = vunpack.c.l.b16 %v1130
      %v1392 = vunpack.c.h.b16 %v1130
      %v1393 = vunpack.c.l.b16 %v1131
      %v1394 = vunpack.c.h.b16 %v1131
      %v1395 = vunpack.c.l.b16 %v1132
      %v1396 = vunpack.c.h.b16 %v1132
      %v1397 = vunpack.c.l.b16 %v1133
      %v1398 = vunpack.c.h.b16 %v1133
      %v1399 = vunpack.c.l.b16 %v1134
      %v1400 = vunpack.c.h.b16 %v1134
      %v1401 = vunpack.c.l.b16 %v1135
      %v1402 = vunpack.c.h.b16 %v1135
      %v1403 = vunpack.c.l.b16 %v1136
      %v1404 = vunpack.c.h.b16 %v1136
      %v1405 = vunpack.c.l.b16 %v1137
      %v1406 = vunpack.c.h.b16 %v1137
      %v1407 = vunpack.c.l.b16 %v1138
      %v1408 = vunpack.c.h.b16 %v1138
      %v1409 = vunpack.c.l.b16 %v1139
      %v1410 = vunpack.c.h.b16 %v1139
      %v1411 = vunpack.c.l.b16 %v1140
      %v1412 = vunpack.c.h.b16 %v1140
      %v1413 = vunpack.c.l.b16 %v1141
      %v1414 = vunpack.c.h.b16 %v1141
      %v1415 = vunpack.c.l.b16 %v1142
      %v1416 = vunpack.c.h.b16 %v1142
      %v1417 = vunpack.c.l.b16 %v1143
      %v1418 = vunpack.c.h.b16 %v1143
      %v1419 = vunpack.c.l.b16 %v1144
      %v1420 = vunpack.c.h.b16 %v1144
      %v1421 = vunpack.c.l.b16 %v1145
      %v1422 = vunpack.c.h.b16 %v1145
      %v1423 = vunpack.c.l.b16 %v1146
      %v1424 = vunpack.c.h.b16 %v1146
      %v1425 = vunpack.c.l.b16 %v1147
      %v1426 = vunpack.c.h.b16 %v1147
      %v1427 = vunpack.c.l.b16 %v1148
      %v1428 = vunpack.c.h.b16 %v1148
      %v1429 = vunpack.c.l.b16 %v1149
      %v1430 = vunpack.c.h.b16 %v1149
      %v1431 = vunpack.c.l.b16 %v1150
      %v1432 = vunpack.c.h.b16 %v1150
      %v1433 = vunpack.c.l.b16 %v1151
      %v1434 = vunpack.c.h.b16 %v1151
      %v1435 = vunpack.c.l.b16 %v1152
      %v1436 = vunpack.c.h.b16 %v1152
      %v1437 = vunpack.c.l.b16 %v1153
      %v1438 = vunpack.c.h.b16 %v1153
      %v1439 = vunpack.c.l.b16 %v1154
      %v1440 = vunpack.c.h.b16 %v1154
      %v1441 = vunpack.c.l.b16 %v1155
      %v1442 = vunpack.c.h.b16 %v1155
      %v1443 = vunpack.c.l.b16 %v1156
      %v1444 = vunpack.c.h.b16 %v1156
      %v1445 = vpack.c.b16 %v1257, %v1253
      %v1446 = vpack.c.b16 %v1258, %v1254
      %v1447 = vpack.c.b16 %v1259, %v1255
      %v1448 = vpack.c.b16 %v1260, %v1256
      %v1449 = vpack.c.b16 %v1265, %v1261
      %v1450 = vpack.c.b16 %v1266, %v1262
      %v1451 = vpack.c.b16 %v1267, %v1263
      %v1452 = vpack.c.b16 %v1268, %v1264
      %v1453 = vpack.c.b16 %v1273, %v1269
      %v1454 = vpack.c.b16 %v1274, %v1270
      %v1455 = vpack.c.b16 %v1275, %v1271
      %v1456 = vpack.c.b16 %v1276, %v1272
      %v1457 = vpack.c.b16 %v1281, %v1277
      %v1458 = vpack.c.b16 %v1282, %v1278
      %v1459 = vpack.c.b16 %v1283, %v1279
      %v1460 = vpack.c.b16 %v1284, %v1280
      %v1461 = vpack.c.b16 %v1289, %v1285
      %v1462 = vpack.c.b16 %v1290, %v1286
      %v1463 = vpack.c.b16 %v1291, %v1287
      %v1464 = vpack.c.b16 %v1292, %v1288
      %v1465 = vpack.c.b16 %v1297, %v1293
      %v1466 = vpack.c.b16 %v1298, %v1294
      %v1467 = vpack.c.b16 %v1299, %v1295
      %v1468 = vpack.c.b16 %v1300, %v1296
      %v1469 = vpack.c.b16 %v1305, %v1301
      %v1470 = vpack.c.b16 %v1306, %v1302
      %v1471 = vpack.c.b16 %v1307, %v1303
      %v1472 = vpack.c.b16 %v1308, %v1304
      %v1473 = vpack.c.b16 %v1313, %v1309
      %v1474 = vpack.c.b16 %v1314, %v1310
      %v1475 = vpack.c.b16 %v1315, %v1311
      %v1476 = vpack.c.b16 %v1316, %v1312
      %v1477 = vpack.c.b16 %v1321, %v1317
      %v1478 = vpack.c.b16 %v1322, %v1318
      %v1479 = vpack.c.b16 %v1323, %v1319
      %v1480 = vpack.c.b16 %v1324, %v1320
      %v1481 = vpack.c.b16 %v1329, %v1325
      %v1482 = vpack.c.b16 %v1330, %v1326
      %v1483 = vpack.c.b16 %v1331, %v1327
      %v1484 = vpack.c.b16 %v1332, %v1328
      %v1485 = vpack.c.b16 %v1337, %v1333
      %v1486 = vpack.c.b16 %v1338, %v1334
      %v1487 = vpack.c.b16 %v1339, %v1335
      %v1488 = vpack.c.b16 %v1340, %v1336
      %v1489 = vpack.c.b16 %v1345, %v1341
      %v1490 = vpack.c.b16 %v1346, %v1342
      %v1491 = vpack.c.b16 %v1347, %v1343
      %v1492 = vpack.c.b16 %v1348, %v1344
      %v1493 = vpack.c.b16 %v1353, %v1349
      %v1494 = vpack.c.b16 %v1354, %v1350
      %v1495 = vpack.c.b16 %v1355, %v1351
      %v1496 = vpack.c.b16 %v1356, %v1352
      %v1497 = vpack.c.b16 %v1361, %v1357
      %v1498 = vpack.c.b16 %v1362, %v1358
      %v1499 = vpack.c.b16 %v1363, %v1359
      %v1500 = vpack.c.b16 %v1364, %v1360
      %v1501 = vpack.c.b16 %v1369, %v1365
      %v1502 = vpack.c.b16 %v1370, %v1366
      %v1503 = vpack.c.b16 %v1371, %v1367
      %v1504 = vpack.c.b16 %v1372, %v1368
      %v1505 = vpack.c.b16 %v1377, %v1373
      %v1506 = vpack.c.b16 %v1378, %v1374
      %v1507 = vpack.c.b16 %v1379, %v1375
      %v1508 = vpack.c.b16 %v1380, %v1376
      %v1509 = vpack.c.b16 %v1385, %v1381
      %v1510 = vpack.c.b16 %v1386, %v1382
      %v1511 = vpack.c.b16 %v1387, %v1383
      %v1512 = vpack.c.b16 %v1388, %v1384
      %v1513 = vpack.c.b16 %v1393, %v1389
      %v1514 = vpack.c.b16 %v1394, %v1390
      %v1515 = vpack.c.b16 %v1395, %v1391
      %v1516 = vpack.c.b16 %v1396, %v1392
      %v1517 = vpack.c.b16 %v1401, %v1397
      %v1518 = vpack.c.b16 %v1402, %v1398
      %v1519 = vpack.c.b16 %v1403, %v1399
      %v1520 = vpack.c.b16 %v1404, %v1400
      %v1521 = vpack.c.b16 %v1409, %v1405
      %v1522 = vpack.c.b16 %v1410, %v1406
      %v1523 = vpack.c.b16 %v1411, %v1407
      %v1524 = vpack.c.b16 %v1412, %v1408
      %v1525 = vpack.c.b16 %v1417, %v1413
      %v1526 = vpack.c.b16 %v1418, %v1414
      %v1527 = vpack.c.b16 %v1419, %v1415
      %v1528 = vpack.c.b16 %v1420, %v1416
      %v1529 = vpack.c.b16 %v1425, %v1421
      %v1530 = vpack.c.b16 %v1426, %v1422
      %v1531 = vpack.c.b16 %v1427, %v1423
      %v1532 = vpack.c.b16 %v1428, %v1424
      %v1533 = vpack.c.b16 %v1433, %v1429
      %v1534 = vpack.c.b16 %v1434, %v1430
      %v1535 = vpack.c.b16 %v1435, %v1431
      %v1536 = vpack.c.b16 %v1436, %v1432
      %v1537 = vpack.c.b16 %v1441, %v1437
      %v1538 = vpack.c.b16 %v1442, %v1438
      %v1539 = vpack.c.b16 %v1443, %v1439
      %v1540 = vpack.c.b16 %v1444, %v1440
      %1637 = vmatprep.subr.bf16.mxu0 %v1446
      %1638 = vmatpush1.bf16.msra.mxu0 %v1445
      %1639 = vmatprep.subr.bf16.mxu0 %v1450
      %1640 = vmatpush1.bf16.msra.mxu0 %v1449
      %1641 = vmatprep.subr.bf16.mxu0 %v1454
      %1642 = vmatpush1.bf16.msra.mxu0 %v1453
      %1643 = vmatprep.subr.bf16.mxu0 %v1458
      %1644 = vmatpush1.bf16.msra.mxu0 %v1457
      %1645 = vmatprep.subr.bf16.mxu0 %v1462
      %1646 = vmatpush1.bf16.msra.mxu0 %v1461
      %1647 = vmatprep.subr.bf16.mxu0 %v1466
      %1648 = vmatpush1.bf16.msra.mxu0 %v1465
      %1649 = vmatprep.subr.bf16.mxu0 %v1470
      %1650 = vmatpush1.bf16.msra.mxu0 %v1469
      %1651 = vmatprep.subr.bf16.mxu0 %v1474
      %1652 = vmatpush1.bf16.msra.mxu0 %v1473
      %1653 = vmatprep.subr.bf16.mxu0 %v1478
      %1654 = vmatpush1.bf16.msra.mxu0 %v1477
      %1655 = vmatprep.subr.bf16.mxu0 %v1482
      %1656 = vmatpush1.bf16.msra.mxu0 %v1481
      %1657 = vmatprep.subr.bf16.mxu0 %v1486
      %1658 = vmatpush1.bf16.msra.mxu0 %v1485
      %1659 = vmatprep.subr.bf16.mxu0 %v1490
      %1660 = vmatpush1.bf16.msra.mxu0 %v1489
      %1661 = vmatprep.subr.bf16.mxu0 %v1494
      %1662 = vmatpush1.bf16.msra.mxu0 %v1493
      %1663 = vmatprep.subr.bf16.mxu0 %v1498
      %1664 = vmatpush1.bf16.msra.mxu0 %v1497
      %1665 = vmatprep.subr.bf16.mxu0 %v1502
      %1666 = vmatpush1.bf16.msra.mxu0 %v1501
      %1667 = vmatprep.subr.bf16.mxu0 %v1506
      %1668 = vmatpush1.bf16.msra.mxu0 %v1505
      %1669 = vmatprep.mubr.bf16.mxu0 %v1059
      %1670 = vmatmul.mubr.bf16.gmra.mrb[0].mxu0 %v1058
      %v1671 = vpop.f32.mrb[0].mxu0
      %v1672 = vadd.f32 %v753, %v1671
      %v1673 = vpop.f32.mrb[0].mxu0
      %v1674 = vadd.f32 %v792, %v1673
      %v1675 = vpop.f32.mrb[0].mxu0
      %v1676 = vpop.f32.mrb[0].mxu0
      %1677 = vdwg.mxu0
      %1678 = vmatprep.subr.bf16.mxu0 %v1510
      %1679 = vmatpush1.bf16.msra.mxu0 %v1509
      %1680 = vmatprep.subr.bf16.mxu0 %v1514
      %1681 = vmatpush1.bf16.msra.mxu0 %v1513
      %1682 = vmatprep.subr.bf16.mxu0 %v1518
      %1683 = vmatpush1.bf16.msra.mxu0 %v1517
      %1684 = vmatprep.subr.bf16.mxu0 %v1522
      %1685 = vmatpush1.bf16.msra.mxu0 %v1521
      %1686 = vmatprep.subr.bf16.mxu0 %v1526
      %1687 = vmatpush1.bf16.msra.mxu0 %v1525
      %1688 = vmatprep.subr.bf16.mxu0 %v1530
      %1689 = vmatpush1.bf16.msra.mxu0 %v1529
      %1690 = vmatprep.subr.bf16.mxu0 %v1534
      %1691 = vmatpush1.bf16.msra.mxu0 %v1533
      %1692 = vmatprep.subr.bf16.mxu0 %v1538
      %1693 = vmatpush1.bf16.msra.mxu0 %v1537
      %1694 = vmatprep.subr.bf16.mxu0 0
      %1695 = vmatpush1.bf16.msra.mxu0 0
      %1696 = vmatprep.subr.bf16.mxu0 0
      %1697 = vmatpush1.bf16.msra.mxu0 0
      %1698 = vmatprep.subr.bf16.mxu0 0
      %1699 = vmatpush1.bf16.msra.mxu0 0
      %1700 = vmatprep.subr.bf16.mxu0 0
      %1701 = vmatpush1.bf16.msra.mxu0 0
      %1702 = vmatprep.subr.bf16.mxu0 0
      %1703 = vmatpush1.bf16.msra.mxu0 0
      %1704 = vmatprep.subr.bf16.mxu0 0
      %1705 = vmatpush1.bf16.msra.mxu0 0
      %1706 = vmatprep.subr.bf16.mxu0 0
      %1707 = vmatpush1.bf16.msra.mxu0 0
      %1708 = vmatprep.subr.bf16.mxu0 0
      %1709 = vmatpush1.bf16.msra.mxu0 0
      %1710 = vmatprep.mubr.bf16.mxu0 0
      %1711 = vmatmul.mubr.bf16.gmra.mrb[0].mxu0 %v1060
      %v1712 = vpop.f32.mrb[0].mxu0
      %v1713 = vadd.f32 %v1672, %v1712
      %v1714 = vpop.f32.mrb[0].mxu0
      %v1715 = vadd.f32 %v1674, %v1714
      %v1716 = vpop.f32.mrb[0].mxu0
      %v1717 = vpop.f32.mrb[0].mxu0
      %1718 = vdwg.mxu0
      %1719 = vmatprep.subr.bf16.mxu0 %v1448
      %1720 = vmatpush1.bf16.msra.mxu0 %v1447
      %1721 = vmatprep.subr.bf16.mxu0 %v1452
      %1722 = vmatpush1.bf16.msra.mxu0 %v1451
      %1723 = vmatprep.subr.bf16.mxu0 %v1456
      %1724 = vmatpush1.bf16.msra.mxu0 %v1455
      %1725 = vmatprep.subr.bf16.mxu0 %v1460
      %1726 = vmatpush1.bf16.msra.mxu0 %v1459
      %1727 = vmatprep.subr.bf16.mxu0 %v1464
      %1728 = vmatpush1.bf16.msra.mxu0 %v1463
      %1729 = vmatprep.subr.bf16.mxu0 %v1468
      %1730 = vmatpush1.bf16.msra.mxu0 %v1467
      %1731 = vmatprep.subr.bf16.mxu0 %v1472
      %1732 = vmatpush1.bf16.msra.mxu0 %v1471
      %1733 = vmatprep.subr.bf16.mxu0 %v1476
      %1734 = vmatpush1.bf16.msra.mxu0 %v1475
      %1735 = vmatprep.subr.bf16.mxu0 %v1480
      %1736 = vmatpush1.bf16.msra.mxu0 %v1479
      %1737 = vmatprep.subr.bf16.mxu0 %v1484
      %1738 = vmatpush1.bf16.msra.mxu0 %v1483
      %1739 = vmatprep.subr.bf16.mxu0 %v1488
      %1740 = vmatpush1.bf16.msra.mxu0 %v1487
      %1741 = vmatprep.subr.bf16.mxu0 %v1492
      %1742 = vmatpush1.bf16.msra.mxu0 %v1491
      %1743 = vmatprep.subr.bf16.mxu0 %v1496
      %1744 = vmatpush1.bf16.msra.mxu0 %v1495
      %1745 = vmatprep.subr.bf16.mxu0 %v1500
      %1746 = vmatpush1.bf16.msra.mxu0 %v1499
      %1747 = vmatprep.subr.bf16.mxu0 %v1504
      %1748 = vmatpush1.bf16.msra.mxu0 %v1503
      %1749 = vmatprep.subr.bf16.mxu0 %v1508
      %1750 = vmatpush1.bf16.msra.mxu0 %v1507
      %1751 = vmatprep.mubr.bf16.mxu0 %v1059
      %1752 = vmatmul.mubr.bf16.gmra.mrb[0].mxu0 %v1058
      %v1753 = vpop.f32.mrb[0].mxu0
      %v1754 = vadd.f32 %v794, %v1753
      %v1755 = vpop.f32.mrb[0].mxu0
      %v1756 = vadd.f32 %v833, %v1755
      %v1757 = vpop.f32.mrb[0].mxu0
      %v1758 = vpop.f32.mrb[0].mxu0
      %1759 = vdwg.mxu0
      %1760 = vmatprep.subr.bf16.mxu0 %v1512
      %1761 = vmatpush1.bf16.msra.mxu0 %v1511
      %1762 = vmatprep.subr.bf16.mxu0 %v1516
      %1763 = vmatpush1.bf16.msra.mxu0 %v1515
      %1764 = vmatprep.subr.bf16.mxu0 %v1520
      %1765 = vmatpush1.bf16.msra.mxu0 %v1519
      %1766 = vmatprep.subr.bf16.mxu0 %v1524
      %1767 = vmatpush1.bf16.msra.mxu0 %v1523
      %1768 = vmatprep.subr.bf16.mxu0 %v1528
      %1769 = vmatpush1.bf16.msra.mxu0 %v1527
      %1770 = vmatprep.subr.bf16.mxu0 %v1532
      %1771 = vmatpush1.bf16.msra.mxu0 %v1531
      %1772 = vmatprep.subr.bf16.mxu0 %v1536
      %1773 = vmatpush1.bf16.msra.mxu0 %v1535
      %1774 = vmatprep.subr.bf16.mxu0 %v1540
      %1775 = vmatpush1.bf16.msra.mxu0 %v1539
      %1776 = vmatprep.subr.bf16.mxu0 0
      %1777 = vmatpush1.bf16.msra.mxu0 0
      %1778 = vmatprep.subr.bf16.mxu0 0
      %1779 = vmatpush1.bf16.msra.mxu0 0
      %1780 = vmatprep.subr.bf16.mxu0 0
      %1781 = vmatpush1.bf16.msra.mxu0 0
      %1782 = vmatprep.subr.bf16.mxu0 0
      %1783 = vmatpush1.bf16.msra.mxu0 0
      %1784 = vmatprep.subr.bf16.mxu0 0
      %1785 = vmatpush1.bf16.msra.mxu0 0
      %1786 = vmatprep.subr.bf16.mxu0 0
      %1787 = vmatpush1.bf16.msra.mxu0 0
      %1788 = vmatprep.subr.bf16.mxu0 0
      %1789 = vmatpush1.bf16.msra.mxu0 0
      %1790 = vmatprep.subr.bf16.mxu0 0
      %1791 = vmatpush1.bf16.msra.mxu0 0
      %1792 = vmatprep.mubr.bf16.mxu0 0
      %1793 = vmatmul.mubr.bf16.gmra.mrb[0].mxu0 %v1060
      %v1794 = vpop.f32.mrb[0].mxu0
      %v1795 = vadd.f32 %v1754, %v1794
      %v1796 = vpop.f32.mrb[0].mxu0
      %v1797 = vadd.f32 %v1756, %v1796
      %v1798 = vpop.f32.mrb[0].mxu0
      %v1799 = vpop.f32.mrb[0].mxu0
      %1800 = vdwg.mxu0
      %v1801 = vld [vmem:[%s12] sm:$0xf]
      %v1803 = vlaneseq
      %v1804 = vshrl.u32 %v1803, 7
      %v1805 = vsub.s32 0, %v1804
      %v1806 = vrot.slane %v1801, %v1805
      %v1807 = vlaneseq
      %v1808 = vshrl.u32 %v1807, 7
      %v1809 = vsub.s32 1, %v1808
      %v1810 = vrot.slane %v1801, %v1809
      %v1811 = vlaneseq
      %v1812 = vshrl.u32 %v1811, 7
      %v1813 = vsub.s32 2, %v1812
      %v1814 = vrot.slane %v1801, %v1813
      %v1815 = vlaneseq
      %v1816 = vshrl.u32 %v1815, 7
      %v1817 = vsub.s32 3, %v1816
      %v1818 = vrot.slane %v1801, %v1817
      %v1823 = vadd.f32 %v1713, %v1806
      %v1824 = vadd.f32 %v1715, %v1810
      %v1825 = vadd.f32 %v1795, %v1814
      %v1826 = vadd.f32 %v1797, %v1818
      %v1827 = vxor.u32 %v1823, 2147483648
      %v1828 = vmul.f32 %v1827, 1.442695
      %v1829 = vpow.pop %v1828
      %v1830 = vadd.f32 %v1829, 1.0
      %v1831 = vrcp.pop %v1830
      %v1832 = vmul.f32 1.0, %v1831
      %v1833 = vxor.u32 %v1824, 2147483648
      %v1834 = vmul.f32 %v1833, 1.442695
      %v1835 = vpow.pop %v1834
      %v1836 = vadd.f32 %v1835, 1.0
      %v1837 = vrcp.pop %v1836
      %v1838 = vmul.f32 1.0, %v1837
      %v1839 = vtanh.pop %v1825
      %v1840 = vxor.u32 %v1826, 2147483648
      %v1841 = vmul.f32 %v1840, 1.442695
      %v1842 = vpow.pop %v1841
      %v1843 = vadd.f32 %v1842, 1.0
      %v1844 = vrcp.pop %v1843
      %v1845 = vmul.f32 1.0, %v1844
      %v1846 = vld [vmem:[#allocation3] sm:$0x3]
      %v1847 = vmul.f32 %v1838, %v1846
      %v1848 = vmul.f32 %v1832, %v1839
      %v1849 = vadd.f32 %v1847, %v1848
      %v1850 = vtanh.pop %v1849
      %v1851 = vmul.f32 %v1845, %v1850
      %1852 = vst [vmem:[#allocation2] sm:$0x3] %v1851
      %1853 = vst [vmem:[#allocation3] sm:$0x3] %v1849
      %v1854 = vpack.c.bf16 %v1851, %v1851
      %v1855 = vld [vmem:[%s13] sm:$0xf]
      %v1856 = vld [vmem:[%s13 + $0x4] sm:$0xf]
      %v1857 = vld [vmem:[%s13 + $0x8] sm:$0xf]
      %v1858 = vld [vmem:[%s13 + $0xc] sm:$0xf]
      %v1859 = vld [vmem:[%s13 + $0x10] sm:$0xf]
      %v1860 = vld [vmem:[%s13 + $0x14] sm:$0xf]
      %v1861 = vld [vmem:[%s13 + $0x18] sm:$0xf]
      %v1862 = vld [vmem:[%s13 + $0x1c] sm:$0xf]
      %v1863 = vld [vmem:[%s13 + $0x20] sm:$0xf]
      %v1864 = vld [vmem:[%s13 + $0x24] sm:$0xf]
      %v1865 = vld [vmem:[%s13 + $0x28] sm:$0xf]
      %v1866 = vld [vmem:[%s13 + $0x2c] sm:$0xf]
      %v1867 = vld [vmem:[%s13 + $0x30] sm:$0xf]
      %v1868 = vld [vmem:[%s13 + $0x34] sm:$0xf]
      %v1869 = vld [vmem:[%s13 + $0x38] sm:$0xf]
      %v1870 = vld [vmem:[%s13 + $0x3c] sm:$0xf]
      %v1871 = vld [vmem:[%s14] sm:$0x1]
      %v1873 = vlaneseq
      %v1874 = vshrl.u32 %v1873, 7
      %v1875 = vsub.s32 0, %v1874
      %v1876 = vrot.slane %v1871, %v1875
      %v1894 = vunpack.c.l.b16 %v1855
      %v1895 = vunpack.c.l.b16 %v1856
      %v1896 = vunpack.c.l.b16 %v1857
      %v1897 = vunpack.c.l.b16 %v1858
      %v1898 = vunpack.c.l.b16 %v1859
      %v1899 = vunpack.c.l.b16 %v1860
      %v1900 = vunpack.c.l.b16 %v1861
      %v1901 = vunpack.c.l.b16 %v1862
      %v1902 = vunpack.c.l.b16 %v1863
      %v1903 = vunpack.c.l.b16 %v1864
      %v1904 = vunpack.c.l.b16 %v1865
      %v1905 = vunpack.c.l.b16 %v1866
      %v1906 = vunpack.c.l.b16 %v1867
      %v1907 = vunpack.c.l.b16 %v1868
      %v1908 = vunpack.c.l.b16 %v1869
      %v1909 = vunpack.c.l.b16 %v1870
      %v1910 = vpack.c.b16 %v1895, %v1894
      %v1911 = vpack.c.b16 %v1897, %v1896
      %v1912 = vpack.c.b16 %v1899, %v1898
      %v1913 = vpack.c.b16 %v1901, %v1900
      %v1914 = vpack.c.b16 %v1903, %v1902
      %v1915 = vpack.c.b16 %v1905, %v1904
      %v1916 = vpack.c.b16 %v1907, %v1906
      %v1917 = vpack.c.b16 %v1909, %v1908
      %1926 = vmatprep.subr.bf16.mxu0 0
      %1927 = vmatpush1.bf16.msra.mxu0 %v1910
      %1928 = vmatprep.subr.bf16.mxu0 0
      %1929 = vmatpush1.bf16.msra.mxu0 %v1911
      %1930 = vmatprep.subr.bf16.mxu0 0
      %1931 = vmatpush1.bf16.msra.mxu0 %v1912
      %1932 = vmatprep.subr.bf16.mxu0 0
      %1933 = vmatpush1.bf16.msra.mxu0 %v1913
      %1934 = vmatprep.subr.bf16.mxu0 0
      %1935 = vmatpush1.bf16.msra.mxu0 %v1914
      %1936 = vmatprep.subr.bf16.mxu0 0
      %1937 = vmatpush1.bf16.msra.mxu0 %v1915
      %1938 = vmatprep.subr.bf16.mxu0 0
      %1939 = vmatpush1.bf16.msra.mxu0 %v1916
      %1940 = vmatprep.subr.bf16.mxu0 0
      %1941 = vmatpush1.bf16.msra.mxu0 %v1917
      %1942 = vmatprep.subr.bf16.mxu0 0
      %1943 = vmatpush1.bf16.msra.mxu0 0
      %1944 = vmatprep.subr.bf16.mxu0 0
      %1945 = vmatpush1.bf16.msra.mxu0 0
      %1946 = vmatprep.subr.bf16.mxu0 0
      %1947 = vmatpush1.bf16.msra.mxu0 0
      %1948 = vmatprep.subr.bf16.mxu0 0
      %1949 = vmatpush1.bf16.msra.mxu0 0
      %1950 = vmatprep.subr.bf16.mxu0 0
      %1951 = vmatpush1.bf16.msra.mxu0 0
      %1952 = vmatprep.subr.bf16.mxu0 0
      %1953 = vmatpush1.bf16.msra.mxu0 0
      %1954 = vmatprep.subr.bf16.mxu0 0
      %1955 = vmatpush1.bf16.msra.mxu0 0
      %1956 = vmatprep.subr.bf16.mxu0 0
      %1957 = vmatpush1.bf16.msra.mxu0 0
      %1958 = vmatprep.mubr.bf16.mxu0 0
      %1959 = vmatmul.mubr.bf16.gmra.mrb[0].mxu0 %v1854
      %v1960 = vpop.f32.mrb[0].mxu0
      %v1961 = vadd.f32 %v1876, %v1960
      %v1962 = vpop.f32.mrb[0].mxu0
      %v1963 = vpop.f32.mrb[0].mxu0
      %v1964 = vpop.f32.mrb[0].mxu0
      %1965 = vdwg.mxu0
      %s1966 = scalar_lea.vmem [#allocation10], %s1048
      %1967 = vst [vmem:[%s1966] sm:$0x3] %v1961
      %v1968 = vlaneseq
      %v1969 = vand.u32 %v1968, 127
      %v1970 = vsel %vm885, %v1961, -inf
      %1971 = vmax.xlane.f32.xlu0 %v1970
      %v1972 = vpop.xlane.xlu0 %1971
      %vm1973 = vcmp.ge.f32.partialorder %v1961, %v1972
      %v1974 = vsel %vm1973, %v1969, 128
      %v1975 = vsel %vm885, %v1974, 2147483647
      %v1976 = vand.u32 %v1975, 65535
      %v1977 = vshra.s32 %v1975, 16
      %v1978 = vcvt.s32.f32 %v1976
      %v1979 = vcvt.s32.f32 %v1977
      %1980 = vmin.xlane.f32.xlu0 %v1979
      %v1981 = vpop.xlane.xlu0 %1980
      %vm1982 = vcmp.eq.f32.partialorder %v1979, %v1981
      %v1983 = vsel %vm1982, %v1978, inf
      %1984 = vmin.xlane.f32.xlu0 %v1983
      %v1985 = vpop.xlane.xlu0 %1984
      %v1986 = vcvt.f32.s32 %v1985
      %v1987 = vcvt.f32.s32 %v1981
      %v1988 = vshll.u32 %v1987, 16
      %v1989 = vadd.s32 %v1988, %v1986
      %s1990 = scalar_lea.vmem %s17, %s1048
      %vm1991 = vcmask 1024
      %1992 = vst.msk [vmem:[%s1990] sm:$0x3] %vm1991, %v1989
      %vm1993 = vcmp.eq.s32.totalorder %v1969, %v1989
      %v1994 = vsel %vm1993, 1, 0
      %v1995 = vcvt.s32.f32 %v1994
      %v1996 = vpack.c.bf16 %v1995, %v1995
      %v1997 = vld [vmem:[%s15] sm:$0xf]
      %v1998 = vld [vmem:[%s15 + $0x4] sm:$0xf]
      %v1999 = vld [vmem:[%s15 + $0x8] sm:$0xf]
      %v2000 = vld [vmem:[%s15 + $0xc] sm:$0xf]
      %v2001 = vld [vmem:[%s15 + $0x10] sm:$0xf]
      %v2002 = vld [vmem:[%s15 + $0x14] sm:$0xf]
      %v2003 = vld [vmem:[%s15 + $0x18] sm:$0xf]
      %v2004 = vld [vmem:[%s15 + $0x1c] sm:$0xf]
      %v2005 = vld [vmem:[%s15 + $0x20] sm:$0xf]
      %v2006 = vld [vmem:[%s15 + $0x24] sm:$0xf]
      %v2007 = vld [vmem:[%s15 + $0x28] sm:$0xf]
      %v2008 = vld [vmem:[%s15 + $0x2c] sm:$0xf]
      %v2009 = vld [vmem:[%s15 + $0x30] sm:$0xf]
      %v2010 = vld [vmem:[%s15 + $0x34] sm:$0xf]
      %v2011 = vld [vmem:[%s15 + $0x38] sm:$0xf]
      %v2012 = vld [vmem:[%s15 + $0x3c] sm:$0xf]
      %v2029 = vunpack.c.l.b16 %v1997
      %v2030 = vunpack.c.l.b16 %v1998
      %v2031 = vunpack.c.l.b16 %v1999
      %v2032 = vunpack.c.l.b16 %v2000
      %v2033 = vunpack.c.l.b16 %v2001
      %v2034 = vunpack.c.l.b16 %v2002
      %v2035 = vunpack.c.l.b16 %v2003
      %v2036 = vunpack.c.l.b16 %v2004
      %v2037 = vunpack.c.l.b16 %v2005
      %v2038 = vunpack.c.l.b16 %v2006
      %v2039 = vunpack.c.l.b16 %v2007
      %v2040 = vunpack.c.l.b16 %v2008
      %v2041 = vunpack.c.l.b16 %v2009
      %v2042 = vunpack.c.l.b16 %v2010
      %v2043 = vunpack.c.l.b16 %v2011
      %v2044 = vunpack.c.l.b16 %v2012
      %v2045 = vpack.c.b16 %v2030, %v2029
      %v2046 = vpack.c.b16 %v2032, %v2031
      %v2047 = vpack.c.b16 %v2034, %v2033
      %v2048 = vpack.c.b16 %v2036, %v2035
      %v2049 = vpack.c.b16 %v2038, %v2037
      %v2050 = vpack.c.b16 %v2040, %v2039
      %v2051 = vpack.c.b16 %v2042, %v2041
      %v2052 = vpack.c.b16 %v2044, %v2043
      %2061 = vmatprep.subr.bf16.mxu0 0
      %2062 = vmatpush1.bf16.msra.mxu0 %v2045
      %2063 = vmatprep.subr.bf16.mxu0 0
      %2064 = vmatpush1.bf16.msra.mxu0 %v2046
      %2065 = vmatprep.subr.bf16.mxu0 0
      %2066 = vmatpush1.bf16.msra.mxu0 %v2047
      %2067 = vmatprep.subr.bf16.mxu0 0
      %2068 = vmatpush1.bf16.msra.mxu0 %v2048
      %2069 = vmatprep.subr.bf16.mxu0 0
      %2070 = vmatpush1.bf16.msra.mxu0 %v2049
      %2071 = vmatprep.subr.bf16.mxu0 0
      %2072 = vmatpush1.bf16.msra.mxu0 %v2050
      %2073 = vmatprep.subr.bf16.mxu0 0
      %2074 = vmatpush1.bf16.msra.mxu0 %v2051
      %2075 = vmatprep.subr.bf16.mxu0 0
      %2076 = vmatpush1.bf16.msra.mxu0 %v2052
      %2077 = vmatprep.subr.bf16.mxu0 0
      %2078 = vmatpush1.bf16.msra.mxu0 0
      %2079 = vmatprep.subr.bf16.mxu0 0
      %2080 = vmatpush1.bf16.msra.mxu0 0
      %2081 = vmatprep.subr.bf16.mxu0 0
      %2082 = vmatpush1.bf16.msra.mxu0 0
      %2083 = vmatprep.subr.bf16.mxu0 0
      %2084 = vmatpush1.bf16.msra.mxu0 0
      %2085 = vmatprep.subr.bf16.mxu0 0
      %2086 = vmatpush1.bf16.msra.mxu0 0
      %2087 = vmatprep.subr.bf16.mxu0 0
      %2088 = vmatpush1.bf16.msra.mxu0 0
      %2089 = vmatprep.subr.bf16.mxu0 0
      %2090 = vmatpush1.bf16.msra.mxu0 0
      %2091 = vmatprep.subr.bf16.mxu0 0
      %2092 = vmatpush1.bf16.msra.mxu0 0
      %2093 = vmatprep.mubr.bf16.mxu0 0
      %2094 = vmatmul.mubr.bf16.gmra.mrb[0].mxu0 %v1996
      %v2095 = vpop.f32.mrb[0].mxu0
      %v2096 = vadd.f32 0.0, %v2095
      %v2097 = vpop.f32.mrb[0].mxu0
      %v2098 = vpop.f32.mrb[0].mxu0
      %v2099 = vpop.f32.mrb[0].mxu0
      %2100 = vdwg.mxu0
      %2101 = vst [vmem:[#allocation4] sm:$0x3] %v2096
    $region74: #{seq2seq_forward.3} parent=1 // loop_footer
      %s457 = sadd.s32 1, %s453
    $region75: #{seq2seq_forward.3} parent=1 // loop_footer_branch
      %452 = sbr.rel target = $region71
    $region76: #{seq2seq_forward.3} parent=1 // loop_exit
      _
    // Predicated region
    $region77: #{seq2seq_forward.3} parent=1 // pred_check
      _
    $region78: #{seq2seq_forward.3} parent=1 // pred_check_branch
      %2103 = sbr.rel (0) target = $region80
    $region79: #{seq2seq_forward.3} parent=1 // pred_region
      %s2105 = ssub.s32 192, 192
      %2106 = vsyncadd [#allocation8], %s2105
      %s2107 = sshll.u32 [#allocation10], 4
      %s2108 = int_to_ptr.vmem [resolvable:$true] %s2107
      %2113 = dma.vmem_to_hbm [thread:$0]  %s2108, 192, %s16, [#allocation8], 32, 32, 2
    $region80: #{seq2seq_forward.3} parent=1 // pred_fallthru
      _
    // Predicated region
    $region81: #{seq2seq_forward.3} parent=1 // pred_check
      _
    $region82: #{seq2seq_forward.3} parent=1 // pred_check_branch
      %2115 = sbr.rel (0) target = $region84
    $region83: #{seq2seq_forward.3} parent=1 // pred_region
      _
    $region84: #{seq2seq_forward.3} parent=1 // pred_fallthru
      _
    // Predicated region
    $region85: #{seq2seq_forward.3} parent=1 // pred_check
      _
    $region86: #{seq2seq_forward.3} parent=1 // pred_check_branch
      %2117 = sbr.rel (0) target = $region88
    $region87: #{seq2seq_forward.3} parent=1 // pred_region
      %2118 = dma.done [#allocation8], 192
    $region88: #{seq2seq_forward.3} parent=1 // pred_fallthru
      _
    // Predicated region
    $region89: #{seq2seq_forward.3} parent=1 // pred_check
      _
    $region90: #{seq2seq_forward.3} parent=1 // pred_check_branch
      %2120 = sbr.rel (0) target = $region92
    $region91: #{seq2seq_forward.3} parent=1 // pred_region
      _
    $region92: #{seq2seq_forward.3} parent=1 // pred_fallthru
      _
    %2121 = vsyncpa [#allocation8], 1
    %2122 = vsyncpa [#allocation9], 1

// kernel: seq2seq_forward.2
$region0: #{seq2seq_forward.2}
  #allocation0 [shape = 'u32[]', space=smem, size = 0x4, offset = 0x4, fixed_abs, tag = 'smem constant byte address 0x4 - core index']
  #allocation1 [shape = 'u32[144,128]{1,0:T(1,128)}', space=vmem, size = 0x12000, scoped, tag = 'internal scratch']
  #allocation2 [shape = 'f32[8,2,1024]{2,1,0:T(2,128)}', space=vmem, size = 0x10000, scoped, tag = 'scratch operand']
  #allocation3 [shape = 'f32[2,128]{1,0:T(2,128)}', space=vmem, size = 0x400, scoped, tag = 'scratch operand']
  #allocation4 [shape = 'f32[2,128]{1,0:T(2,128)}', space=vmem, size = 0x400, scoped, tag = 'scratch operand']
  #allocation5 [shape = 'f32[2,128]{1,0:T(2,128)}', space=vmem, size = 0x400, scoped, tag = 'scratch operand']
  #allocation6 [shape = 'f32[2,128]{1,0:T(2,128)}', space=vmem, size = 0x400, scoped, tag = 'scratch operand']
  %s0 = inlined_call_operand.vmem [shape: f32[8,2,128], index: 0, kind: input, shape index: {}]
  %s1 = inlined_call_operand.vmem [shape: f32[8,2,1], index: 1, kind: input, shape index: {}]
  %s2 = inlined_call_operand.hbm [shape: bf16[128,1024], index: 2, kind: input, shape index: {}]
  %s3 = inlined_call_operand.vmem [shape: f32[1,1024], index: 3, kind: input, shape index: {}]
  %s4 = inlined_call_operand.hbm [shape: bf16[256,1024], index: 4, kind: input, shape index: {}]
  %s5 = inlined_call_operand.vmem [shape: f32[8,2,128], index: 5, kind: output, shape index: {0}]
  %s6 = inlined_call_operand.vmem [shape: f32[8,2,128], index: 6, kind: output, shape index: {1}]
  %7 = xla_tuple %s5, %s6
  %s8 = sld [smem:[#allocation0]]
  $region53: #{seq2seq_forward.2} parent=0
    _
  %s10 = ssub.s32 1, %s8
  %s11 = scalar_select 0, %s10, %s8
  $region1: #{seq2seq_forward.2} parent=0
    #allocation7 [shape = 'u8[262144]{0}', space=vmem, size = 0x40000, scoped, tag = 'input window, operand 2, single buffered']
    #allocation8 [shape = 's32[1]{0}', space=sflag, size = 0x4, scoped, tag = 'scoped memory for seq2seq_forward.2']
    #allocation9 [shape = 'u8[524288]{0}', space=vmem, size = 0x80000, scoped, tag = 'input window, operand 4, single buffered']
    #allocation10 [shape = 's32[1]{0}', space=sflag, size = 0x4, scoped, tag = 'scoped memory for seq2seq_forward.2']
    %12 = vsyncpa [#allocation8], 0
    %13 = vsyncpa [#allocation10], 0
    // Predicated region
    $region2: #{seq2seq_forward.2} parent=1 // pred_check
      _
    $region3: #{seq2seq_forward.2} parent=1 // pred_check_branch
      %15 = sbr.rel (0) target = $region5
    $region4: #{seq2seq_forward.2} parent=1 // pred_region
      _
    $region5: #{seq2seq_forward.2} parent=1 // pred_fallthru
      _
    // Predicated region
    $region6: #{seq2seq_forward.2} parent=1 // pred_check
      _
    $region7: #{seq2seq_forward.2} parent=1 // pred_check_branch
      %17 = sbr.rel (0) target = $region9
    $region8: #{seq2seq_forward.2} parent=1 // pred_region
      _
    $region9: #{seq2seq_forward.2} parent=1 // pred_fallthru
      _
    // Predicated region
    $region10: #{seq2seq_forward.2} parent=1 // pred_check
      _
    $region11: #{seq2seq_forward.2} parent=1 // pred_check_branch
      %19 = sbr.rel (0) target = $region13
    $region12: #{seq2seq_forward.2} parent=1 // pred_region
      %s21 = ssub.s32 8192, 8192
      %22 = vsyncadd [#allocation8], %s21
      %s23 = sshll.u32 [#allocation7], 4
      %s24 = int_to_ptr.vmem [resolvable:$true] %s23
      %29 = dma.hbm_to_vmem [thread:$0]  %s2, 8192, %s24, [#allocation8], 512, 512, 32
    $region13: #{seq2seq_forward.2} parent=1 // pred_fallthru
      _
    // Predicated region
    $region14: #{seq2seq_forward.2} parent=1 // pred_check
      _
    $region15: #{seq2seq_forward.2} parent=1 // pred_check_branch
      %31 = sbr.rel (0) target = $region17
    $region16: #{seq2seq_forward.2} parent=1 // pred_region
      _
    $region17: #{seq2seq_forward.2} parent=1 // pred_fallthru
      _
    // Predicated region
    $region18: #{seq2seq_forward.2} parent=1 // pred_check
      _
    $region19: #{seq2seq_forward.2} parent=1 // pred_check_branch
      %33 = sbr.rel (0) target = $region21
    $region20: #{seq2seq_forward.2} parent=1 // pred_region
      %s35 = ssub.s32 16384, 16384
      %36 = vsyncadd [#allocation10], %s35
      %s37 = sshll.u32 [#allocation9], 4
      %s38 = int_to_ptr.vmem [resolvable:$true] %s37
      %43 = dma.hbm_to_vmem [thread:$0]  %s4, 16384, %s38, [#allocation10], 512, 512, 32
    $region21: #{seq2seq_forward.2} parent=1 // pred_fallthru
      _
    // Predicated region
    $region22: #{seq2seq_forward.2} parent=1 // pred_check
      _
    $region23: #{seq2seq_forward.2} parent=1 // pred_check_branch
      %45 = sbr.rel (0) target = $region25
    $region24: #{seq2seq_forward.2} parent=1 // pred_region
      %46 = dma.done [#allocation8], 8192
    $region25: #{seq2seq_forward.2} parent=1 // pred_fallthru
      _
    // Predicated region
    $region26: #{seq2seq_forward.2} parent=1 // pred_check
      _
    $region27: #{seq2seq_forward.2} parent=1 // pred_check_branch
      %48 = sbr.rel (0) target = $region29
    $region28: #{seq2seq_forward.2} parent=1 // pred_region
      %49 = dma.done [#allocation10], 16384
    $region29: #{seq2seq_forward.2} parent=1 // pred_fallthru
      _
    %v51 = vld [vmem:[%s0] sm:$0x3]
    %v52 = vld [vmem:[%s0 + $0x2] sm:$0x3]
    %v53 = vld [vmem:[%s0 + $0x4] sm:$0x3]
    %v54 = vld [vmem:[%s0 + $0x6] sm:$0x3]
    %v55 = vld [vmem:[%s0 + $0x8] sm:$0x3]
    %v56 = vld [vmem:[%s0 + $0xa] sm:$0x3]
    %v57 = vld [vmem:[%s0 + $0xc] sm:$0x3]
    %v58 = vld [vmem:[%s0 + $0xe] sm:$0x3]
    %v67 = vcombine.low %v51, %v52
    %v68 = vcombine.low %v53, %v54
    %v70 = vunpack.c.l.s4 1983009808
    %v71 = vunpack.c.0.s8 %v70
    %v72 = vlaneseq
    %v73 = vshrl.u32 %v72, 7
    %v74 = vsub.s32 %v71, %v73
    %v75 = vrot.slane %v67, %v74
    %v77 = vunpack.c.l.s4 1983009808
    %v78 = vunpack.c.0.s8 %v77
    %v79 = vlaneseq
    %v80 = vshrl.u32 %v79, 7
    %v81 = vsub.s32 %v78, %v80
    %v82 = vrot.slane %v68, %v81
    %v83 = vcombine.low %v75, %v82
    %v84 = vcombine.low %v55, %v56
    %v85 = vcombine.low %v57, %v58
    %v87 = vunpack.c.l.s4 1983009808
    %v88 = vunpack.c.0.s8 %v87
    %v89 = vlaneseq
    %v90 = vshrl.u32 %v89, 7
    %v91 = vsub.s32 %v88, %v90
    %v92 = vrot.slane %v84, %v91
    %v94 = vunpack.c.l.s4 1983009808
    %v95 = vunpack.c.0.s8 %v94
    %v96 = vlaneseq
    %v97 = vshrl.u32 %v96, 7
    %v98 = vsub.s32 %v95, %v97
    %v99 = vrot.slane %v85, %v98
    %v100 = vcombine.low %v92, %v99
    %v103 = vpack.c.bf16 %v100, %v83
    %v104 = vld [vmem:[#allocation7] sm:$0xff]
    %v105 = vld [vmem:[#allocation7 + $0x8] sm:$0xff]
    %v106 = vld [vmem:[#allocation7 + $0x10] sm:$0xff]
    %v107 = vld [vmem:[#allocation7 + $0x18] sm:$0xff]
    %v108 = vld [vmem:[#allocation7 + $0x20] sm:$0xff]
    %v109 = vld [vmem:[#allocation7 + $0x28] sm:$0xff]
    %v110 = vld [vmem:[#allocation7 + $0x30] sm:$0xff]
    %v111 = vld [vmem:[#allocation7 + $0x38] sm:$0xff]
    %v112 = vld [vmem:[#allocation7 + $0x40] sm:$0xff]
    %v113 = vld [vmem:[#allocation7 + $0x48] sm:$0xff]
    %v114 = vld [vmem:[#allocation7 + $0x50] sm:$0xff]
    %v115 = vld [vmem:[#allocation7 + $0x58] sm:$0xff]
    %v116 = vld [vmem:[#allocation7 + $0x60] sm:$0xff]
    %v117 = vld [vmem:[#allocation7 + $0x68] sm:$0xff]
    %v118 = vld [vmem:[#allocation7 + $0x70] sm:$0xff]
    %v119 = vld [vmem:[#allocation7 + $0x78] sm:$0xff]
    %v120 = vld [vmem:[#allocation7 + $0x80] sm:$0xff]
    %v121 = vld [vmem:[#allocation7 + $0x88] sm:$0xff]
    %v122 = vld [vmem:[#allocation7 + $0x90] sm:$0xff]
    %v123 = vld [vmem:[#allocation7 + $0x98] sm:$0xff]
    %v124 = vld [vmem:[#allocation7 + $0xa0] sm:$0xff]
    %v125 = vld [vmem:[#allocation7 + $0xa8] sm:$0xff]
    %v126 = vld [vmem:[#allocation7 + $0xb0] sm:$0xff]
    %v127 = vld [vmem:[#allocation7 + $0xb8] sm:$0xff]
    %v128 = vld [vmem:[#allocation7 + $0xc0] sm:$0xff]
    %v129 = vld [vmem:[#allocation7 + $0xc8] sm:$0xff]
    %v130 = vld [vmem:[#allocation7 + $0xd0] sm:$0xff]
    %v131 = vld [vmem:[#allocation7 + $0xd8] sm:$0xff]
    %v132 = vld [vmem:[#allocation7 + $0xe0] sm:$0xff]
    %v133 = vld [vmem:[#allocation7 + $0xe8] sm:$0xff]
    %v134 = vld [vmem:[#allocation7 + $0xf0] sm:$0xff]
    %v135 = vld [vmem:[#allocation7 + $0xf8] sm:$0xff]
    %v136 = vld [vmem:[#allocation7 + $0x100] sm:$0xff]
    %v137 = vld [vmem:[#allocation7 + $0x108] sm:$0xff]
    %v138 = vld [vmem:[#allocation7 + $0x110] sm:$0xff]
    %v139 = vld [vmem:[#allocation7 + $0x118] sm:$0xff]
    %v140 = vld [vmem:[#allocation7 + $0x120] sm:$0xff]
    %v141 = vld [vmem:[#allocation7 + $0x128] sm:$0xff]
    %v142 = vld [vmem:[#allocation7 + $0x130] sm:$0xff]
    %v143 = vld [vmem:[#allocation7 + $0x138] sm:$0xff]
    %v144 = vld [vmem:[#allocation7 + $0x140] sm:$0xff]
    %v145 = vld [vmem:[#allocation7 + $0x148] sm:$0xff]
    %v146 = vld [vmem:[#allocation7 + $0x150] sm:$0xff]
    %v147 = vld [vmem:[#allocation7 + $0x158] sm:$0xff]
    %v148 = vld [vmem:[#allocation7 + $0x160] sm:$0xff]
    %v149 = vld [vmem:[#allocation7 + $0x168] sm:$0xff]
    %v150 = vld [vmem:[#allocation7 + $0x170] sm:$0xff]
    %v151 = vld [vmem:[#allocation7 + $0x178] sm:$0xff]
    %v152 = vld [vmem:[#allocation7 + $0x180] sm:$0xff]
    %v153 = vld [vmem:[#allocation7 + $0x188] sm:$0xff]
    %v154 = vld [vmem:[#allocation7 + $0x190] sm:$0xff]
    %v155 = vld [vmem:[#allocation7 + $0x198] sm:$0xff]
    %v156 = vld [vmem:[#allocation7 + $0x1a0] sm:$0xff]
    %v157 = vld [vmem:[#allocation7 + $0x1a8] sm:$0xff]
    %v158 = vld [vmem:[#allocation7 + $0x1b0] sm:$0xff]
    %v159 = vld [vmem:[#allocation7 + $0x1b8] sm:$0xff]
    %v160 = vld [vmem:[#allocation7 + $0x1c0] sm:$0xff]
    %v161 = vld [vmem:[#allocation7 + $0x1c8] sm:$0xff]
    %v162 = vld [vmem:[#allocation7 + $0x1d0] sm:$0xff]
    %v163 = vld [vmem:[#allocation7 + $0x1d8] sm:$0xff]
    %v164 = vld [vmem:[#allocation7 + $0x1e0] sm:$0xff]
    %v165 = vld [vmem:[#allocation7 + $0x1e8] sm:$0xff]
    %v166 = vld [vmem:[#allocation7 + $0x1f0] sm:$0xff]
    %v167 = vld [vmem:[#allocation7 + $0x1f8] sm:$0xff]
    %v168 = vld [vmem:[%s3] sm:$0xff]
    %v170 = vlaneseq
    %v171 = vshrl.u32 %v170, 7
    %v172 = vsub.s32 0, %v171
    %v173 = vrot.slane %v168, %v172
    %v174 = vlaneseq
    %v175 = vshrl.u32 %v174, 7
    %v176 = vsub.s32 1, %v175
    %v177 = vrot.slane %v168, %v176
    %v178 = vlaneseq
    %v179 = vshrl.u32 %v178, 7
    %v180 = vsub.s32 2, %v179
    %v181 = vrot.slane %v168, %v180
    %v182 = vlaneseq
    %v183 = vshrl.u32 %v182, 7
    %v184 = vsub.s32 3, %v183
    %v185 = vrot.slane %v168, %v184
    %v186 = vlaneseq
    %v187 = vshrl.u32 %v186, 7
    %v188 = vsub.s32 4, %v187
    %v189 = vrot.slane %v168, %v188
    %v190 = vlaneseq
    %v191 = vshrl.u32 %v190, 7
    %v192 = vsub.s32 5, %v191
    %v193 = vrot.slane %v168, %v192
    %v194 = vlaneseq
    %v195 = vshrl.u32 %v194, 7
    %v196 = vsub.s32 6, %v195
    %v197 = vrot.slane %v168, %v196
    %v198 = vlaneseq
    %v199 = vshrl.u32 %v198, 7
    %v200 = vsub.s32 7, %v199
    %v201 = vrot.slane %v168, %v200
    %v274 = vunpack.c.l.b16 %v104
    %v275 = vunpack.c.h.b16 %v104
    %v276 = vunpack.c.l.b16 %v105
    %v277 = vunpack.c.h.b16 %v105
    %v278 = vunpack.c.l.b16 %v106
    %v279 = vunpack.c.h.b16 %v106
    %v280 = vunpack.c.l.b16 %v107
    %v281 = vunpack.c.h.b16 %v107
    %v282 = vunpack.c.l.b16 %v108
    %v283 = vunpack.c.h.b16 %v108
    %v284 = vunpack.c.l.b16 %v109
    %v285 = vunpack.c.h.b16 %v109
    %v286 = vunpack.c.l.b16 %v110
    %v287 = vunpack.c.h.b16 %v110
    %v288 = vunpack.c.l.b16 %v111
    %v289 = vunpack.c.h.b16 %v111
    %v290 = vunpack.c.l.b16 %v112
    %v291 = vunpack.c.h.b16 %v112
    %v292 = vunpack.c.l.b16 %v113
    %v293 = vunpack.c.h.b16 %v113
    %v294 = vunpack.c.l.b16 %v114
    %v295 = vunpack.c.h.b16 %v114
    %v296 = vunpack.c.l.b16 %v115
    %v297 = vunpack.c.h.b16 %v115
    %v298 = vunpack.c.l.b16 %v116
    %v299 = vunpack.c.h.b16 %v116
    %v300 = vunpack.c.l.b16 %v117
    %v301 = vunpack.c.h.b16 %v117
    %v302 = vunpack.c.l.b16 %v118
    %v303 = vunpack.c.h.b16 %v118
    %v304 = vunpack.c.l.b16 %v119
    %v305 = vunpack.c.h.b16 %v119
    %v306 = vunpack.c.l.b16 %v120
    %v307 = vunpack.c.h.b16 %v120
    %v308 = vunpack.c.l.b16 %v121
    %v309 = vunpack.c.h.b16 %v121
    %v310 = vunpack.c.l.b16 %v122
    %v311 = vunpack.c.h.b16 %v122
    %v312 = vunpack.c.l.b16 %v123
    %v313 = vunpack.c.h.b16 %v123
    %v314 = vunpack.c.l.b16 %v124
    %v315 = vunpack.c.h.b16 %v124
    %v316 = vunpack.c.l.b16 %v125
    %v317 = vunpack.c.h.b16 %v125
    %v318 = vunpack.c.l.b16 %v126
    %v319 = vunpack.c.h.b16 %v126
    %v320 = vunpack.c.l.b16 %v127
    %v321 = vunpack.c.h.b16 %v127
    %v322 = vunpack.c.l.b16 %v128
    %v323 = vunpack.c.h.b16 %v128
    %v324 = vunpack.c.l.b16 %v129
    %v325 = vunpack.c.h.b16 %v129
    %v326 = vunpack.c.l.b16 %v130
    %v327 = vunpack.c.h.b16 %v130
    %v328 = vunpack.c.l.b16 %v131
    %v329 = vunpack.c.h.b16 %v131
    %v330 = vunpack.c.l.b16 %v132
    %v331 = vunpack.c.h.b16 %v132
    %v332 = vunpack.c.l.b16 %v133
    %v333 = vunpack.c.h.b16 %v133
    %v334 = vunpack.c.l.b16 %v134
    %v335 = vunpack.c.h.b16 %v134
    %v336 = vunpack.c.l.b16 %v135
    %v337 = vunpack.c.h.b16 %v135
    %v338 = vunpack.c.l.b16 %v136
    %v339 = vunpack.c.h.b16 %v136
    %v340 = vunpack.c.l.b16 %v137
    %v341 = vunpack.c.h.b16 %v137
    %v342 = vunpack.c.l.b16 %v138
    %v343 = vunpack.c.h.b16 %v138
    %v344 = vunpack.c.l.b16 %v139
    %v345 = vunpack.c.h.b16 %v139
    %v346 = vunpack.c.l.b16 %v140
    %v347 = vunpack.c.h.b16 %v140
    %v348 = vunpack.c.l.b16 %v141
    %v349 = vunpack.c.h.b16 %v141
    %v350 = vunpack.c.l.b16 %v142
    %v351 = vunpack.c.h.b16 %v142
    %v352 = vunpack.c.l.b16 %v143
    %v353 = vunpack.c.h.b16 %v143
    %v354 = vunpack.c.l.b16 %v144
    %v355 = vunpack.c.h.b16 %v144
    %v356 = vunpack.c.l.b16 %v145
    %v357 = vunpack.c.h.b16 %v145
    %v358 = vunpack.c.l.b16 %v146
    %v359 = vunpack.c.h.b16 %v146
    %v360 = vunpack.c.l.b16 %v147
    %v361 = vunpack.c.h.b16 %v147
    %v362 = vunpack.c.l.b16 %v148
    %v363 = vunpack.c.h.b16 %v148
    %v364 = vunpack.c.l.b16 %v149
    %v365 = vunpack.c.h.b16 %v149
    %v366 = vunpack.c.l.b16 %v150
    %v367 = vunpack.c.h.b16 %v150
    %v368 = vunpack.c.l.b16 %v151
    %v369 = vunpack.c.h.b16 %v151
    %v370 = vunpack.c.l.b16 %v152
    %v371 = vunpack.c.h.b16 %v152
    %v372 = vunpack.c.l.b16 %v153
    %v373 = vunpack.c.h.b16 %v153
    %v374 = vunpack.c.l.b16 %v154
    %v375 = vunpack.c.h.b16 %v154
    %v376 = vunpack.c.l.b16 %v155
    %v377 = vunpack.c.h.b16 %v155
    %v378 = vunpack.c.l.b16 %v156
    %v379 = vunpack.c.h.b16 %v156
    %v380 = vunpack.c.l.b16 %v157
    %v381 = vunpack.c.h.b16 %v157
    %v382 = vunpack.c.l.b16 %v158
    %v383 = vunpack.c.h.b16 %v158
    %v384 = vunpack.c.l.b16 %v159
    %v385 = vunpack.c.h.b16 %v159
    %v386 = vunpack.c.l.b16 %v160
    %v387 = vunpack.c.h.b16 %v160
    %v388 = vunpack.c.l.b16 %v161
    %v389 = vunpack.c.h.b16 %v161
    %v390 = vunpack.c.l.b16 %v162
    %v391 = vunpack.c.h.b16 %v162
    %v392 = vunpack.c.l.b16 %v163
    %v393 = vunpack.c.h.b16 %v163
    %v394 = vunpack.c.l.b16 %v164
    %v395 = vunpack.c.h.b16 %v164
    %v396 = vunpack.c.l.b16 %v165
    %v397 = vunpack.c.h.b16 %v165
    %v398 = vunpack.c.l.b16 %v166
    %v399 = vunpack.c.h.b16 %v166
    %v400 = vunpack.c.l.b16 %v167
    %v401 = vunpack.c.h.b16 %v167
    %v402 = vpack.c.b16 %v282, %v274
    %v403 = vpack.c.b16 %v283, %v275
    %v404 = vpack.c.b16 %v284, %v276
    %v405 = vpack.c.b16 %v285, %v277
    %v406 = vpack.c.b16 %v286, %v278
    %v407 = vpack.c.b16 %v287, %v279
    %v408 = vpack.c.b16 %v288, %v280
    %v409 = vpack.c.b16 %v289, %v281
    %v410 = vpack.c.b16 %v298, %v290
    %v411 = vpack.c.b16 %v299, %v291
    %v412 = vpack.c.b16 %v300, %v292
    %v413 = vpack.c.b16 %v301, %v293
    %v414 = vpack.c.b16 %v302, %v294
    %v415 = vpack.c.b16 %v303, %v295
    %v416 = vpack.c.b16 %v304, %v296
    %v417 = vpack.c.b16 %v305, %v297
    %v418 = vpack.c.b16 %v314, %v306
    %v419 = vpack.c.b16 %v315, %v307
    %v420 = vpack.c.b16 %v316, %v308
    %v421 = vpack.c.b16 %v317, %v309
    %v422 = vpack.c.b16 %v318, %v310
    %v423 = vpack.c.b16 %v319, %v311
    %v424 = vpack.c.b16 %v320, %v312
    %v425 = vpack.c.b16 %v321, %v313
    %v426 = vpack.c.b16 %v330, %v322
    %v427 = vpack.c.b16 %v331, %v323
    %v428 = vpack.c.b16 %v332, %v324
    %v429 = vpack.c.b16 %v333, %v325
    %v430 = vpack.c.b16 %v334, %v326
    %v431 = vpack.c.b16 %v335, %v327
    %v432 = vpack.c.b16 %v336, %v328
    %v433 = vpack.c.b16 %v337, %v329
    %v434 = vpack.c.b16 %v346, %v338
    %v435 = vpack.c.b16 %v347, %v339
    %v436 = vpack.c.b16 %v348, %v340
    %v437 = vpack.c.b16 %v349, %v341
    %v438 = vpack.c.b16 %v350, %v342
    %v439 = vpack.c.b16 %v351, %v343
    %v440 = vpack.c.b16 %v352, %v344
    %v441 = vpack.c.b16 %v353, %v345
    %v442 = vpack.c.b16 %v362, %v354
    %v443 = vpack.c.b16 %v363, %v355
    %v444 = vpack.c.b16 %v364, %v356
    %v445 = vpack.c.b16 %v365, %v357
    %v446 = vpack.c.b16 %v366, %v358
    %v447 = vpack.c.b16 %v367, %v359
    %v448 = vpack.c.b16 %v368, %v360
    %v449 = vpack.c.b16 %v369, %v361
    %v450 = vpack.c.b16 %v378, %v370
    %v451 = vpack.c.b16 %v379, %v371
    %v452 = vpack.c.b16 %v380, %v372
    %v453 = vpack.c.b16 %v381, %v373
    %v454 = vpack.c.b16 %v382, %v374
    %v455 = vpack.c.b16 %v383, %v375
    %v456 = vpack.c.b16 %v384, %v376
    %v457 = vpack.c.b16 %v385, %v377
    %v458 = vpack.c.b16 %v394, %v386
    %v459 = vpack.c.b16 %v395, %v387
    %v460 = vpack.c.b16 %v396, %v388
    %v461 = vpack.c.b16 %v397, %v389
    %v462 = vpack.c.b16 %v398, %v390
    %v463 = vpack.c.b16 %v399, %v391
    %v464 = vpack.c.b16 %v400, %v392
    %v465 = vpack.c.b16 %v401, %v393
    %530 = vmatprep.subr.bf16.mxu0 %v403
    %531 = vmatpush1.bf16.msra.mxu0 %v402
    %532 = vmatprep.subr.bf16.mxu0 %v411
    %533 = vmatpush1.bf16.msra.mxu0 %v410
    %534 = vmatprep.subr.bf16.mxu0 %v419
    %535 = vmatpush1.bf16.msra.mxu0 %v418
    %536 = vmatprep.subr.bf16.mxu0 %v427
    %537 = vmatpush1.bf16.msra.mxu0 %v426
    %538 = vmatprep.subr.bf16.mxu0 %v435
    %539 = vmatpush1.bf16.msra.mxu0 %v434
    %540 = vmatprep.subr.bf16.mxu0 %v443
    %541 = vmatpush1.bf16.msra.mxu0 %v442
    %542 = vmatprep.subr.bf16.mxu0 %v451
    %543 = vmatpush1.bf16.msra.mxu0 %v450
    %544 = vmatprep.subr.bf16.mxu0 %v459
    %545 = vmatpush1.bf16.msra.mxu0 %v458
    %546 = vmatprep.subr.bf16.mxu0 0
    %547 = vmatpush1.bf16.msra.mxu0 0
    %548 = vmatprep.subr.bf16.mxu0 0
    %549 = vmatpush1.bf16.msra.mxu0 0
    %550 = vmatprep.subr.bf16.mxu0 0
    %551 = vmatpush1.bf16.msra.mxu0 0
    %552 = vmatprep.subr.bf16.mxu0 0
    %553 = vmatpush1.bf16.msra.mxu0 0
    %554 = vmatprep.subr.bf16.mxu0 0
    %555 = vmatpush1.bf16.msra.mxu0 0
    %556 = vmatprep.subr.bf16.mxu0 0
    %557 = vmatpush1.bf16.msra.mxu0 0
    %558 = vmatprep.subr.bf16.mxu0 0
    %559 = vmatpush1.bf16.msra.mxu0 0
    %560 = vmatprep.subr.bf16.mxu0 0
    %561 = vmatpush1.bf16.msra.mxu0 0
    %562 = vmatprep.mubr.bf16.mxu0 0
    %563 = vmatmul.mubr.bf16.gmra.mrb[0].mxu0 %v103
    %v564 = vpop.f32.mrb[0].mxu0
    %v565 = vadd.f32 %v173, %v564
    %v566 = vpop.f32.mrb[0].mxu0
    %v567 = vadd.f32 %v177, %v566
    %v568 = vpop.f32.mrb[0].mxu0
    %v569 = vadd.f32 %v173, %v568
    %v570 = vpop.f32.mrb[0].mxu0
    %v571 = vadd.f32 %v177, %v570
    %572 = vdwg.mxu0
    %573 = vmatprep.subr.bf16.mxu0 %v405
    %574 = vmatpush1.bf16.msra.mxu0 %v404
    %575 = vmatprep.subr.bf16.mxu0 %v413
    %576 = vmatpush1.bf16.msra.mxu0 %v412
    %577 = vmatprep.subr.bf16.mxu0 %v421
    %578 = vmatpush1.bf16.msra.mxu0 %v420
    %579 = vmatprep.subr.bf16.mxu0 %v429
    %580 = vmatpush1.bf16.msra.mxu0 %v428
    %581 = vmatprep.subr.bf16.mxu0 %v437
    %582 = vmatpush1.bf16.msra.mxu0 %v436
    %583 = vmatprep.subr.bf16.mxu0 %v445
    %584 = vmatpush1.bf16.msra.mxu0 %v444
    %585 = vmatprep.subr.bf16.mxu0 %v453
    %586 = vmatpush1.bf16.msra.mxu0 %v452
    %587 = vmatprep.subr.bf16.mxu0 %v461
    %588 = vmatpush1.bf16.msra.mxu0 %v460
    %589 = vmatprep.subr.bf16.mxu0 0
    %590 = vmatpush1.bf16.msra.mxu0 0
    %591 = vmatprep.subr.bf16.mxu0 0
    %592 = vmatpush1.bf16.msra.mxu0 0
    %593 = vmatprep.subr.bf16.mxu0 0
    %594 = vmatpush1.bf16.msra.mxu0 0
    %595 = vmatprep.subr.bf16.mxu0 0
    %596 = vmatpush1.bf16.msra.mxu0 0
    %597 = vmatprep.subr.bf16.mxu0 0
    %598 = vmatpush1.bf16.msra.mxu0 0
    %599 = vmatprep.subr.bf16.mxu0 0
    %600 = vmatpush1.bf16.msra.mxu0 0
    %601 = vmatprep.subr.bf16.mxu0 0
    %602 = vmatpush1.bf16.msra.mxu0 0
    %603 = vmatprep.subr.bf16.mxu0 0
    %604 = vmatpush1.bf16.msra.mxu0 0
    %605 = vmatprep.mubr.bf16.mxu0 0
    %606 = vmatmul.mubr.bf16.gmra.mrb[0].mxu0 %v103
    %v607 = vpop.f32.mrb[0].mxu0
    %v608 = vadd.f32 %v181, %v607
    %v609 = vpop.f32.mrb[0].mxu0
    %v610 = vadd.f32 %v185, %v609
    %v611 = vpop.f32.mrb[0].mxu0
    %v612 = vadd.f32 %v181, %v611
    %v613 = vpop.f32.mrb[0].mxu0
    %v614 = vadd.f32 %v185, %v613
    %615 = vdwg.mxu0
    %616 = vmatprep.subr.bf16.mxu0 %v407
    %617 = vmatpush1.bf16.msra.mxu0 %v406
    %618 = vmatprep.subr.bf16.mxu0 %v415
    %619 = vmatpush1.bf16.msra.mxu0 %v414
    %620 = vmatprep.subr.bf16.mxu0 %v423
    %621 = vmatpush1.bf16.msra.mxu0 %v422
    %622 = vmatprep.subr.bf16.mxu0 %v431
    %623 = vmatpush1.bf16.msra.mxu0 %v430
    %624 = vmatprep.subr.bf16.mxu0 %v439
    %625 = vmatpush1.bf16.msra.mxu0 %v438
    %626 = vmatprep.subr.bf16.mxu0 %v447
    %627 = vmatpush1.bf16.msra.mxu0 %v446
    %628 = vmatprep.subr.bf16.mxu0 %v455
    %629 = vmatpush1.bf16.msra.mxu0 %v454
    %630 = vmatprep.subr.bf16.mxu0 %v463
    %631 = vmatpush1.bf16.msra.mxu0 %v462
    %632 = vmatprep.subr.bf16.mxu0 0
    %633 = vmatpush1.bf16.msra.mxu0 0
    %634 = vmatprep.subr.bf16.mxu0 0
    %635 = vmatpush1.bf16.msra.mxu0 0
    %636 = vmatprep.subr.bf16.mxu0 0
    %637 = vmatpush1.bf16.msra.mxu0 0
    %638 = vmatprep.subr.bf16.mxu0 0
    %639 = vmatpush1.bf16.msra.mxu0 0
    %640 = vmatprep.subr.bf16.mxu0 0
    %641 = vmatpush1.bf16.msra.mxu0 0
    %642 = vmatprep.subr.bf16.mxu0 0
    %643 = vmatpush1.bf16.msra.mxu0 0
    %644 = vmatprep.subr.bf16.mxu0 0
    %645 = vmatpush1.bf16.msra.mxu0 0
    %646 = vmatprep.subr.bf16.mxu0 0
    %647 = vmatpush1.bf16.msra.mxu0 0
    %648 = vmatprep.mubr.bf16.mxu0 0
    %649 = vmatmul.mubr.bf16.gmra.mrb[0].mxu0 %v103
    %v650 = vpop.f32.mrb[0].mxu0
    %v651 = vadd.f32 %v189, %v650
    %v652 = vpop.f32.mrb[0].mxu0
    %v653 = vadd.f32 %v193, %v652
    %v654 = vpop.f32.mrb[0].mxu0
    %v655 = vadd.f32 %v189, %v654
    %v656 = vpop.f32.mrb[0].mxu0
    %v657 = vadd.f32 %v193, %v656
    %658 = vdwg.mxu0
    %659 = vmatprep.subr.bf16.mxu0 %v409
    %660 = vmatpush1.bf16.msra.mxu0 %v408
    %661 = vmatprep.subr.bf16.mxu0 %v417
    %662 = vmatpush1.bf16.msra.mxu0 %v416
    %663 = vmatprep.subr.bf16.mxu0 %v425
    %664 = vmatpush1.bf16.msra.mxu0 %v424
    %665 = vmatprep.subr.bf16.mxu0 %v433
    %666 = vmatpush1.bf16.msra.mxu0 %v432
    %667 = vmatprep.subr.bf16.mxu0 %v441
    %668 = vmatpush1.bf16.msra.mxu0 %v440
    %669 = vmatprep.subr.bf16.mxu0 %v449
    %670 = vmatpush1.bf16.msra.mxu0 %v448
    %671 = vmatprep.subr.bf16.mxu0 %v457
    %672 = vmatpush1.bf16.msra.mxu0 %v456
    %673 = vmatprep.subr.bf16.mxu0 %v465
    %674 = vmatpush1.bf16.msra.mxu0 %v464
    %675 = vmatprep.subr.bf16.mxu0 0
    %676 = vmatpush1.bf16.msra.mxu0 0
    %677 = vmatprep.subr.bf16.mxu0 0
    %678 = vmatpush1.bf16.msra.mxu0 0
    %679 = vmatprep.subr.bf16.mxu0 0
    %680 = vmatpush1.bf16.msra.mxu0 0
    %681 = vmatprep.subr.bf16.mxu0 0
    %682 = vmatpush1.bf16.msra.mxu0 0
    %683 = vmatprep.subr.bf16.mxu0 0
    %684 = vmatpush1.bf16.msra.mxu0 0
    %685 = vmatprep.subr.bf16.mxu0 0
    %686 = vmatpush1.bf16.msra.mxu0 0
    %687 = vmatprep.subr.bf16.mxu0 0
    %688 = vmatpush1.bf16.msra.mxu0 0
    %689 = vmatprep.subr.bf16.mxu0 0
    %690 = vmatpush1.bf16.msra.mxu0 0
    %691 = vmatprep.mubr.bf16.mxu0 0
    %692 = vmatmul.mubr.bf16.gmra.mrb[0].mxu0 %v103
    %v693 = vpop.f32.mrb[0].mxu0
    %v694 = vadd.f32 %v197, %v693
    %v695 = vpop.f32.mrb[0].mxu0
    %v696 = vadd.f32 %v201, %v695
    %v697 = vpop.f32.mrb[0].mxu0
    %v698 = vadd.f32 %v197, %v697
    %v699 = vpop.f32.mrb[0].mxu0
    %v700 = vadd.f32 %v201, %v699
    %701 = vdwg.mxu0
    %v718 = vcombine.low %v565, %v567
    %v719 = vcombine.high %v565, %v567
    %v720 = vcombine.low %v608, %v610
    %v721 = vcombine.high %v608, %v610
    %v723 = vunpack.c.l.s4 1983009808
    %v724 = vunpack.c.0.s8 %v723
    %v725 = vlaneseq
    %v726 = vshrl.u32 %v725, 7
    %v727 = vsub.s32 %v724, %v726
    %v728 = vrot.slane %v718, %v727
    %v730 = vunpack.c.l.s4 1983009808
    %v731 = vunpack.c.0.s8 %v730
    %v732 = vlaneseq
    %v733 = vshrl.u32 %v732, 7
    %v734 = vsub.s32 %v731, %v733
    %v735 = vrot.slane %v719, %v734
    %v737 = vunpack.c.l.s4 1983009808
    %v738 = vunpack.c.0.s8 %v737
    %v739 = vlaneseq
    %v740 = vshrl.u32 %v739, 7
    %v741 = vsub.s32 %v738, %v740
    %v742 = vrot.slane %v720, %v741
    %v744 = vunpack.c.l.s4 1983009808
    %v745 = vunpack.c.0.s8 %v744
    %v746 = vlaneseq
    %v747 = vshrl.u32 %v746, 7
    %v748 = vsub.s32 %v745, %v747
    %v749 = vrot.slane %v721, %v748
    %v750 = vcombine.low %v728, %v742
    %v751 = vcombine.high %v728, %v742
    %v752 = vcombine.low %v735, %v749
    %v753 = vcombine.high %v735, %v749
    %v754 = vcombine.low %v651, %v653
    %v755 = vcombine.high %v651, %v653
    %v756 = vcombine.low %v694, %v696
    %v757 = vcombine.high %v694, %v696
    %v759 = vunpack.c.l.s4 1983009808
    %v760 = vunpack.c.0.s8 %v759
    %v761 = vlaneseq
    %v762 = vshrl.u32 %v761, 7
    %v763 = vsub.s32 %v760, %v762
    %v764 = vrot.slane %v754, %v763
    %v766 = vunpack.c.l.s4 1983009808
    %v767 = vunpack.c.0.s8 %v766
    %v768 = vlaneseq
    %v769 = vshrl.u32 %v768, 7
    %v770 = vsub.s32 %v767, %v769
    %v771 = vrot.slane %v755, %v770
    %v773 = vunpack.c.l.s4 1983009808
    %v774 = vunpack.c.0.s8 %v773
    %v775 = vlaneseq
    %v776 = vshrl.u32 %v775, 7
    %v777 = vsub.s32 %v774, %v776
    %v778 = vrot.slane %v756, %v777
    %v780 = vunpack.c.l.s4 1983009808
    %v781 = vunpack.c.0.s8 %v780
    %v782 = vlaneseq
    %v783 = vshrl.u32 %v782, 7
    %v784 = vsub.s32 %v781, %v783
    %v785 = vrot.slane %v757, %v784
    %v786 = vcombine.low %v764, %v778
    %v787 = vcombine.high %v764, %v778
    %v788 = vcombine.low %v771, %v785
    %v789 = vcombine.high %v771, %v785
    %v790 = vcombine.low %v569, %v571
    %v791 = vcombine.high %v569, %v571
    %v792 = vcombine.low %v612, %v614
    %v793 = vcombine.high %v612, %v614
    %v795 = vunpack.c.l.s4 1983009808
    %v796 = vunpack.c.0.s8 %v795
    %v797 = vlaneseq
    %v798 = vshrl.u32 %v797, 7
    %v799 = vsub.s32 %v796, %v798
    %v800 = vrot.slane %v790, %v799
    %v802 = vunpack.c.l.s4 1983009808
    %v803 = vunpack.c.0.s8 %v802
    %v804 = vlaneseq
    %v805 = vshrl.u32 %v804, 7
    %v806 = vsub.s32 %v803, %v805
    %v807 = vrot.slane %v791, %v806
    %v809 = vunpack.c.l.s4 1983009808
    %v810 = vunpack.c.0.s8 %v809
    %v811 = vlaneseq
    %v812 = vshrl.u32 %v811, 7
    %v813 = vsub.s32 %v810, %v812
    %v814 = vrot.slane %v792, %v813
    %v816 = vunpack.c.l.s4 1983009808
    %v817 = vunpack.c.0.s8 %v816
    %v818 = vlaneseq
    %v819 = vshrl.u32 %v818, 7
    %v820 = vsub.s32 %v817, %v819
    %v821 = vrot.slane %v793, %v820
    %v822 = vcombine.low %v800, %v814
    %v823 = vcombine.high %v800, %v814
    %v824 = vcombine.low %v807, %v821
    %v825 = vcombine.high %v807, %v821
    %v826 = vcombine.low %v655, %v657
    %v827 = vcombine.high %v655, %v657
    %v828 = vcombine.low %v698, %v700
    %v829 = vcombine.high %v698, %v700
    %v831 = vunpack.c.l.s4 1983009808
    %v832 = vunpack.c.0.s8 %v831
    %v833 = vlaneseq
    %v834 = vshrl.u32 %v833, 7
    %v835 = vsub.s32 %v832, %v834
    %v836 = vrot.slane %v826, %v835
    %v838 = vunpack.c.l.s4 1983009808
    %v839 = vunpack.c.0.s8 %v838
    %v840 = vlaneseq
    %v841 = vshrl.u32 %v840, 7
    %v842 = vsub.s32 %v839, %v841
    %v843 = vrot.slane %v827, %v842
    %v845 = vunpack.c.l.s4 1983009808
    %v846 = vunpack.c.0.s8 %v845
    %v847 = vlaneseq
    %v848 = vshrl.u32 %v847, 7
    %v849 = vsub.s32 %v846, %v848
    %v850 = vrot.slane %v828, %v849
    %v852 = vunpack.c.l.s4 1983009808
    %v853 = vunpack.c.0.s8 %v852
    %v854 = vlaneseq
    %v855 = vshrl.u32 %v854, 7
    %v856 = vsub.s32 %v853, %v855
    %v857 = vrot.slane %v829, %v856
    %v858 = vcombine.low %v836, %v850
    %v859 = vcombine.high %v836, %v850
    %v860 = vcombine.low %v843, %v857
    %v861 = vcombine.high %v843, %v857
    %878 = vst [vmem:[#allocation2] sm:$0xff] %v750
    %879 = vst [vmem:[#allocation2 + $0x8] sm:$0xff] %v786
    %880 = vst [vmem:[#allocation2 + $0x10] sm:$0xff] %v751
    %881 = vst [vmem:[#allocation2 + $0x18] sm:$0xff] %v787
    %882 = vst [vmem:[#allocation2 + $0x20] sm:$0xff] %v752
    %883 = vst [vmem:[#allocation2 + $0x28] sm:$0xff] %v788
    %884 = vst [vmem:[#allocation2 + $0x30] sm:$0xff] %v753
    %885 = vst [vmem:[#allocation2 + $0x38] sm:$0xff] %v789
    %886 = vst [vmem:[#allocation2 + $0x40] sm:$0xff] %v822
    %887 = vst [vmem:[#allocation2 + $0x48] sm:$0xff] %v858
    %888 = vst [vmem:[#allocation2 + $0x50] sm:$0xff] %v823
    %889 = vst [vmem:[#allocation2 + $0x58] sm:$0xff] %v859
    %890 = vst [vmem:[#allocation2 + $0x60] sm:$0xff] %v824
    %891 = vst [vmem:[#allocation2 + $0x68] sm:$0xff] %v860
    %892 = vst [vmem:[#allocation2 + $0x70] sm:$0xff] %v825
    %893 = vst [vmem:[#allocation2 + $0x78] sm:$0xff] %v861
    %894 = vst [vmem:[#allocation3] sm:$0x3] 0.0
    %895 = vst [vmem:[#allocation4] sm:$0x3] 0.0
    %896 = vst [vmem:[#allocation5] sm:$0x3] 0.0
    %897 = vst [vmem:[#allocation6] sm:$0x3] 0.0
    loop: start=0, step=1, limit=8
    $region30: #{seq2seq_forward.2} parent=1 // loop_pre_header
      _
    $region31: #{seq2seq_forward.2} parent=1 // loop_header
      %s899 = sphi 0, %s903
      %p900 = scmp.ge.s32.totalorder %s899, 8
    $region32: #{seq2seq_forward.2} parent=1 // loop_header_branch
      %902 = sbr.rel (%p900) target = $region36
    $region33: #{seq2seq_forward.2} parent=1 // loop_body
      %s904 = ssub.s32 7, %s899
      %v905 = vld [vmem:[#allocation3] sm:$0x3]
      %v906 = vld [vmem:[#allocation5] sm:$0x3]
      %v907 = vpack.c.bf16 %v905, %v905
      %v908 = vpack.c.bf16 %v906, %v906
      %v909 = vld [vmem:[#allocation9] sm:$0xff]
      %v910 = vld [vmem:[#allocation9 + $0x8] sm:$0xff]
      %v911 = vld [vmem:[#allocation9 + $0x10] sm:$0xff]
      %v912 = vld [vmem:[#allocation9 + $0x18] sm:$0xff]
      %v913 = vld [vmem:[#allocation9 + $0x20] sm:$0xff]
      %v914 = vld [vmem:[#allocation9 + $0x28] sm:$0xff]
      %v915 = vld [vmem:[#allocation9 + $0x30] sm:$0xff]
      %v916 = vld [vmem:[#allocation9 + $0x38] sm:$0xff]
      %v917 = vld [vmem:[#allocation9 + $0x40] sm:$0xff]
      %v918 = vld [vmem:[#allocation9 + $0x48] sm:$0xff]
      %v919 = vld [vmem:[#allocation9 + $0x50] sm:$0xff]
      %v920 = vld [vmem:[#allocation9 + $0x58] sm:$0xff]
      %v921 = vld [vmem:[#allocation9 + $0x60] sm:$0xff]
      %v922 = vld [vmem:[#allocation9 + $0x68] sm:$0xff]
      %v923 = vld [vmem:[#allocation9 + $0x70] sm:$0xff]
      %v924 = vld [vmem:[#allocation9 + $0x78] sm:$0xff]
      %v925 = vld [vmem:[#allocation9 + $0x80] sm:$0xff]
      %v926 = vld [vmem:[#allocation9 + $0x88] sm:$0xff]
      %v927 = vld [vmem:[#allocation9 + $0x90] sm:$0xff]
      %v928 = vld [vmem:[#allocation9 + $0x98] sm:$0xff]
      %v929 = vld [vmem:[#allocation9 + $0xa0] sm:$0xff]
      %v930 = vld [vmem:[#allocation9 + $0xa8] sm:$0xff]
      %v931 = vld [vmem:[#allocation9 + $0xb0] sm:$0xff]
      %v932 = vld [vmem:[#allocation9 + $0xb8] sm:$0xff]
      %v933 = vld [vmem:[#allocation9 + $0xc0] sm:$0xff]
      %v934 = vld [vmem:[#allocation9 + $0xc8] sm:$0xff]
      %v935 = vld [vmem:[#allocation9 + $0xd0] sm:$0xff]
      %v936 = vld [vmem:[#allocation9 + $0xd8] sm:$0xff]
      %v937 = vld [vmem:[#allocation9 + $0xe0] sm:$0xff]
      %v938 = vld [vmem:[#allocation9 + $0xe8] sm:$0xff]
      %v939 = vld [vmem:[#allocation9 + $0xf0] sm:$0xff]
      %v940 = vld [vmem:[#allocation9 + $0xf8] sm:$0xff]
      %v941 = vld [vmem:[#allocation9 + $0x100] sm:$0xff]
      %v942 = vld [vmem:[#allocation9 + $0x108] sm:$0xff]
      %v943 = vld [vmem:[#allocation9 + $0x110] sm:$0xff]
      %v944 = vld [vmem:[#allocation9 + $0x118] sm:$0xff]
      %v945 = vld [vmem:[#allocation9 + $0x120] sm:$0xff]
      %v946 = vld [vmem:[#allocation9 + $0x128] sm:$0xff]
      %v947 = vld [vmem:[#allocation9 + $0x130] sm:$0xff]
      %v948 = vld [vmem:[#allocation9 + $0x138] sm:$0xff]
      %v949 = vld [vmem:[#allocation9 + $0x140] sm:$0xff]
      %v950 = vld [vmem:[#allocation9 + $0x148] sm:$0xff]
      %v951 = vld [vmem:[#allocation9 + $0x150] sm:$0xff]
      %v952 = vld [vmem:[#allocation9 + $0x158] sm:$0xff]
      %v953 = vld [vmem:[#allocation9 + $0x160] sm:$0xff]
      %v954 = vld [vmem:[#allocation9 + $0x168] sm:$0xff]
      %v955 = vld [vmem:[#allocation9 + $0x170] sm:$0xff]
      %v956 = vld [vmem:[#allocation9 + $0x178] sm:$0xff]
      %v957 = vld [vmem:[#allocation9 + $0x180] sm:$0xff]
      %v958 = vld [vmem:[#allocation9 + $0x188] sm:$0xff]
      %v959 = vld [vmem:[#allocation9 + $0x190] sm:$0xff]
      %v960 = vld [vmem:[#allocation9 + $0x198] sm:$0xff]
      %v961 = vld [vmem:[#allocation9 + $0x1a0] sm:$0xff]
      %v962 = vld [vmem:[#allocation9 + $0x1a8] sm:$0xff]
      %v963 = vld [vmem:[#allocation9 + $0x1b0] sm:$0xff]
      %v964 = vld [vmem:[#allocation9 + $0x1b8] sm:$0xff]
      %v965 = vld [vmem:[#allocation9 + $0x1c0] sm:$0xff]
      %v966 = vld [vmem:[#allocation9 + $0x1c8] sm:$0xff]
      %v967 = vld [vmem:[#allocation9 + $0x1d0] sm:$0xff]
      %v968 = vld [vmem:[#allocation9 + $0x1d8] sm:$0xff]
      %v969 = vld [vmem:[#allocation9 + $0x1e0] sm:$0xff]
      %v970 = vld [vmem:[#allocation9 + $0x1e8] sm:$0xff]
      %v971 = vld [vmem:[#allocation9 + $0x1f0] sm:$0xff]
      %v972 = vld [vmem:[#allocation9 + $0x1f8] sm:$0xff]
      %v973 = vld [vmem:[#allocation9 + $0x200] sm:$0xff]
      %v974 = vld [vmem:[#allocation9 + $0x208] sm:$0xff]
      %v975 = vld [vmem:[#allocation9 + $0x210] sm:$0xff]
      %v976 = vld [vmem:[#allocation9 + $0x218] sm:$0xff]
      %v977 = vld [vmem:[#allocation9 + $0x220] sm:$0xff]
      %v978 = vld [vmem:[#allocation9 + $0x228] sm:$0xff]
      %v979 = vld [vmem:[#allocation9 + $0x230] sm:$0xff]
      %v980 = vld [vmem:[#allocation9 + $0x238] sm:$0xff]
      %v981 = vld [vmem:[#allocation9 + $0x240] sm:$0xff]
      %v982 = vld [vmem:[#allocation9 + $0x248] sm:$0xff]
      %v983 = vld [vmem:[#allocation9 + $0x250] sm:$0xff]
      %v984 = vld [vmem:[#allocation9 + $0x258] sm:$0xff]
      %v985 = vld [vmem:[#allocation9 + $0x260] sm:$0xff]
      %v986 = vld [vmem:[#allocation9 + $0x268] sm:$0xff]
      %v987 = vld [vmem:[#allocation9 + $0x270] sm:$0xff]
      %v988 = vld [vmem:[#allocation9 + $0x278] sm:$0xff]
      %v989 = vld [vmem:[#allocation9 + $0x280] sm:$0xff]
      %v990 = vld [vmem:[#allocation9 + $0x288] sm:$0xff]
      %v991 = vld [vmem:[#allocation9 + $0x290] sm:$0xff]
      %v992 = vld [vmem:[#allocation9 + $0x298] sm:$0xff]
      %v993 = vld [vmem:[#allocation9 + $0x2a0] sm:$0xff]
      %v994 = vld [vmem:[#allocation9 + $0x2a8] sm:$0xff]
      %v995 = vld [vmem:[#allocation9 + $0x2b0] sm:$0xff]
      %v996 = vld [vmem:[#allocation9 + $0x2b8] sm:$0xff]
      %v997 = vld [vmem:[#allocation9 + $0x2c0] sm:$0xff]
      %v998 = vld [vmem:[#allocation9 + $0x2c8] sm:$0xff]
      %v999 = vld [vmem:[#allocation9 + $0x2d0] sm:$0xff]
      %v1000 = vld [vmem:[#allocation9 + $0x2d8] sm:$0xff]
      %v1001 = vld [vmem:[#allocation9 + $0x2e0] sm:$0xff]
      %v1002 = vld [vmem:[#allocation9 + $0x2e8] sm:$0xff]
      %v1003 = vld [vmem:[#allocation9 + $0x2f0] sm:$0xff]
      %v1004 = vld [vmem:[#allocation9 + $0x2f8] sm:$0xff]
      %v1005 = vld [vmem:[#allocation9 + $0x300] sm:$0xff]
      %v1006 = vld [vmem:[#allocation9 + $0x308] sm:$0xff]
      %v1007 = vld [vmem:[#allocation9 + $0x310] sm:$0xff]
      %v1008 = vld [vmem:[#allocation9 + $0x318] sm:$0xff]
      %v1009 = vld [vmem:[#allocation9 + $0x320] sm:$0xff]
      %v1010 = vld [vmem:[#allocation9 + $0x328] sm:$0xff]
      %v1011 = vld [vmem:[#allocation9 + $0x330] sm:$0xff]
      %v1012 = vld [vmem:[#allocation9 + $0x338] sm:$0xff]
      %v1013 = vld [vmem:[#allocation9 + $0x340] sm:$0xff]
      %v1014 = vld [vmem:[#allocation9 + $0x348] sm:$0xff]
      %v1015 = vld [vmem:[#allocation9 + $0x350] sm:$0xff]
      %v1016 = vld [vmem:[#allocation9 + $0x358] sm:$0xff]
      %v1017 = vld [vmem:[#allocation9 + $0x360] sm:$0xff]
      %v1018 = vld [vmem:[#allocation9 + $0x368] sm:$0xff]
      %v1019 = vld [vmem:[#allocation9 + $0x370] sm:$0xff]
      %v1020 = vld [vmem:[#allocation9 + $0x378] sm:$0xff]
      %v1021 = vld [vmem:[#allocation9 + $0x380] sm:$0xff]
      %v1022 = vld [vmem:[#allocation9 + $0x388] sm:$0xff]
      %v1023 = vld [vmem:[#allocation9 + $0x390] sm:$0xff]
      %v1024 = vld [vmem:[#allocation9 + $0x398] sm:$0xff]
      %v1025 = vld [vmem:[#allocation9 + $0x3a0] sm:$0xff]
      %v1026 = vld [vmem:[#allocation9 + $0x3a8] sm:$0xff]
      %v1027 = vld [vmem:[#allocation9 + $0x3b0] sm:$0xff]
      %v1028 = vld [vmem:[#allocation9 + $0x3b8] sm:$0xff]
      %v1029 = vld [vmem:[#allocation9 + $0x3c0] sm:$0xff]
      %v1030 = vld [vmem:[#allocation9 + $0x3c8] sm:$0xff]
      %v1031 = vld [vmem:[#allocation9 + $0x3d0] sm:$0xff]
      %v1032 = vld [vmem:[#allocation9 + $0x3d8] sm:$0xff]
      %v1033 = vld [vmem:[#allocation9 + $0x3e0] sm:$0xff]
      %v1034 = vld [vmem:[#allocation9 + $0x3e8] sm:$0xff]
      %v1035 = vld [vmem:[#allocation9 + $0x3f0] sm:$0xff]
      %v1036 = vld [vmem:[#allocation9 + $0x3f8] sm:$0xff]
      %v1165 = vunpack.c.l.b16 %v909
      %v1166 = vunpack.c.h.b16 %v909
      %v1167 = vunpack.c.l.b16 %v910
      %v1168 = vunpack.c.h.b16 %v910
      %v1169 = vunpack.c.l.b16 %v911
      %v1170 = vunpack.c.h.b16 %v911
      %v1171 = vunpack.c.l.b16 %v912
      %v1172 = vunpack.c.h.b16 %v912
      %v1173 = vunpack.c.l.b16 %v913
      %v1174 = vunpack.c.h.b16 %v913
      %v1175 = vunpack.c.l.b16 %v914
      %v1176 = vunpack.c.h.b16 %v914
      %v1177 = vunpack.c.l.b16 %v915
      %v1178 = vunpack.c.h.b16 %v915
      %v1179 = vunpack.c.l.b16 %v916
      %v1180 = vunpack.c.h.b16 %v916
      %v1181 = vunpack.c.l.b16 %v917
      %v1182 = vunpack.c.h.b16 %v917
      %v1183 = vunpack.c.l.b16 %v918
      %v1184 = vunpack.c.h.b16 %v918
      %v1185 = vunpack.c.l.b16 %v919
      %v1186 = vunpack.c.h.b16 %v919
      %v1187 = vunpack.c.l.b16 %v920
      %v1188 = vunpack.c.h.b16 %v920
      %v1189 = vunpack.c.l.b16 %v921
      %v1190 = vunpack.c.h.b16 %v921
      %v1191 = vunpack.c.l.b16 %v922
      %v1192 = vunpack.c.h.b16 %v922
      %v1193 = vunpack.c.l.b16 %v923
      %v1194 = vunpack.c.h.b16 %v923
      %v1195 = vunpack.c.l.b16 %v924
      %v1196 = vunpack.c.h.b16 %v924
      %v1197 = vunpack.c.l.b16 %v925
      %v1198 = vunpack.c.h.b16 %v925
      %v1199 = vunpack.c.l.b16 %v926
      %v1200 = vunpack.c.h.b16 %v926
      %v1201 = vunpack.c.l.b16 %v927
      %v1202 = vunpack.c.h.b16 %v927
      %v1203 = vunpack.c.l.b16 %v928
      %v1204 = vunpack.c.h.b16 %v928
      %v1205 = vunpack.c.l.b16 %v929
      %v1206 = vunpack.c.h.b16 %v929
      %v1207 = vunpack.c.l.b16 %v930
      %v1208 = vunpack.c.h.b16 %v930
      %v1209 = vunpack.c.l.b16 %v931
      %v1210 = vunpack.c.h.b16 %v931
      %v1211 = vunpack.c.l.b16 %v932
      %v1212 = vunpack.c.h.b16 %v932
      %v1213 = vunpack.c.l.b16 %v933
      %v1214 = vunpack.c.h.b16 %v933
      %v1215 = vunpack.c.l.b16 %v934
      %v1216 = vunpack.c.h.b16 %v934
      %v1217 = vunpack.c.l.b16 %v935
      %v1218 = vunpack.c.h.b16 %v935
      %v1219 = vunpack.c.l.b16 %v936
      %v1220 = vunpack.c.h.b16 %v936
      %v1221 = vunpack.c.l.b16 %v937
      %v1222 = vunpack.c.h.b16 %v937
      %v1223 = vunpack.c.l.b16 %v938
      %v1224 = vunpack.c.h.b16 %v938
      %v1225 = vunpack.c.l.b16 %v939
      %v1226 = vunpack.c.h.b16 %v939
      %v1227 = vunpack.c.l.b16 %v940
      %v1228 = vunpack.c.h.b16 %v940
      %v1229 = vunpack.c.l.b16 %v941
      %v1230 = vunpack.c.h.b16 %v941
      %v1231 = vunpack.c.l.b16 %v942
      %v1232 = vunpack.c.h.b16 %v942
      %v1233 = vunpack.c.l.b16 %v943
      %v1234 = vunpack.c.h.b16 %v943
      %v1235 = vunpack.c.l.b16 %v944
      %v1236 = vunpack.c.h.b16 %v944
      %v1237 = vunpack.c.l.b16 %v945
      %v1238 = vunpack.c.h.b16 %v945
      %v1239 = vunpack.c.l.b16 %v946
      %v1240 = vunpack.c.h.b16 %v946
      %v1241 = vunpack.c.l.b16 %v947
      %v1242 = vunpack.c.h.b16 %v947
      %v1243 = vunpack.c.l.b16 %v948
      %v1244 = vunpack.c.h.b16 %v948
      %v1245 = vunpack.c.l.b16 %v949
      %v1246 = vunpack.c.h.b16 %v949
      %v1247 = vunpack.c.l.b16 %v950
      %v1248 = vunpack.c.h.b16 %v950
      %v1249 = vunpack.c.l.b16 %v951
      %v1250 = vunpack.c.h.b16 %v951
      %v1251 = vunpack.c.l.b16 %v952
      %v1252 = vunpack.c.h.b16 %v952
      %v1253 = vunpack.c.l.b16 %v953
      %v1254 = vunpack.c.h.b16 %v953
      %v1255 = vunpack.c.l.b16 %v954
      %v1256 = vunpack.c.h.b16 %v954
      %v1257 = vunpack.c.l.b16 %v955
      %v1258 = vunpack.c.h.b16 %v955
      %v1259 = vunpack.c.l.b16 %v956
      %v1260 = vunpack.c.h.b16 %v956
      %v1261 = vunpack.c.l.b16 %v957
      %v1262 = vunpack.c.h.b16 %v957
      %v1263 = vunpack.c.l.b16 %v958
      %v1264 = vunpack.c.h.b16 %v958
      %v1265 = vunpack.c.l.b16 %v959
      %v1266 = vunpack.c.h.b16 %v959
      %v1267 = vunpack.c.l.b16 %v960
      %v1268 = vunpack.c.h.b16 %v960
      %v1269 = vunpack.c.l.b16 %v961
      %v1270 = vunpack.c.h.b16 %v961
      %v1271 = vunpack.c.l.b16 %v962
      %v1272 = vunpack.c.h.b16 %v962
      %v1273 = vunpack.c.l.b16 %v963
      %v1274 = vunpack.c.h.b16 %v963
      %v1275 = vunpack.c.l.b16 %v964
      %v1276 = vunpack.c.h.b16 %v964
      %v1277 = vunpack.c.l.b16 %v965
      %v1278 = vunpack.c.h.b16 %v965
      %v1279 = vunpack.c.l.b16 %v966
      %v1280 = vunpack.c.h.b16 %v966
      %v1281 = vunpack.c.l.b16 %v967
      %v1282 = vunpack.c.h.b16 %v967
      %v1283 = vunpack.c.l.b16 %v968
      %v1284 = vunpack.c.h.b16 %v968
      %v1285 = vunpack.c.l.b16 %v969
      %v1286 = vunpack.c.h.b16 %v969
      %v1287 = vunpack.c.l.b16 %v970
      %v1288 = vunpack.c.h.b16 %v970
      %v1289 = vunpack.c.l.b16 %v971
      %v1290 = vunpack.c.h.b16 %v971
      %v1291 = vunpack.c.l.b16 %v972
      %v1292 = vunpack.c.h.b16 %v972
      %v1293 = vunpack.c.l.b16 %v973
      %v1294 = vunpack.c.h.b16 %v973
      %v1295 = vunpack.c.l.b16 %v974
      %v1296 = vunpack.c.h.b16 %v974
      %v1297 = vunpack.c.l.b16 %v975
      %v1298 = vunpack.c.h.b16 %v975
      %v1299 = vunpack.c.l.b16 %v976
      %v1300 = vunpack.c.h.b16 %v976
      %v1301 = vunpack.c.l.b16 %v977
      %v1302 = vunpack.c.h.b16 %v977
      %v1303 = vunpack.c.l.b16 %v978
      %v1304 = vunpack.c.h.b16 %v978
      %v1305 = vunpack.c.l.b16 %v979
      %v1306 = vunpack.c.h.b16 %v979
      %v1307 = vunpack.c.l.b16 %v980
      %v1308 = vunpack.c.h.b16 %v980
      %v1309 = vunpack.c.l.b16 %v981
      %v1310 = vunpack.c.h.b16 %v981
      %v1311 = vunpack.c.l.b16 %v982
      %v1312 = vunpack.c.h.b16 %v982
      %v1313 = vunpack.c.l.b16 %v983
      %v1314 = vunpack.c.h.b16 %v983
      %v1315 = vunpack.c.l.b16 %v984
      %v1316 = vunpack.c.h.b16 %v984
      %v1317 = vunpack.c.l.b16 %v985
      %v1318 = vunpack.c.h.b16 %v985
      %v1319 = vunpack.c.l.b16 %v986
      %v1320 = vunpack.c.h.b16 %v986
      %v1321 = vunpack.c.l.b16 %v987
      %v1322 = vunpack.c.h.b16 %v987
      %v1323 = vunpack.c.l.b16 %v988
      %v1324 = vunpack.c.h.b16 %v988
      %v1325 = vunpack.c.l.b16 %v989
      %v1326 = vunpack.c.h.b16 %v989
      %v1327 = vunpack.c.l.b16 %v990
      %v1328 = vunpack.c.h.b16 %v990
      %v1329 = vunpack.c.l.b16 %v991
      %v1330 = vunpack.c.h.b16 %v991
      %v1331 = vunpack.c.l.b16 %v992
      %v1332 = vunpack.c.h.b16 %v992
      %v1333 = vunpack.c.l.b16 %v993
      %v1334 = vunpack.c.h.b16 %v993
      %v1335 = vunpack.c.l.b16 %v994
      %v1336 = vunpack.c.h.b16 %v994
      %v1337 = vunpack.c.l.b16 %v995
      %v1338 = vunpack.c.h.b16 %v995
      %v1339 = vunpack.c.l.b16 %v996
      %v1340 = vunpack.c.h.b16 %v996
      %v1341 = vunpack.c.l.b16 %v997
      %v1342 = vunpack.c.h.b16 %v997
      %v1343 = vunpack.c.l.b16 %v998
      %v1344 = vunpack.c.h.b16 %v998
      %v1345 = vunpack.c.l.b16 %v999
      %v1346 = vunpack.c.h.b16 %v999
      %v1347 = vunpack.c.l.b16 %v1000
      %v1348 = vunpack.c.h.b16 %v1000
      %v1349 = vunpack.c.l.b16 %v1001
      %v1350 = vunpack.c.h.b16 %v1001
      %v1351 = vunpack.c.l.b16 %v1002
      %v1352 = vunpack.c.h.b16 %v1002
      %v1353 = vunpack.c.l.b16 %v1003
      %v1354 = vunpack.c.h.b16 %v1003
      %v1355 = vunpack.c.l.b16 %v1004
      %v1356 = vunpack.c.h.b16 %v1004
      %v1357 = vunpack.c.l.b16 %v1005
      %v1358 = vunpack.c.h.b16 %v1005
      %v1359 = vunpack.c.l.b16 %v1006
      %v1360 = vunpack.c.h.b16 %v1006
      %v1361 = vunpack.c.l.b16 %v1007
      %v1362 = vunpack.c.h.b16 %v1007
      %v1363 = vunpack.c.l.b16 %v1008
      %v1364 = vunpack.c.h.b16 %v1008
      %v1365 = vunpack.c.l.b16 %v1009
      %v1366 = vunpack.c.h.b16 %v1009
      %v1367 = vunpack.c.l.b16 %v1010
      %v1368 = vunpack.c.h.b16 %v1010
      %v1369 = vunpack.c.l.b16 %v1011
      %v1370 = vunpack.c.h.b16 %v1011
      %v1371 = vunpack.c.l.b16 %v1012
      %v1372 = vunpack.c.h.b16 %v1012
      %v1373 = vunpack.c.l.b16 %v1013
      %v1374 = vunpack.c.h.b16 %v1013
      %v1375 = vunpack.c.l.b16 %v1014
      %v1376 = vunpack.c.h.b16 %v1014
      %v1377 = vunpack.c.l.b16 %v1015
      %v1378 = vunpack.c.h.b16 %v1015
      %v1379 = vunpack.c.l.b16 %v1016
      %v1380 = vunpack.c.h.b16 %v1016
      %v1381 = vunpack.c.l.b16 %v1017
      %v1382 = vunpack.c.h.b16 %v1017
      %v1383 = vunpack.c.l.b16 %v1018
      %v1384 = vunpack.c.h.b16 %v1018
      %v1385 = vunpack.c.l.b16 %v1019
      %v1386 = vunpack.c.h.b16 %v1019
      %v1387 = vunpack.c.l.b16 %v1020
      %v1388 = vunpack.c.h.b16 %v1020
      %v1389 = vunpack.c.l.b16 %v1021
      %v1390 = vunpack.c.h.b16 %v1021
      %v1391 = vunpack.c.l.b16 %v1022
      %v1392 = vunpack.c.h.b16 %v1022
      %v1393 = vunpack.c.l.b16 %v1023
      %v1394 = vunpack.c.h.b16 %v1023
      %v1395 = vunpack.c.l.b16 %v1024
      %v1396 = vunpack.c.h.b16 %v1024
      %v1397 = vunpack.c.l.b16 %v1025
      %v1398 = vunpack.c.h.b16 %v1025
      %v1399 = vunpack.c.l.b16 %v1026
      %v1400 = vunpack.c.h.b16 %v1026
      %v1401 = vunpack.c.l.b16 %v1027
      %v1402 = vunpack.c.h.b16 %v1027
      %v1403 = vunpack.c.l.b16 %v1028
      %v1404 = vunpack.c.h.b16 %v1028
      %v1405 = vunpack.c.l.b16 %v1029
      %v1406 = vunpack.c.h.b16 %v1029
      %v1407 = vunpack.c.l.b16 %v1030
      %v1408 = vunpack.c.h.b16 %v1030
      %v1409 = vunpack.c.l.b16 %v1031
      %v1410 = vunpack.c.h.b16 %v1031
      %v1411 = vunpack.c.l.b16 %v1032
      %v1412 = vunpack.c.h.b16 %v1032
      %v1413 = vunpack.c.l.b16 %v1033
      %v1414 = vunpack.c.h.b16 %v1033
      %v1415 = vunpack.c.l.b16 %v1034
      %v1416 = vunpack.c.h.b16 %v1034
      %v1417 = vunpack.c.l.b16 %v1035
      %v1418 = vunpack.c.h.b16 %v1035
      %v1419 = vunpack.c.l.b16 %v1036
      %v1420 = vunpack.c.h.b16 %v1036
      %v1421 = vpack.c.b16 %v1173, %v1165
      %v1422 = vpack.c.b16 %v1174, %v1166
      %v1423 = vpack.c.b16 %v1175, %v1167
      %v1424 = vpack.c.b16 %v1176, %v1168
      %v1425 = vpack.c.b16 %v1177, %v1169
      %v1426 = vpack.c.b16 %v1178, %v1170
      %v1427 = vpack.c.b16 %v1179, %v1171
      %v1428 = vpack.c.b16 %v1180, %v1172
      %v1429 = vpack.c.b16 %v1189, %v1181
      %v1430 = vpack.c.b16 %v1190, %v1182
      %v1431 = vpack.c.b16 %v1191, %v1183
      %v1432 = vpack.c.b16 %v1192, %v1184
      %v1433 = vpack.c.b16 %v1193, %v1185
      %v1434 = vpack.c.b16 %v1194, %v1186
      %v1435 = vpack.c.b16 %v1195, %v1187
      %v1436 = vpack.c.b16 %v1196, %v1188
      %v1437 = vpack.c.b16 %v1205, %v1197
      %v1438 = vpack.c.b16 %v1206, %v1198
      %v1439 = vpack.c.b16 %v1207, %v1199
      %v1440 = vpack.c.b16 %v1208, %v1200
      %v1441 = vpack.c.b16 %v1209, %v1201
      %v1442 = vpack.c.b16 %v1210, %v1202
      %v1443 = vpack.c.b16 %v1211, %v1203
      %v1444 = vpack.c.b16 %v1212, %v1204
      %v1445 = vpack.c.b16 %v1221, %v1213
      %v1446 = vpack.c.b16 %v1222, %v1214
      %v1447 = vpack.c.b16 %v1223, %v1215
      %v1448 = vpack.c.b16 %v1224, %v1216
      %v1449 = vpack.c.b16 %v1225, %v1217
      %v1450 = vpack.c.b16 %v1226, %v1218
      %v1451 = vpack.c.b16 %v1227, %v1219
      %v1452 = vpack.c.b16 %v1228, %v1220
      %v1453 = vpack.c.b16 %v1237, %v1229
      %v1454 = vpack.c.b16 %v1238, %v1230
      %v1455 = vpack.c.b16 %v1239, %v1231
      %v1456 = vpack.c.b16 %v1240, %v1232
      %v1457 = vpack.c.b16 %v1241, %v1233
      %v1458 = vpack.c.b16 %v1242, %v1234
      %v1459 = vpack.c.b16 %v1243, %v1235
      %v1460 = vpack.c.b16 %v1244, %v1236
      %v1461 = vpack.c.b16 %v1253, %v1245
      %v1462 = vpack.c.b16 %v1254, %v1246
      %v1463 = vpack.c.b16 %v1255, %v1247
      %v1464 = vpack.c.b16 %v1256, %v1248
      %v1465 = vpack.c.b16 %v1257, %v1249
      %v1466 = vpack.c.b16 %v1258, %v1250
      %v1467 = vpack.c.b16 %v1259, %v1251
      %v1468 = vpack.c.b16 %v1260, %v1252
      %v1469 = vpack.c.b16 %v1269, %v1261
      %v1470 = vpack.c.b16 %v1270, %v1262
      %v1471 = vpack.c.b16 %v1271, %v1263
      %v1472 = vpack.c.b16 %v1272, %v1264
      %v1473 = vpack.c.b16 %v1273, %v1265
      %v1474 = vpack.c.b16 %v1274, %v1266
      %v1475 = vpack.c.b16 %v1275, %v1267
      %v1476 = vpack.c.b16 %v1276, %v1268
      %v1477 = vpack.c.b16 %v1285, %v1277
      %v1478 = vpack.c.b16 %v1286, %v1278
      %v1479 = vpack.c.b16 %v1287, %v1279
      %v1480 = vpack.c.b16 %v1288, %v1280
      %v1481 = vpack.c.b16 %v1289, %v1281
      %v1482 = vpack.c.b16 %v1290, %v1282
      %v1483 = vpack.c.b16 %v1291, %v1283
      %v1484 = vpack.c.b16 %v1292, %v1284
      %v1485 = vpack.c.b16 %v1301, %v1293
      %v1486 = vpack.c.b16 %v1302, %v1294
      %v1487 = vpack.c.b16 %v1303, %v1295
      %v1488 = vpack.c.b16 %v1304, %v1296
      %v1489 = vpack.c.b16 %v1305, %v1297
      %v1490 = vpack.c.b16 %v1306, %v1298
      %v1491 = vpack.c.b16 %v1307, %v1299
      %v1492 = vpack.c.b16 %v1308, %v1300
      %v1493 = vpack.c.b16 %v1317, %v1309
      %v1494 = vpack.c.b16 %v1318, %v1310
      %v1495 = vpack.c.b16 %v1319, %v1311
      %v1496 = vpack.c.b16 %v1320, %v1312
      %v1497 = vpack.c.b16 %v1321, %v1313
      %v1498 = vpack.c.b16 %v1322, %v1314
      %v1499 = vpack.c.b16 %v1323, %v1315
      %v1500 = vpack.c.b16 %v1324, %v1316
      %v1501 = vpack.c.b16 %v1333, %v1325
      %v1502 = vpack.c.b16 %v1334, %v1326
      %v1503 = vpack.c.b16 %v1335, %v1327
      %v1504 = vpack.c.b16 %v1336, %v1328
      %v1505 = vpack.c.b16 %v1337, %v1329
      %v1506 = vpack.c.b16 %v1338, %v1330
      %v1507 = vpack.c.b16 %v1339, %v1331
      %v1508 = vpack.c.b16 %v1340, %v1332
      %v1509 = vpack.c.b16 %v1349, %v1341
      %v1510 = vpack.c.b16 %v1350, %v1342
      %v1511 = vpack.c.b16 %v1351, %v1343
      %v1512 = vpack.c.b16 %v1352, %v1344
      %v1513 = vpack.c.b16 %v1353, %v1345
      %v1514 = vpack.c.b16 %v1354, %v1346
      %v1515 = vpack.c.b16 %v1355, %v1347
      %v1516 = vpack.c.b16 %v1356, %v1348
      %v1517 = vpack.c.b16 %v1365, %v1357
      %v1518 = vpack.c.b16 %v1366, %v1358
      %v1519 = vpack.c.b16 %v1367, %v1359
      %v1520 = vpack.c.b16 %v1368, %v1360
      %v1521 = vpack.c.b16 %v1369, %v1361
      %v1522 = vpack.c.b16 %v1370, %v1362
      %v1523 = vpack.c.b16 %v1371, %v1363
      %v1524 = vpack.c.b16 %v1372, %v1364
      %v1525 = vpack.c.b16 %v1381, %v1373
      %v1526 = vpack.c.b16 %v1382, %v1374
      %v1527 = vpack.c.b16 %v1383, %v1375
      %v1528 = vpack.c.b16 %v1384, %v1376
      %v1529 = vpack.c.b16 %v1385, %v1377
      %v1530 = vpack.c.b16 %v1386, %v1378
      %v1531 = vpack.c.b16 %v1387, %v1379
      %v1532 = vpack.c.b16 %v1388, %v1380
      %v1533 = vpack.c.b16 %v1397, %v1389
      %v1534 = vpack.c.b16 %v1398, %v1390
      %v1535 = vpack.c.b16 %v1399, %v1391
      %v1536 = vpack.c.b16 %v1400, %v1392
      %v1537 = vpack.c.b16 %v1401, %v1393
      %v1538 = vpack.c.b16 %v1402, %v1394
      %v1539 = vpack.c.b16 %v1403, %v1395
      %v1540 = vpack.c.b16 %v1404, %v1396
      %v1541 = vpack.c.b16 %v1413, %v1405
      %v1542 = vpack.c.b16 %v1414, %v1406
      %v1543 = vpack.c.b16 %v1415, %v1407
      %v1544 = vpack.c.b16 %v1416, %v1408
      %v1545 = vpack.c.b16 %v1417, %v1409
      %v1546 = vpack.c.b16 %v1418, %v1410
      %v1547 = vpack.c.b16 %v1419, %v1411
      %v1548 = vpack.c.b16 %v1420, %v1412
      %1677 = vmatprep.subr.bf16.mxu0 %v1422
      %1678 = vmatpush1.bf16.msra.mxu0 %v1421
      %1679 = vmatprep.subr.bf16.mxu0 %v1430
      %1680 = vmatpush1.bf16.msra.mxu0 %v1429
      %1681 = vmatprep.subr.bf16.mxu0 %v1438
      %1682 = vmatpush1.bf16.msra.mxu0 %v1437
      %1683 = vmatprep.subr.bf16.mxu0 %v1446
      %1684 = vmatpush1.bf16.msra.mxu0 %v1445
      %1685 = vmatprep.subr.bf16.mxu0 %v1454
      %1686 = vmatpush1.bf16.msra.mxu0 %v1453
      %1687 = vmatprep.subr.bf16.mxu0 %v1462
      %1688 = vmatpush1.bf16.msra.mxu0 %v1461
      %1689 = vmatprep.subr.bf16.mxu0 %v1470
      %1690 = vmatpush1.bf16.msra.mxu0 %v1469
      %1691 = vmatprep.subr.bf16.mxu0 %v1478
      %1692 = vmatpush1.bf16.msra.mxu0 %v1477
      %1693 = vmatprep.subr.bf16.mxu0 %v1486
      %1694 = vmatpush1.bf16.msra.mxu0 %v1485
      %1695 = vmatprep.subr.bf16.mxu0 %v1494
      %1696 = vmatpush1.bf16.msra.mxu0 %v1493
      %1697 = vmatprep.subr.bf16.mxu0 %v1502
      %1698 = vmatpush1.bf16.msra.mxu0 %v1501
      %1699 = vmatprep.subr.bf16.mxu0 %v1510
      %1700 = vmatpush1.bf16.msra.mxu0 %v1509
      %1701 = vmatprep.subr.bf16.mxu0 %v1518
      %1702 = vmatpush1.bf16.msra.mxu0 %v1517
      %1703 = vmatprep.subr.bf16.mxu0 %v1526
      %1704 = vmatpush1.bf16.msra.mxu0 %v1525
      %1705 = vmatprep.subr.bf16.mxu0 %v1534
      %1706 = vmatpush1.bf16.msra.mxu0 %v1533
      %1707 = vmatprep.subr.bf16.mxu0 %v1542
      %1708 = vmatpush1.bf16.msra.mxu0 %v1541
      %1709 = vmatprep.mubr.bf16.mxu0 %v908
      %1710 = vmatmul.mubr.bf16.gmra.mrb[0].mxu0 %v907
      %v1711 = vpop.f32.mrb[0].mxu0
      %v1712 = vadd.f32 0.0, %v1711
      %v1713 = vpop.f32.mrb[0].mxu0
      %v1714 = vadd.f32 0.0, %v1713
      %v1715 = vpop.f32.mrb[0].mxu0
      %v1716 = vpop.f32.mrb[0].mxu0
      %1717 = vdwg.mxu0
      %1718 = vmatprep.subr.bf16.mxu0 %v1424
      %1719 = vmatpush1.bf16.msra.mxu0 %v1423
      %1720 = vmatprep.subr.bf16.mxu0 %v1432
      %1721 = vmatpush1.bf16.msra.mxu0 %v1431
      %1722 = vmatprep.subr.bf16.mxu0 %v1440
      %1723 = vmatpush1.bf16.msra.mxu0 %v1439
      %1724 = vmatprep.subr.bf16.mxu0 %v1448
      %1725 = vmatpush1.bf16.msra.mxu0 %v1447
      %1726 = vmatprep.subr.bf16.mxu0 %v1456
      %1727 = vmatpush1.bf16.msra.mxu0 %v1455
      %1728 = vmatprep.subr.bf16.mxu0 %v1464
      %1729 = vmatpush1.bf16.msra.mxu0 %v1463
      %1730 = vmatprep.subr.bf16.mxu0 %v1472
      %1731 = vmatpush1.bf16.msra.mxu0 %v1471
      %1732 = vmatprep.subr.bf16.mxu0 %v1480
      %1733 = vmatpush1.bf16.msra.mxu0 %v1479
      %1734 = vmatprep.subr.bf16.mxu0 %v1488
      %1735 = vmatpush1.bf16.msra.mxu0 %v1487
      %1736 = vmatprep.subr.bf16.mxu0 %v1496
      %1737 = vmatpush1.bf16.msra.mxu0 %v1495
      %1738 = vmatprep.subr.bf16.mxu0 %v1504
      %1739 = vmatpush1.bf16.msra.mxu0 %v1503
      %1740 = vmatprep.subr.bf16.mxu0 %v1512
      %1741 = vmatpush1.bf16.msra.mxu0 %v1511
      %1742 = vmatprep.subr.bf16.mxu0 %v1520
      %1743 = vmatpush1.bf16.msra.mxu0 %v1519
      %1744 = vmatprep.subr.bf16.mxu0 %v1528
      %1745 = vmatpush1.bf16.msra.mxu0 %v1527
      %1746 = vmatprep.subr.bf16.mxu0 %v1536
      %1747 = vmatpush1.bf16.msra.mxu0 %v1535
      %1748 = vmatprep.subr.bf16.mxu0 %v1544
      %1749 = vmatpush1.bf16.msra.mxu0 %v1543
      %1750 = vmatprep.mubr.bf16.mxu0 %v908
      %1751 = vmatmul.mubr.bf16.gmra.mrb[0].mxu0 %v907
      %v1752 = vpop.f32.mrb[0].mxu0
      %v1753 = vadd.f32 0.0, %v1752
      %v1754 = vpop.f32.mrb[0].mxu0
      %v1755 = vadd.f32 0.0, %v1754
      %v1756 = vpop.f32.mrb[0].mxu0
      %v1757 = vpop.f32.mrb[0].mxu0
      %1758 = vdwg.mxu0
      %1759 = vmatprep.subr.bf16.mxu0 %v1426
      %1760 = vmatpush1.bf16.msra.mxu0 %v1425
      %1761 = vmatprep.subr.bf16.mxu0 %v1434
      %1762 = vmatpush1.bf16.msra.mxu0 %v1433
      %1763 = vmatprep.subr.bf16.mxu0 %v1442
      %1764 = vmatpush1.bf16.msra.mxu0 %v1441
      %1765 = vmatprep.subr.bf16.mxu0 %v1450
      %1766 = vmatpush1.bf16.msra.mxu0 %v1449
      %1767 = vmatprep.subr.bf16.mxu0 %v1458
      %1768 = vmatpush1.bf16.msra.mxu0 %v1457
      %1769 = vmatprep.subr.bf16.mxu0 %v1466
      %1770 = vmatpush1.bf16.msra.mxu0 %v1465
      %1771 = vmatprep.subr.bf16.mxu0 %v1474
      %1772 = vmatpush1.bf16.msra.mxu0 %v1473
      %1773 = vmatprep.subr.bf16.mxu0 %v1482
      %1774 = vmatpush1.bf16.msra.mxu0 %v1481
      %1775 = vmatprep.subr.bf16.mxu0 %v1490
      %1776 = vmatpush1.bf16.msra.mxu0 %v1489
      %1777 = vmatprep.subr.bf16.mxu0 %v1498
      %1778 = vmatpush1.bf16.msra.mxu0 %v1497
      %1779 = vmatprep.subr.bf16.mxu0 %v1506
      %1780 = vmatpush1.bf16.msra.mxu0 %v1505
      %1781 = vmatprep.subr.bf16.mxu0 %v1514
      %1782 = vmatpush1.bf16.msra.mxu0 %v1513
      %1783 = vmatprep.subr.bf16.mxu0 %v1522
      %1784 = vmatpush1.bf16.msra.mxu0 %v1521
      %1785 = vmatprep.subr.bf16.mxu0 %v1530
      %1786 = vmatpush1.bf16.msra.mxu0 %v1529
      %1787 = vmatprep.subr.bf16.mxu0 %v1538
      %1788 = vmatpush1.bf16.msra.mxu0 %v1537
      %1789 = vmatprep.subr.bf16.mxu0 %v1546
      %1790 = vmatpush1.bf16.msra.mxu0 %v1545
      %1791 = vmatprep.mubr.bf16.mxu0 %v908
      %1792 = vmatmul.mubr.bf16.gmra.mrb[0].mxu0 %v907
      %v1793 = vpop.f32.mrb[0].mxu0
      %v1794 = vadd.f32 0.0, %v1793
      %v1795 = vpop.f32.mrb[0].mxu0
      %v1796 = vadd.f32 0.0, %v1795
      %v1797 = vpop.f32.mrb[0].mxu0
      %v1798 = vpop.f32.mrb[0].mxu0
      %1799 = vdwg.mxu0
      %1800 = vmatprep.subr.bf16.mxu0 %v1428
      %1801 = vmatpush1.bf16.msra.mxu0 %v1427
      %1802 = vmatprep.subr.bf16.mxu0 %v1436
      %1803 = vmatpush1.bf16.msra.mxu0 %v1435
      %1804 = vmatprep.subr.bf16.mxu0 %v1444
      %1805 = vmatpush1.bf16.msra.mxu0 %v1443
      %1806 = vmatprep.subr.bf16.mxu0 %v1452
      %1807 = vmatpush1.bf16.msra.mxu0 %v1451
      %1808 = vmatprep.subr.bf16.mxu0 %v1460
      %1809 = vmatpush1.bf16.msra.mxu0 %v1459
      %1810 = vmatprep.subr.bf16.mxu0 %v1468
      %1811 = vmatpush1.bf16.msra.mxu0 %v1467
      %1812 = vmatprep.subr.bf16.mxu0 %v1476
      %1813 = vmatpush1.bf16.msra.mxu0 %v1475
      %1814 = vmatprep.subr.bf16.mxu0 %v1484
      %1815 = vmatpush1.bf16.msra.mxu0 %v1483
      %1816 = vmatprep.subr.bf16.mxu0 %v1492
      %1817 = vmatpush1.bf16.msra.mxu0 %v1491
      %1818 = vmatprep.subr.bf16.mxu0 %v1500
      %1819 = vmatpush1.bf16.msra.mxu0 %v1499
      %1820 = vmatprep.subr.bf16.mxu0 %v1508
      %1821 = vmatpush1.bf16.msra.mxu0 %v1507
      %1822 = vmatprep.subr.bf16.mxu0 %v1516
      %1823 = vmatpush1.bf16.msra.mxu0 %v1515
      %1824 = vmatprep.subr.bf16.mxu0 %v1524
      %1825 = vmatpush1.bf16.msra.mxu0 %v1523
      %1826 = vmatprep.subr.bf16.mxu0 %v1532
      %1827 = vmatpush1.bf16.msra.mxu0 %v1531
      %1828 = vmatprep.subr.bf16.mxu0 %v1540
      %1829 = vmatpush1.bf16.msra.mxu0 %v1539
      %1830 = vmatprep.subr.bf16.mxu0 %v1548
      %1831 = vmatpush1.bf16.msra.mxu0 %v1547
      %1832 = vmatprep.mubr.bf16.mxu0 %v908
      %1833 = vmatmul.mubr.bf16.gmra.mrb[0].mxu0 %v907
      %v1834 = vpop.f32.mrb[0].mxu0
      %v1835 = vadd.f32 0.0, %v1834
      %v1836 = vpop.f32.mrb[0].mxu0
      %v1837 = vadd.f32 0.0, %v1836
      %v1838 = vpop.f32.mrb[0].mxu0
      %v1839 = vpop.f32.mrb[0].mxu0
      %1840 = vdwg.mxu0
      %s1841 = smul.u32 %s899, 8
      %s1842 = smul.addr %s1841, 2
      %s1843 = scalar_lea.vmem [#allocation2], %s1842
      %v1844 = vld [vmem:[%s1843] sm:$0xff]
      %v1849 = vcombine.low %v1712, %v1714
      %v1850 = vcombine.low %v1753, %v1755
      %v1852 = vunpack.c.l.s4 1983009808
      %v1853 = vunpack.c.0.s8 %v1852
      %v1854 = vlaneseq
      %v1855 = vshrl.u32 %v1854, 7
      %v1856 = vsub.s32 %v1853, %v1855
      %v1857 = vrot.slane %v1849, %v1856
      %v1859 = vunpack.c.l.s4 1983009808
      %v1860 = vunpack.c.0.s8 %v1859
      %v1861 = vlaneseq
      %v1862 = vshrl.u32 %v1861, 7
      %v1863 = vsub.s32 %v1860, %v1862
      %v1864 = vrot.slane %v1850, %v1863
      %v1865 = vcombine.low %v1857, %v1864
      %v1867 = vadd.f32 %v1844, %v1865
      %s1868 = smul.u32 %s904, 8
      %s1869 = smul.addr %s1868, 2
      %s1870 = scalar_lea.vmem [#allocation2], %s1869
      %v1871 = vld [vmem:[%s1870 + $0x8] sm:$0xff]
      %v1876 = vcombine.low %v1794, %v1796
      %v1877 = vcombine.low %v1835, %v1837
      %v1879 = vunpack.c.l.s4 1983009808
      %v1880 = vunpack.c.0.s8 %v1879
      %v1881 = vlaneseq
      %v1882 = vshrl.u32 %v1881, 7
      %v1883 = vsub.s32 %v1880, %v1882
      %v1884 = vrot.slane %v1876, %v1883
      %v1886 = vunpack.c.l.s4 1983009808
      %v1887 = vunpack.c.0.s8 %v1886
      %v1888 = vlaneseq
      %v1889 = vshrl.u32 %v1888, 7
      %v1890 = vsub.s32 %v1887, %v1889
      %v1891 = vrot.slane %v1877, %v1890
      %v1892 = vcombine.low %v1884, %v1891
      %v1894 = vadd.f32 %v1871, %v1892
      %s1895 = smul.u32 %s899, 2
      %s1896 = scalar_lea.vmem %s1, %s1895
      %v1897 = vld [vmem:[%s1896] sm:$0x3]
      %v1898 = vxor.u32 %v1867, 2147483648
      %v1899 = vmul.f32 %v1898, 1.442695
      %v1900 = vpow.pop %v1899
      %v1901 = vadd.f32 %v1900, 1.0
      %v1902 = vrcp.pop %v1901
      %v1903 = vmul.f32 1.0, %v1902
      %v1905 = vrot.slane %v1867, 2
      %v1907 = vxor.u32 %v1905, 2147483648
      %v1908 = vmul.f32 %v1907, 1.442695
      %v1909 = vpow.pop %v1908
      %v1910 = vadd.f32 %v1909, 1.0
      %v1911 = vrcp.pop %v1910
      %v1912 = vmul.f32 1.0, %v1911
      %v1913 = vrot.slane %v1867, 4
      %v1915 = vtanh.pop %v1913
      %v1916 = vrot.slane %v1867, 6
      %v1918 = vxor.u32 %v1916, 2147483648
      %v1919 = vmul.f32 %v1918, 1.442695
      %v1920 = vpow.pop %v1919
      %v1921 = vadd.f32 %v1920, 1.0
      %v1922 = vrcp.pop %v1921
      %v1923 = vmul.f32 1.0, %v1922
      %v1924 = vld [vmem:[#allocation4] sm:$0x3]
      %v1925 = vmul.f32 %v1912, %v1924
      %v1926 = vmul.f32 %v1903, %v1915
      %v1927 = vadd.f32 %v1925, %v1926
      %v1928 = vtanh.pop %v1927
      %v1929 = vmul.f32 %v1923, %v1928
      %1931 = vset.pattern.permute.xlu0 0
      %1932 = vperm.xlu0 %1931, %v1897
      %v1933 = vpop.permute.xlu0 %1932
      %v1935 = vmul.f32 %v1933, %v1929
      %v1936 = vsub.f32 1.0, %v1897
      %1938 = vset.pattern.permute.xlu0 0
      %1939 = vperm.xlu0 %1938, %v1936
      %v1940 = vpop.permute.xlu0 %1939
      %v1942 = vmul.f32 %v1940, %v905
      %v1943 = vadd.f32 %v1935, %v1942
      %1944 = vst [vmem:[#allocation3] sm:$0x3] %v1943
      %v1945 = vmul.f32 %v1933, %v1927
      %v1946 = vld [vmem:[#allocation4] sm:$0x3]
      %v1947 = vmul.f32 %v1940, %v1946
      %v1948 = vadd.f32 %v1945, %v1947
      %1949 = vst [vmem:[#allocation4] sm:$0x3] %v1948
      %s1950 = scalar_lea.vmem %s5, %s1895
      %1951 = vst [vmem:[%s1950] sm:$0x3] %v1935
      %s1952 = smul.u32 %s904, 2
      %s1953 = scalar_lea.vmem %s1, %s1952
      %v1954 = vld [vmem:[%s1953] sm:$0x3]
      %v1955 = vxor.u32 %v1894, 2147483648
      %v1956 = vmul.f32 %v1955, 1.442695
      %v1957 = vpow.pop %v1956
      %v1958 = vadd.f32 %v1957, 1.0
      %v1959 = vrcp.pop %v1958
      %v1960 = vmul.f32 1.0, %v1959
      %v1962 = vrot.slane %v1894, 2
      %v1964 = vxor.u32 %v1962, 2147483648
      %v1965 = vmul.f32 %v1964, 1.442695
      %v1966 = vpow.pop %v1965
      %v1967 = vadd.f32 %v1966, 1.0
      %v1968 = vrcp.pop %v1967
      %v1969 = vmul.f32 1.0, %v1968
      %v1970 = vrot.slane %v1894, 4
      %v1972 = vtanh.pop %v1970
      %v1973 = vrot.slane %v1894, 6
      %v1975 = vxor.u32 %v1973, 2147483648
      %v1976 = vmul.f32 %v1975, 1.442695
      %v1977 = vpow.pop %v1976
      %v1978 = vadd.f32 %v1977, 1.0
      %v1979 = vrcp.pop %v1978
      %v1980 = vmul.f32 1.0, %v1979
      %v1981 = vld [vmem:[#allocation6] sm:$0x3]
      %v1982 = vmul.f32 %v1969, %v1981
      %v1983 = vmul.f32 %v1960, %v1972
      %v1984 = vadd.f32 %v1982, %v1983
      %v1985 = vtanh.pop %v1984
      %v1986 = vmul.f32 %v1980, %v1985
      %1988 = vset.pattern.permute.xlu0 0
      %1989 = vperm.xlu0 %1988, %v1954
      %v1990 = vpop.permute.xlu0 %1989
      %v1992 = vmul.f32 %v1990, %v1986
      %v1993 = vsub.f32 1.0, %v1954
      %v1994 = vld [vmem:[#allocation5] sm:$0x3]
      %1996 = vset.pattern.permute.xlu0 0
      %1997 = vperm.xlu0 %1996, %v1993
      %v1998 = vpop.permute.xlu0 %1997
      %v2000 = vmul.f32 %v1998, %v1994
      %v2001 = vadd.f32 %v1992, %v2000
      %2002 = vst [vmem:[#allocation5] sm:$0x3] %v2001
      %v2003 = vmul.f32 %v1990, %v1984
      %v2004 = vld [vmem:[#allocation6] sm:$0x3]
      %v2005 = vmul.f32 %v1998, %v2004
      %v2006 = vadd.f32 %v2003, %v2005
      %2007 = vst [vmem:[#allocation6] sm:$0x3] %v2006
      %s2008 = scalar_lea.vmem %s6, %s1952
      %2009 = vst [vmem:[%s2008] sm:$0x3] %v1992
    $region34: #{seq2seq_forward.2} parent=1 // loop_footer
      %s903 = sadd.s32 1, %s899
    $region35: #{seq2seq_forward.2} parent=1 // loop_footer_branch
      %898 = sbr.rel target = $region31
    $region36: #{seq2seq_forward.2} parent=1 // loop_exit
      _
    // Predicated region
    $region37: #{seq2seq_forward.2} parent=1 // pred_check
      _
    $region38: #{seq2seq_forward.2} parent=1 // pred_check_branch
      %2011 = sbr.rel (0) target = $region40
    $region39: #{seq2seq_forward.2} parent=1 // pred_region
      _
    $region40: #{seq2seq_forward.2} parent=1 // pred_fallthru
      _
    // Predicated region
    $region41: #{seq2seq_forward.2} parent=1 // pred_check
      _
    $region42: #{seq2seq_forward.2} parent=1 // pred_check_branch
      %2013 = sbr.rel (0) target = $region44
    $region43: #{seq2seq_forward.2} parent=1 // pred_region
      _
    $region44: #{seq2seq_forward.2} parent=1 // pred_fallthru
      _
    // Predicated region
    $region45: #{seq2seq_forward.2} parent=1 // pred_check
      _
    $region46: #{seq2seq_forward.2} parent=1 // pred_check_branch
      %2015 = sbr.rel (0) target = $region48
    $region47: #{seq2seq_forward.2} parent=1 // pred_region
      _
    $region48: #{seq2seq_forward.2} parent=1 // pred_fallthru
      _
    // Predicated region
    $region49: #{seq2seq_forward.2} parent=1 // pred_check
      _
    $region50: #{seq2seq_forward.2} parent=1 // pred_check_branch
      %2017 = sbr.rel (0) target = $region52
    $region51: #{seq2seq_forward.2} parent=1 // pred_region
      _
    $region52: #{seq2seq_forward.2} parent=1 // pred_fallthru
      _
    %2018 = vsyncpa [#allocation8], 1
    %2019 = vsyncpa [#allocation10], 1

</llo_original>
